<compile_context>
chip_gen: v7x
topology: tpu7x:2x2x1
jax: 0.10.0
libtpu: 0.0.40
codegen_flags: <defaults>
</compile_context>

<pallas_src>
import numpy as np

import jax
import jax.numpy as jnp
from jax.experimental import pallas as pl
from jax.experimental.pallas import tpu as pltpu


# ---------------------------------------------------------------------------
# Host-side, once per parameter set: fold each conv / conv-transpose into small
# dense matrices acting on an (H, W*C) activation tile (channel minor in lanes).
# ---------------------------------------------------------------------------
def _enc_mats(w, b, H, W):
    """Conv2d(Cin->Cout, 3x3, stride 2, pad 1):
         out = sum_ky  R_ky @ (x @ M)[:, ky-chunk]  + b
       M[(wi*Cin+ci), (ky*OW+ow)*Cout+co] = w[co, ci, ky, wi-2*ow+1]   (0 if tap oob)
       R_ky[oh, 2*oh+ky-1] = 1                                         (0 if row oob)
    """
    Cout, Cin = w.shape[:2]
    OH, OW = H // 2, W // 2
    M = np.zeros((W * Cin, 3 * OW * Cout), np.float32)
    for ky in range(3):
        for ow in range(OW):
            for kx in range(3):
                wi = 2 * ow + kx - 1
                if 0 <= wi < W:
                    M[wi * Cin:(wi + 1) * Cin,
                      (ky * OW + ow) * Cout:(ky * OW + ow + 1) * Cout] = w[:, :, ky, kx].T
    Rs = []
    for ky in range(3):
        R = np.zeros((OH, H), np.float32)
        for oh in range(OH):
            hi = 2 * oh + ky - 1
            if 0 <= hi < H:
                R[oh, hi] = 1.0
        Rs.append(R)
    brow = np.tile(b.astype(np.float32), OW)[None, :]          # (1, OW*Cout)
    return M, Rs, brow


def _dec_mats(w, b, H, W):
    """ConvTranspose2d(Cin->Cout, 3x3, stride 2, pad 1, output_pad 1) via the
    sub-pixel decomposition:
         out = sum_{(py,dy)}  F_{py,dy} @ (x @ D_{py,dy})  + b
    out row 2i+py takes input row i+dy with kernel row ky = py + 1 - 2*dy
    (the pair (py,dy)=(0,1) has no valid kernel row and is dropped)."""
    Cin, Cout = w.shape[:2]
    Ds, Fs = [], []
    for py, dy in ((0, 0), (1, 0), (1, 1)):
        ky = py + 1 - 2 * dy
        D = np.zeros((W * Cin, 2 * W * Cout), np.float32)
        for iw in range(W):
            for ow in range(2 * W):
                kx = ow + 1 - 2 * iw
                if 0 <= kx <= 2:
                    D[iw * Cin:(iw + 1) * Cin,
                      ow * Cout:(ow + 1) * Cout] = w[:, :, ky, kx]
        F = np.zeros((2 * H, H), np.float32)
        for i in range(H):
            if i + dy < H:
                F[2 * i + py, i + dy] = 1.0
        Ds.append(D)
        Fs.append(F)
    brow = np.tile(b.astype(np.float32), 2 * W)[None, :]        # (1, 2W*Cout)
    return Ds, Fs, brow


# ---------------------------------------------------------------------------
# Fused in-kernel layers (all operands are VMEM-resident values / refs).
# ---------------------------------------------------------------------------
def _enc_layer(h, m_ref, r0_ref, r1_ref, r2_ref, b_ref):
    """Conv2d(3x3, s2, p1) + bias + ReLU on an (H, W*Cin) tile -> (OH, OW*Cout)."""
    owc = m_ref.shape[1] // 3
    y = jnp.dot(h.astype(jnp.bfloat16), m_ref[...],
                preferred_element_type=jnp.float32)              # (H, 3*OW*Cout)
    out = (jnp.dot(r0_ref[...], y[:, :owc], preferred_element_type=jnp.float32)
           + jnp.dot(r1_ref[...], y[:, owc:2 * owc], preferred_element_type=jnp.float32)
           + jnp.dot(r2_ref[...], y[:, 2 * owc:], preferred_element_type=jnp.float32)
           + b_ref[...])
    return jnp.maximum(out, 0.0)


def _dec_layer(h, d00_ref, d10_ref, d11_ref, f00_ref, f10_ref, f11_ref, b_ref, *, last):
    """ConvTranspose2d(3x3, s2, p1, op1) + bias + ReLU/Sigmoid on (H, W*Cin)
    -> (2H, 2W*Cout), pixel-shuffle already folded into the F matrices."""
    hb = h.astype(jnp.bfloat16)
    c00 = jnp.dot(hb, d00_ref[...], preferred_element_type=jnp.float32)
    c10 = jnp.dot(hb, d10_ref[...], preferred_element_type=jnp.float32)
    c11 = jnp.dot(hb, d11_ref[...], preferred_element_type=jnp.float32)
    out = (jnp.dot(f00_ref[...], c00, preferred_element_type=jnp.float32)
           + jnp.dot(f10_ref[...], c10, preferred_element_type=jnp.float32)
           + jnp.dot(f11_ref[...], c11, preferred_element_type=jnp.float32)
           + b_ref[...])
    if last:
        return 1.0 / (1.0 + jnp.exp(-out))       # exact sigmoid on the visible output
    return jnp.maximum(out, 0.0)


def _autoencoder_kernel(*refs):
    x_ref, o_ref = refs[0], refs[-1]
    c = refs[1:-1]                               # 3*5 encoder + 3*7 decoder consts
    h = x_ref[0]                                 # (H, W)  (Cin == 1)
    p = 0
    for _ in range(3):                           # encoder: 16 -> 8 -> 4 -> 2 spatial
        h = _enc_layer(h, *c[p:p + 5])
        p += 5
    for l in range(3):                           # decoder: 2 -> 4 -> 8 -> 16 spatial
        h = _dec_layer(h, *c[p:p + 7], last=(l == 2))
        p += 7
    o_ref[0] = h.astype(o_ref.dtype)             # (H, W) final image, Cout == 1


# ---------------------------------------------------------------------------
# Builder: fold params once, return a jitted forward (NCHW in / NCHW out).
# ---------------------------------------------------------------------------
def build_autoencoder(params, H=16, W=16):
    assert H % 8 == 0 and W % 8 == 0, "need three even stride-2 stages"
    consts = []
    h, w = H, W
    for name in ("e1", "e2", "e3"):
        M, Rs, brow = _enc_mats(np.asarray(params[name + "_w"], np.float32),
                                np.asarray(params[name + "_b"], np.float32), h, w)
        consts.append(jnp.asarray(M, jnp.bfloat16))
        consts.extend(jnp.asarray(R, jnp.float32) for R in Rs)
        consts.append(jnp.asarray(brow, jnp.float32))
        h, w = h // 2, w // 2
    for name in ("d1", "d2", "d3"):
        Ds, Fs, brow = _dec_mats(np.asarray(params[name + "_w"], np.float32),
                                 np.asarray(params[name + "_b"], np.float32), h, w)
        consts.extend(jnp.asarray(D, jnp.bfloat16) for D in Ds)
        consts.extend(jnp.asarray(F, jnp.float32) for F in Fs)
        consts.append(jnp.asarray(brow, jnp.float32))
        h, w = 2 * h, 2 * w
    assert (h, w) == (H, W)

    const_specs = [pl.BlockSpec(cst.shape, lambda n: (0, 0)) for cst in consts]

    def forward(x_nchw):
        N, C = x_nchw.shape[:2]
        assert C == 1
        x2 = x_nchw.reshape(N, H, W).astype(jnp.float32)         # Cin == 1: no-op layout
        out = pl.pallas_call(
            _autoencoder_kernel,
            out_shape=jax.ShapeDtypeStruct((N, H, W), jnp.float32),
            grid=(N,),
            in_specs=[pl.BlockSpec((1, H, W), lambda n: (n, 0, 0))] + const_specs,
            out_specs=pl.BlockSpec((1, H, W), lambda n: (n, 0, 0)),
            compiler_params=pltpu.CompilerParams(
                dimension_semantics=("parallel",),               # batch across TCs on v7x
            ),
        )(x2, *consts)
        return out.reshape(N, 1, H, W)

    return jax.jit(forward)


# ---------------------------------------------------------------------------
# Parameter init (deterministic, PyTorch-default-style uniform bounds)
# ---------------------------------------------------------------------------
def _uniform(key, shape, bound):
    return jax.random.uniform(key, shape, jnp.float32, -bound, bound)


def init_params(key):
    ks = jax.random.split(key, 12)

    def conv_init(kw, kb, cout, cin, k):
        bound = 1.0 / (cin * k * k) ** 0.5
        return _uniform(kw, (cout, cin, k, k), bound), _uniform(kb, (cout,), bound)

    def convt_init(kw, kb, cin, cout, k):
        bound = 1.0 / (cout * k * k) ** 0.5
        return _uniform(kw, (cin, cout, k, k), bound), _uniform(kb, (cout,), bound)

    p = {}
    p["e1_w"], p["e1_b"] = conv_init(ks[0], ks[1], 16, 1, 3)
    p["e2_w"], p["e2_b"] = conv_init(ks[2], ks[3], 32, 16, 3)
    p["e3_w"], p["e3_b"] = conv_init(ks[4], ks[5], 64, 32, 3)
    p["d1_w"], p["d1_b"] = convt_init(ks[6], ks[7], 64, 32, 3)
    p["d2_w"], p["d2_b"] = convt_init(ks[8], ks[9], 32, 16, 3)
    p["d3_w"], p["d3_b"] = convt_init(ks[10], ks[11], 16, 1, 3)
    return p


# ---------------------------------------------------------------------------
# Pure-JAX reference (XLA convs, f32) with PyTorch semantics, for verification.
# ---------------------------------------------------------------------------
def reference_forward(params, x_nchw):
    dn = ("NCHW", "OIHW", "NCHW")

    def conv(h, w, b):
        y = jax.lax.conv_general_dilated(h, w, (2, 2), ((1, 1), (1, 1)),
                                         dimension_numbers=dn)
        return jnp.maximum(y + b[None, :, None, None], 0.0)

    def convt(h, w, b):
        wf = jnp.flip(jnp.transpose(w, (1, 0, 2, 3)), axis=(2, 3))
        y = jax.lax.conv_general_dilated(h, wf, (1, 1), ((1, 2), (1, 2)),
                                         lhs_dilation=(2, 2), dimension_numbers=dn)
        return y + b[None, :, None, None]

    h = conv(x_nchw, params["e1_w"], params["e1_b"])
    h = conv(h, params["e2_w"], params["e2_b"])
    h = conv(h, params["e3_w"], params["e3_b"])
    h = jnp.maximum(convt(h, params["d1_w"], params["d1_b"]), 0.0)
    h = jnp.maximum(convt(h, params["d2_w"], params["d2_b"]), 0.0)
    h = jax.nn.sigmoid(convt(h, params["d3_w"], params["d3_b"]))
    return h


if __name__ == "__main__":
    x = jax.random.normal(jax.random.PRNGKey(0), (2, 1, 16, 16), dtype=jnp.float32)
    params = init_params(jax.random.PRNGKey(42))

    fwd = build_autoencoder(params, H=16, W=16)
    y = fwd(x)
    jax.block_until_ready(y)

    assert y.shape == (2, 1, 16, 16), y.shape
    assert bool(jnp.all(jnp.isfinite(y)))
    assert bool(jnp.all((y >= 0.0) & (y <= 1.0)))    # exact sigmoid range

    y_ref = reference_forward(params, x)
    err = float(jnp.max(jnp.abs(y - y_ref)))
    assert err < 5e-2, f"mismatch vs reference convs: max abs err = {err}"

    print("KERNEL_OK")
</pallas_src>

<mosaic_0001>
module attributes {stable_mosaic.version = 11 : i64} {
  func.func @_autoencoder_kernel(%arg0: i32, %arg1: memref<1x16x16xf32, #tpu.memory_space<vmem>>, %arg2: memref<16x384xbf16, #tpu.memory_space<vmem>>, %arg3: memref<8x16xf32, #tpu.memory_space<vmem>>, %arg4: memref<8x16xf32, #tpu.memory_space<vmem>>, %arg5: memref<8x16xf32, #tpu.memory_space<vmem>>, %arg6: memref<1x128xf32, #tpu.memory_space<vmem>>, %arg7: memref<128x384xbf16, #tpu.memory_space<vmem>>, %arg8: memref<4x8xf32, #tpu.memory_space<vmem>>, %arg9: memref<4x8xf32, #tpu.memory_space<vmem>>, %arg10: memref<4x8xf32, #tpu.memory_space<vmem>>, %arg11: memref<1x128xf32, #tpu.memory_space<vmem>>, %arg12: memref<128x384xbf16, #tpu.memory_space<vmem>>, %arg13: memref<2x4xf32, #tpu.memory_space<vmem>>, %arg14: memref<2x4xf32, #tpu.memory_space<vmem>>, %arg15: memref<2x4xf32, #tpu.memory_space<vmem>>, %arg16: memref<1x128xf32, #tpu.memory_space<vmem>>, %arg17: memref<128x128xbf16, #tpu.memory_space<vmem>>, %arg18: memref<128x128xbf16, #tpu.memory_space<vmem>>, %arg19: memref<128x128xbf16, #tpu.memory_space<vmem>>, %arg20: memref<4x2xf32, #tpu.memory_space<vmem>>, %arg21: memref<4x2xf32, #tpu.memory_space<vmem>>, %arg22: memref<4x2xf32, #tpu.memory_space<vmem>>, %arg23: memref<1x128xf32, #tpu.memory_space<vmem>>, %arg24: memref<128x128xbf16, #tpu.memory_space<vmem>>, %arg25: memref<128x128xbf16, #tpu.memory_space<vmem>>, %arg26: memref<128x128xbf16, #tpu.memory_space<vmem>>, %arg27: memref<8x4xf32, #tpu.memory_space<vmem>>, %arg28: memref<8x4xf32, #tpu.memory_space<vmem>>, %arg29: memref<8x4xf32, #tpu.memory_space<vmem>>, %arg30: memref<1x128xf32, #tpu.memory_space<vmem>>, %arg31: memref<128x16xbf16, #tpu.memory_space<vmem>>, %arg32: memref<128x16xbf16, #tpu.memory_space<vmem>>, %arg33: memref<128x16xbf16, #tpu.memory_space<vmem>>, %arg34: memref<16x8xf32, #tpu.memory_space<vmem>>, %arg35: memref<16x8xf32, #tpu.memory_space<vmem>>, %arg36: memref<16x8xf32, #tpu.memory_space<vmem>>, %arg37: memref<1x16xf32, #tpu.memory_space<vmem>>, %arg38: memref<1x16x16xf32, #tpu.memory_space<vmem>>) attributes {dimension_semantics = [#tpu.dimension_semantics<parallel>], iteration_bounds = array<i64: 2>, scalar_prefetch = 0 : i64, scratch_operands = 0 : i64, tpu.core_type = #tpu.core_type<tc>, window_params = [{transform_indices = @transform_0, window_bounds = array<i64: 1, 16, 16>}, {pipeline_mode = #tpu.pipeline_mode<synchronous>, transform_indices = @transform_1, window_bounds = array<i64: 16, 384>}, {pipeline_mode = #tpu.pipeline_mode<synchronous>, transform_indices = @transform_2, window_bounds = array<i64: 8, 16>}, {pipeline_mode = #tpu.pipeline_mode<synchronous>, transform_indices = @transform_3, window_bounds = array<i64: 8, 16>}, {pipeline_mode = #tpu.pipeline_mode<synchronous>, transform_indices = @transform_4, window_bounds = array<i64: 8, 16>}, {pipeline_mode = #tpu.pipeline_mode<synchronous>, transform_indices = @transform_5, window_bounds = array<i64: 1, 128>}, {pipeline_mode = #tpu.pipeline_mode<synchronous>, transform_indices = @transform_6, window_bounds = array<i64: 128, 384>}, {pipeline_mode = #tpu.pipeline_mode<synchronous>, transform_indices = @transform_7, window_bounds = array<i64: 4, 8>}, {pipeline_mode = #tpu.pipeline_mode<synchronous>, transform_indices = @transform_8, window_bounds = array<i64: 4, 8>}, {pipeline_mode = #tpu.pipeline_mode<synchronous>, transform_indices = @transform_9, window_bounds = array<i64: 4, 8>}, {pipeline_mode = #tpu.pipeline_mode<synchronous>, transform_indices = @transform_10, window_bounds = array<i64: 1, 128>}, {pipeline_mode = #tpu.pipeline_mode<synchronous>, transform_indices = @transform_11, window_bounds = array<i64: 128, 384>}, {pipeline_mode = #tpu.pipeline_mode<synchronous>, transform_indices = @transform_12, window_bounds = array<i64: 2, 4>}, {pipeline_mode = #tpu.pipeline_mode<synchronous>, transform_indices = @transform_13, window_bounds = array<i64: 2, 4>}, {pipeline_mode = #tpu.pipeline_mode<synchronous>, transform_indices = @transform_14, window_bounds = array<i64: 2, 4>}, {pipeline_mode = #tpu.pipeline_mode<synchronous>, transform_indices = @transform_15, window_bounds = array<i64: 1, 128>}, {pipeline_mode = #tpu.pipeline_mode<synchronous>, transform_indices = @transform_16, window_bounds = array<i64: 128, 128>}, {pipeline_mode = #tpu.pipeline_mode<synchronous>, transform_indices = @transform_17, window_bounds = array<i64: 128, 128>}, {pipeline_mode = #tpu.pipeline_mode<synchronous>, transform_indices = @transform_18, window_bounds = array<i64: 128, 128>}, {pipeline_mode = #tpu.pipeline_mode<synchronous>, transform_indices = @transform_19, window_bounds = array<i64: 4, 2>}, {pipeline_mode = #tpu.pipeline_mode<synchronous>, transform_indices = @transform_20, window_bounds = array<i64: 4, 2>}, {pipeline_mode = #tpu.pipeline_mode<synchronous>, transform_indices = @transform_21, window_bounds = array<i64: 4, 2>}, {pipeline_mode = #tpu.pipeline_mode<synchronous>, transform_indices = @transform_22, window_bounds = array<i64: 1, 128>}, {pipeline_mode = #tpu.pipeline_mode<synchronous>, transform_indices = @transform_23, window_bounds = array<i64: 128, 128>}, {pipeline_mode = #tpu.pipeline_mode<synchronous>, transform_indices = @transform_24, window_bounds = array<i64: 128, 128>}, {pipeline_mode = #tpu.pipeline_mode<synchronous>, transform_indices = @transform_25, window_bounds = array<i64: 128, 128>}, {pipeline_mode = #tpu.pipeline_mode<synchronous>, transform_indices = @transform_26, window_bounds = array<i64: 8, 4>}, {pipeline_mode = #tpu.pipeline_mode<synchronous>, transform_indices = @transform_27, window_bounds = array<i64: 8, 4>}, {pipeline_mode = #tpu.pipeline_mode<synchronous>, transform_indices = @transform_28, window_bounds = array<i64: 8, 4>}, {pipeline_mode = #tpu.pipeline_mode<synchronous>, transform_indices = @transform_29, window_bounds = array<i64: 1, 128>}, {pipeline_mode = #tpu.pipeline_mode<synchronous>, transform_indices = @transform_30, window_bounds = array<i64: 128, 16>}, {pipeline_mode = #tpu.pipeline_mode<synchronous>, transform_indices = @transform_31, window_bounds = array<i64: 128, 16>}, {pipeline_mode = #tpu.pipeline_mode<synchronous>, transform_indices = @transform_32, window_bounds = array<i64: 128, 16>}, {pipeline_mode = #tpu.pipeline_mode<synchronous>, transform_indices = @transform_33, window_bounds = array<i64: 16, 8>}, {pipeline_mode = #tpu.pipeline_mode<synchronous>, transform_indices = @transform_34, window_bounds = array<i64: 16, 8>}, {pipeline_mode = #tpu.pipeline_mode<synchronous>, transform_indices = @transform_35, window_bounds = array<i64: 16, 8>}, {pipeline_mode = #tpu.pipeline_mode<synchronous>, transform_indices = @transform_36, window_bounds = array<i64: 1, 16>}, {transform_indices = @transform_37, window_bounds = array<i64: 1, 16, 16>}]} {
    %c0 = arith.constant 0 : index
    %c0_0 = arith.constant 0 : index
    %c0_1 = arith.constant 0 : index
    %0 = vector.load %arg1[%c0, %c0_0, %c0_1] : memref<1x16x16xf32, #tpu.memory_space<vmem>>, vector<1x16x16xf32>
    %1 = vector.shape_cast %0 : vector<1x16x16xf32> to vector<16x16xf32>
    %2 = arith.truncf %1 : vector<16x16xf32> to vector<16x16xbf16>
    %c0_2 = arith.constant 0 : index
    %c0_3 = arith.constant 0 : index
    %3 = vector.load %arg2[%c0_2, %c0_3] : memref<16x384xbf16, #tpu.memory_space<vmem>>, vector<16x384xbf16>
    %cst = arith.constant dense<0.000000e+00> : vector<16x384xf32>
    %4 = tpu.matmul %2, %3, %cst {dimension_numbers = #tpu.dot_dimension_numbers<[1], [0], [0], [1], [0, 0, 1, 1], [], []>} : vector<16x16xbf16>, vector<16x384xbf16>, vector<16x384xf32> -> vector<16x384xf32>
    %c0_4 = arith.constant 0 : index
    %c0_5 = arith.constant 0 : index
    %5 = vector.load %arg3[%c0_4, %c0_5] : memref<8x16xf32, #tpu.memory_space<vmem>>, vector<8x16xf32>
    %6 = vector.extract_strided_slice %4 {offsets = [0, 0], sizes = [16, 128], strides = [1, 1]} : vector<16x384xf32> to vector<16x128xf32>
    %cst_6 = arith.constant dense<0.000000e+00> : vector<8x128xf32>
    %7 = tpu.matmul %5, %6, %cst_6 {dimension_numbers = #tpu.dot_dimension_numbers<[1], [0], [0], [1], [0, 0, 1, 1], [], []>} : vector<8x16xf32>, vector<16x128xf32>, vector<8x128xf32> -> vector<8x128xf32>
    %c0_7 = arith.constant 0 : index
    %c0_8 = arith.constant 0 : index
    %8 = vector.load %arg4[%c0_7, %c0_8] : memref<8x16xf32, #tpu.memory_space<vmem>>, vector<8x16xf32>
    %9 = vector.extract_strided_slice %4 {offsets = [0, 128], sizes = [16, 128], strides = [1, 1]} : vector<16x384xf32> to vector<16x128xf32>
    %cst_9 = arith.constant dense<0.000000e+00> : vector<8x128xf32>
    %10 = tpu.matmul %8, %9, %cst_9 {dimension_numbers = #tpu.dot_dimension_numbers<[1], [0], [0], [1], [0, 0, 1, 1], [], []>} : vector<8x16xf32>, vector<16x128xf32>, vector<8x128xf32> -> vector<8x128xf32>
    %11 = arith.addf %7, %10 : vector<8x128xf32>
    %c0_10 = arith.constant 0 : index
    %c0_11 = arith.constant 0 : index
    %12 = vector.load %arg5[%c0_10, %c0_11] : memref<8x16xf32, #tpu.memory_space<vmem>>, vector<8x16xf32>
    %13 = vector.extract_strided_slice %4 {offsets = [0, 256], sizes = [16, 128], strides = [1, 1]} : vector<16x384xf32> to vector<16x128xf32>
    %cst_12 = arith.constant dense<0.000000e+00> : vector<8x128xf32>
    %14 = tpu.matmul %12, %13, %cst_12 {dimension_numbers = #tpu.dot_dimension_numbers<[1], [0], [0], [1], [0, 0, 1, 1], [], []>} : vector<8x16xf32>, vector<16x128xf32>, vector<8x128xf32> -> vector<8x128xf32>
    %15 = arith.addf %11, %14 : vector<8x128xf32>
    %c0_13 = arith.constant 0 : index
    %c0_14 = arith.constant 0 : index
    %16 = vector.load %arg6[%c0_13, %c0_14] : memref<1x128xf32, #tpu.memory_space<vmem>>, vector<1x128xf32>
    %17 = vector.broadcast %16 : vector<1x128xf32> to vector<8x128xf32>
    %18 = arith.addf %15, %17 : vector<8x128xf32>
    %cst_15 = arith.constant 0.000000e+00 : f32
    %19 = vector.broadcast %cst_15 : f32 to vector<8x128xf32>
    %20 = arith.maximumf %18, %19 : vector<8x128xf32>
    %21 = arith.truncf %20 : vector<8x128xf32> to vector<8x128xbf16>
    %c0_16 = arith.constant 0 : index
    %c0_17 = arith.constant 0 : index
    %22 = vector.load %arg7[%c0_16, %c0_17] : memref<128x384xbf16, #tpu.memory_space<vmem>>, vector<128x384xbf16>
    %cst_18 = arith.constant dense<0.000000e+00> : vector<8x384xf32>
    %23 = tpu.matmul %21, %22, %cst_18 {dimension_numbers = #tpu.dot_dimension_numbers<[1], [0], [0], [1], [0, 0, 1, 1], [], []>} : vector<8x128xbf16>, vector<128x384xbf16>, vector<8x384xf32> -> vector<8x384xf32>
    %c0_19 = arith.constant 0 : index
    %c0_20 = arith.constant 0 : index
    %24 = vector.load %arg8[%c0_19, %c0_20] : memref<4x8xf32, #tpu.memory_space<vmem>>, vector<4x8xf32>
    %25 = vector.extract_strided_slice %23 {offsets = [0, 0], sizes = [8, 128], strides = [1, 1]} : vector<8x384xf32> to vector<8x128xf32>
    %cst_21 = arith.constant dense<0.000000e+00> : vector<4x128xf32>
    %26 = tpu.matmul %24, %25, %cst_21 {dimension_numbers = #tpu.dot_dimension_numbers<[1], [0], [0], [1], [0, 0, 1, 1], [], []>} : vector<4x8xf32>, vector<8x128xf32>, vector<4x128xf32> -> vector<4x128xf32>
    %c0_22 = arith.constant 0 : index
    %c0_23 = arith.constant 0 : index
    %27 = vector.load %arg9[%c0_22, %c0_23] : memref<4x8xf32, #tpu.memory_space<vmem>>, vector<4x8xf32>
    %28 = vector.extract_strided_slice %23 {offsets = [0, 128], sizes = [8, 128], strides = [1, 1]} : vector<8x384xf32> to vector<8x128xf32>
    %cst_24 = arith.constant dense<0.000000e+00> : vector<4x128xf32>
    %29 = tpu.matmul %27, %28, %cst_24 {dimension_numbers = #tpu.dot_dimension_numbers<[1], [0], [0], [1], [0, 0, 1, 1], [], []>} : vector<4x8xf32>, vector<8x128xf32>, vector<4x128xf32> -> vector<4x128xf32>
    %30 = arith.addf %26, %29 : vector<4x128xf32>
    %c0_25 = arith.constant 0 : index
    %c0_26 = arith.constant 0 : index
    %31 = vector.load %arg10[%c0_25, %c0_26] : memref<4x8xf32, #tpu.memory_space<vmem>>, vector<4x8xf32>
    %32 = vector.extract_strided_slice %23 {offsets = [0, 256], sizes = [8, 128], strides = [1, 1]} : vector<8x384xf32> to vector<8x128xf32>
    %cst_27 = arith.constant dense<0.000000e+00> : vector<4x128xf32>
    %33 = tpu.matmul %31, %32, %cst_27 {dimension_numbers = #tpu.dot_dimension_numbers<[1], [0], [0], [1], [0, 0, 1, 1], [], []>} : vector<4x8xf32>, vector<8x128xf32>, vector<4x128xf32> -> vector<4x128xf32>
    %34 = arith.addf %30, %33 : vector<4x128xf32>
    %c0_28 = arith.constant 0 : index
    %c0_29 = arith.constant 0 : index
    %35 = vector.load %arg11[%c0_28, %c0_29] : memref<1x128xf32, #tpu.memory_space<vmem>>, vector<1x128xf32>
    %36 = vector.broadcast %35 : vector<1x128xf32> to vector<4x128xf32>
    %37 = arith.addf %34, %36 : vector<4x128xf32>
    %cst_30 = arith.constant 0.000000e+00 : f32
    %38 = vector.broadcast %cst_30 : f32 to vector<4x128xf32>
    %39 = arith.maximumf %37, %38 : vector<4x128xf32>
    %40 = arith.truncf %39 : vector<4x128xf32> to vector<4x128xbf16>
    %c0_31 = arith.constant 0 : index
    %c0_32 = arith.constant 0 : index
    %41 = vector.load %arg12[%c0_31, %c0_32] : memref<128x384xbf16, #tpu.memory_space<vmem>>, vector<128x384xbf16>
    %cst_33 = arith.constant dense<0.000000e+00> : vector<4x384xf32>
    %42 = tpu.matmul %40, %41, %cst_33 {dimension_numbers = #tpu.dot_dimension_numbers<[1], [0], [0], [1], [0, 0, 1, 1], [], []>} : vector<4x128xbf16>, vector<128x384xbf16>, vector<4x384xf32> -> vector<4x384xf32>
    %c0_34 = arith.constant 0 : index
    %c0_35 = arith.constant 0 : index
    %43 = vector.load %arg13[%c0_34, %c0_35] : memref<2x4xf32, #tpu.memory_space<vmem>>, vector<2x4xf32>
    %44 = vector.extract_strided_slice %42 {offsets = [0, 0], sizes = [4, 128], strides = [1, 1]} : vector<4x384xf32> to vector<4x128xf32>
    %cst_36 = arith.constant dense<0.000000e+00> : vector<2x128xf32>
    %45 = tpu.matmul %43, %44, %cst_36 {dimension_numbers = #tpu.dot_dimension_numbers<[1], [0], [0], [1], [0, 0, 1, 1], [], []>} : vector<2x4xf32>, vector<4x128xf32>, vector<2x128xf32> -> vector<2x128xf32>
    %c0_37 = arith.constant 0 : index
    %c0_38 = arith.constant 0 : index
    %46 = vector.load %arg14[%c0_37, %c0_38] : memref<2x4xf32, #tpu.memory_space<vmem>>, vector<2x4xf32>
    %47 = vector.extract_strided_slice %42 {offsets = [0, 128], sizes = [4, 128], strides = [1, 1]} : vector<4x384xf32> to vector<4x128xf32>
    %cst_39 = arith.constant dense<0.000000e+00> : vector<2x128xf32>
    %48 = tpu.matmul %46, %47, %cst_39 {dimension_numbers = #tpu.dot_dimension_numbers<[1], [0], [0], [1], [0, 0, 1, 1], [], []>} : vector<2x4xf32>, vector<4x128xf32>, vector<2x128xf32> -> vector<2x128xf32>
    %49 = arith.addf %45, %48 : vector<2x128xf32>
    %c0_40 = arith.constant 0 : index
    %c0_41 = arith.constant 0 : index
    %50 = vector.load %arg15[%c0_40, %c0_41] : memref<2x4xf32, #tpu.memory_space<vmem>>, vector<2x4xf32>
    %51 = vector.extract_strided_slice %42 {offsets = [0, 256], sizes = [4, 128], strides = [1, 1]} : vector<4x384xf32> to vector<4x128xf32>
    %cst_42 = arith.constant dense<0.000000e+00> : vector<2x128xf32>
    %52 = tpu.matmul %50, %51, %cst_42 {dimension_numbers = #tpu.dot_dimension_numbers<[1], [0], [0], [1], [0, 0, 1, 1], [], []>} : vector<2x4xf32>, vector<4x128xf32>, vector<2x128xf32> -> vector<2x128xf32>
    %53 = arith.addf %49, %52 : vector<2x128xf32>
    %c0_43 = arith.constant 0 : index
    %c0_44 = arith.constant 0 : index
    %54 = vector.load %arg16[%c0_43, %c0_44] : memref<1x128xf32, #tpu.memory_space<vmem>>, vector<1x128xf32>
    %55 = vector.broadcast %54 : vector<1x128xf32> to vector<2x128xf32>
    %56 = arith.addf %53, %55 : vector<2x128xf32>
    %cst_45 = arith.constant 0.000000e+00 : f32
    %57 = vector.broadcast %cst_45 : f32 to vector<2x128xf32>
    %58 = arith.maximumf %56, %57 : vector<2x128xf32>
    %59 = arith.truncf %58 : vector<2x128xf32> to vector<2x128xbf16>
    %c0_46 = arith.constant 0 : index
    %c0_47 = arith.constant 0 : index
    %60 = vector.load %arg17[%c0_46, %c0_47] : memref<128x128xbf16, #tpu.memory_space<vmem>>, vector<128x128xbf16>
    %cst_48 = arith.constant dense<0.000000e+00> : vector<2x128xf32>
    %61 = tpu.matmul %59, %60, %cst_48 {dimension_numbers = #tpu.dot_dimension_numbers<[1], [0], [0], [1], [0, 0, 1, 1], [], []>} : vector<2x128xbf16>, vector<128x128xbf16>, vector<2x128xf32> -> vector<2x128xf32>
    %c0_49 = arith.constant 0 : index
    %c0_50 = arith.constant 0 : index
    %62 = vector.load %arg18[%c0_49, %c0_50] : memref<128x128xbf16, #tpu.memory_space<vmem>>, vector<128x128xbf16>
    %cst_51 = arith.constant dense<0.000000e+00> : vector<2x128xf32>
    %63 = tpu.matmul %59, %62, %cst_51 {dimension_numbers = #tpu.dot_dimension_numbers<[1], [0], [0], [1], [0, 0, 1, 1], [], []>} : vector<2x128xbf16>, vector<128x128xbf16>, vector<2x128xf32> -> vector<2x128xf32>
    %c0_52 = arith.constant 0 : index
    %c0_53 = arith.constant 0 : index
    %64 = vector.load %arg19[%c0_52, %c0_53] : memref<128x128xbf16, #tpu.memory_space<vmem>>, vector<128x128xbf16>
    %cst_54 = arith.constant dense<0.000000e+00> : vector<2x128xf32>
    %65 = tpu.matmul %59, %64, %cst_54 {dimension_numbers = #tpu.dot_dimension_numbers<[1], [0], [0], [1], [0, 0, 1, 1], [], []>} : vector<2x128xbf16>, vector<128x128xbf16>, vector<2x128xf32> -> vector<2x128xf32>
    %c0_55 = arith.constant 0 : index
    %c0_56 = arith.constant 0 : index
    %66 = vector.load %arg20[%c0_55, %c0_56] : memref<4x2xf32, #tpu.memory_space<vmem>>, vector<4x2xf32>
    %cst_57 = arith.constant dense<0.000000e+00> : vector<4x128xf32>
    %67 = tpu.matmul %66, %61, %cst_57 {dimension_numbers = #tpu.dot_dimension_numbers<[1], [0], [0], [1], [0, 0, 1, 1], [], []>} : vector<4x2xf32>, vector<2x128xf32>, vector<4x128xf32> -> vector<4x128xf32>
    %c0_58 = arith.constant 0 : index
    %c0_59 = arith.constant 0 : index
    %68 = vector.load %arg21[%c0_58, %c0_59] : memref<4x2xf32, #tpu.memory_space<vmem>>, vector<4x2xf32>
    %cst_60 = arith.constant dense<0.000000e+00> : vector<4x128xf32>
    %69 = tpu.matmul %68, %63, %cst_60 {dimension_numbers = #tpu.dot_dimension_numbers<[1], [0], [0], [1], [0, 0, 1, 1], [], []>} : vector<4x2xf32>, vector<2x128xf32>, vector<4x128xf32> -> vector<4x128xf32>
    %70 = arith.addf %67, %69 : vector<4x128xf32>
    %c0_61 = arith.constant 0 : index
    %c0_62 = arith.constant 0 : index
    %71 = vector.load %arg22[%c0_61, %c0_62] : memref<4x2xf32, #tpu.memory_space<vmem>>, vector<4x2xf32>
    %cst_63 = arith.constant dense<0.000000e+00> : vector<4x128xf32>
    %72 = tpu.matmul %71, %65, %cst_63 {dimension_numbers = #tpu.dot_dimension_numbers<[1], [0], [0], [1], [0, 0, 1, 1], [], []>} : vector<4x2xf32>, vector<2x128xf32>, vector<4x128xf32> -> vector<4x128xf32>
    %73 = arith.addf %70, %72 : vector<4x128xf32>
    %c0_64 = arith.constant 0 : index
    %c0_65 = arith.constant 0 : index
    %74 = vector.load %arg23[%c0_64, %c0_65] : memref<1x128xf32, #tpu.memory_space<vmem>>, vector<1x128xf32>
    %75 = vector.broadcast %74 : vector<1x128xf32> to vector<4x128xf32>
    %76 = arith.addf %73, %75 : vector<4x128xf32>
    %cst_66 = arith.constant 0.000000e+00 : f32
    %77 = vector.broadcast %cst_66 : f32 to vector<4x128xf32>
    %78 = arith.maximumf %76, %77 : vector<4x128xf32>
    %79 = arith.truncf %78 : vector<4x128xf32> to vector<4x128xbf16>
    %c0_67 = arith.constant 0 : index
    %c0_68 = arith.constant 0 : index
    %80 = vector.load %arg24[%c0_67, %c0_68] : memref<128x128xbf16, #tpu.memory_space<vmem>>, vector<128x128xbf16>
    %cst_69 = arith.constant dense<0.000000e+00> : vector<4x128xf32>
    %81 = tpu.matmul %79, %80, %cst_69 {dimension_numbers = #tpu.dot_dimension_numbers<[1], [0], [0], [1], [0, 0, 1, 1], [], []>} : vector<4x128xbf16>, vector<128x128xbf16>, vector<4x128xf32> -> vector<4x128xf32>
    %c0_70 = arith.constant 0 : index
    %c0_71 = arith.constant 0 : index
    %82 = vector.load %arg25[%c0_70, %c0_71] : memref<128x128xbf16, #tpu.memory_space<vmem>>, vector<128x128xbf16>
    %cst_72 = arith.constant dense<0.000000e+00> : vector<4x128xf32>
    %83 = tpu.matmul %79, %82, %cst_72 {dimension_numbers = #tpu.dot_dimension_numbers<[1], [0], [0], [1], [0, 0, 1, 1], [], []>} : vector<4x128xbf16>, vector<128x128xbf16>, vector<4x128xf32> -> vector<4x128xf32>
    %c0_73 = arith.constant 0 : index
    %c0_74 = arith.constant 0 : index
    %84 = vector.load %arg26[%c0_73, %c0_74] : memref<128x128xbf16, #tpu.memory_space<vmem>>, vector<128x128xbf16>
    %cst_75 = arith.constant dense<0.000000e+00> : vector<4x128xf32>
    %85 = tpu.matmul %79, %84, %cst_75 {dimension_numbers = #tpu.dot_dimension_numbers<[1], [0], [0], [1], [0, 0, 1, 1], [], []>} : vector<4x128xbf16>, vector<128x128xbf16>, vector<4x128xf32> -> vector<4x128xf32>
    %c0_76 = arith.constant 0 : index
    %c0_77 = arith.constant 0 : index
    %86 = vector.load %arg27[%c0_76, %c0_77] : memref<8x4xf32, #tpu.memory_space<vmem>>, vector<8x4xf32>
    %cst_78 = arith.constant dense<0.000000e+00> : vector<8x128xf32>
    %87 = tpu.matmul %86, %81, %cst_78 {dimension_numbers = #tpu.dot_dimension_numbers<[1], [0], [0], [1], [0, 0, 1, 1], [], []>} : vector<8x4xf32>, vector<4x128xf32>, vector<8x128xf32> -> vector<8x128xf32>
    %c0_79 = arith.constant 0 : index
    %c0_80 = arith.constant 0 : index
    %88 = vector.load %arg28[%c0_79, %c0_80] : memref<8x4xf32, #tpu.memory_space<vmem>>, vector<8x4xf32>
    %cst_81 = arith.constant dense<0.000000e+00> : vector<8x128xf32>
    %89 = tpu.matmul %88, %83, %cst_81 {dimension_numbers = #tpu.dot_dimension_numbers<[1], [0], [0], [1], [0, 0, 1, 1], [], []>} : vector<8x4xf32>, vector<4x128xf32>, vector<8x128xf32> -> vector<8x128xf32>
    %90 = arith.addf %87, %89 : vector<8x128xf32>
    %c0_82 = arith.constant 0 : index
    %c0_83 = arith.constant 0 : index
    %91 = vector.load %arg29[%c0_82, %c0_83] : memref<8x4xf32, #tpu.memory_space<vmem>>, vector<8x4xf32>
    %cst_84 = arith.constant dense<0.000000e+00> : vector<8x128xf32>
    %92 = tpu.matmul %91, %85, %cst_84 {dimension_numbers = #tpu.dot_dimension_numbers<[1], [0], [0], [1], [0, 0, 1, 1], [], []>} : vector<8x4xf32>, vector<4x128xf32>, vector<8x128xf32> -> vector<8x128xf32>
    %93 = arith.addf %90, %92 : vector<8x128xf32>
    %c0_85 = arith.constant 0 : index
    %c0_86 = arith.constant 0 : index
    %94 = vector.load %arg30[%c0_85, %c0_86] : memref<1x128xf32, #tpu.memory_space<vmem>>, vector<1x128xf32>
    %95 = vector.broadcast %94 : vector<1x128xf32> to vector<8x128xf32>
    %96 = arith.addf %93, %95 : vector<8x128xf32>
    %cst_87 = arith.constant 0.000000e+00 : f32
    %97 = vector.broadcast %cst_87 : f32 to vector<8x128xf32>
    %98 = arith.maximumf %96, %97 : vector<8x128xf32>
    %99 = arith.truncf %98 : vector<8x128xf32> to vector<8x128xbf16>
    %c0_88 = arith.constant 0 : index
    %c0_89 = arith.constant 0 : index
    %100 = vector.load %arg31[%c0_88, %c0_89] : memref<128x16xbf16, #tpu.memory_space<vmem>>, vector<128x16xbf16>
    %cst_90 = arith.constant dense<0.000000e+00> : vector<8x16xf32>
    %101 = tpu.matmul %99, %100, %cst_90 {dimension_numbers = #tpu.dot_dimension_numbers<[1], [0], [0], [1], [0, 0, 1, 1], [], []>} : vector<8x128xbf16>, vector<128x16xbf16>, vector<8x16xf32> -> vector<8x16xf32>
    %c0_91 = arith.constant 0 : index
    %c0_92 = arith.constant 0 : index
    %102 = vector.load %arg32[%c0_91, %c0_92] : memref<128x16xbf16, #tpu.memory_space<vmem>>, vector<128x16xbf16>
    %cst_93 = arith.constant dense<0.000000e+00> : vector<8x16xf32>
    %103 = tpu.matmul %99, %102, %cst_93 {dimension_numbers = #tpu.dot_dimension_numbers<[1], [0], [0], [1], [0, 0, 1, 1], [], []>} : vector<8x128xbf16>, vector<128x16xbf16>, vector<8x16xf32> -> vector<8x16xf32>
    %c0_94 = arith.constant 0 : index
    %c0_95 = arith.constant 0 : index
    %104 = vector.load %arg33[%c0_94, %c0_95] : memref<128x16xbf16, #tpu.memory_space<vmem>>, vector<128x16xbf16>
    %cst_96 = arith.constant dense<0.000000e+00> : vector<8x16xf32>
    %105 = tpu.matmul %99, %104, %cst_96 {dimension_numbers = #tpu.dot_dimension_numbers<[1], [0], [0], [1], [0, 0, 1, 1], [], []>} : vector<8x128xbf16>, vector<128x16xbf16>, vector<8x16xf32> -> vector<8x16xf32>
    %c0_97 = arith.constant 0 : index
    %c0_98 = arith.constant 0 : index
    %106 = vector.load %arg34[%c0_97, %c0_98] : memref<16x8xf32, #tpu.memory_space<vmem>>, vector<16x8xf32>
    %cst_99 = arith.constant dense<0.000000e+00> : vector<16x16xf32>
    %107 = tpu.matmul %106, %101, %cst_99 {dimension_numbers = #tpu.dot_dimension_numbers<[1], [0], [0], [1], [0, 0, 1, 1], [], []>} : vector<16x8xf32>, vector<8x16xf32>, vector<16x16xf32> -> vector<16x16xf32>
    %c0_100 = arith.constant 0 : index
    %c0_101 = arith.constant 0 : index
    %108 = vector.load %arg35[%c0_100, %c0_101] : memref<16x8xf32, #tpu.memory_space<vmem>>, vector<16x8xf32>
    %cst_102 = arith.constant dense<0.000000e+00> : vector<16x16xf32>
    %109 = tpu.matmul %108, %103, %cst_102 {dimension_numbers = #tpu.dot_dimension_numbers<[1], [0], [0], [1], [0, 0, 1, 1], [], []>} : vector<16x8xf32>, vector<8x16xf32>, vector<16x16xf32> -> vector<16x16xf32>
    %110 = arith.addf %107, %109 : vector<16x16xf32>
    %c0_103 = arith.constant 0 : index
    %c0_104 = arith.constant 0 : index
    %111 = vector.load %arg36[%c0_103, %c0_104] : memref<16x8xf32, #tpu.memory_space<vmem>>, vector<16x8xf32>
    %cst_105 = arith.constant dense<0.000000e+00> : vector<16x16xf32>
    %112 = tpu.matmul %111, %105, %cst_105 {dimension_numbers = #tpu.dot_dimension_numbers<[1], [0], [0], [1], [0, 0, 1, 1], [], []>} : vector<16x8xf32>, vector<8x16xf32>, vector<16x16xf32> -> vector<16x16xf32>
    %113 = arith.addf %110, %112 : vector<16x16xf32>
    %c0_106 = arith.constant 0 : index
    %c0_107 = arith.constant 0 : index
    %114 = vector.load %arg37[%c0_106, %c0_107] : memref<1x16xf32, #tpu.memory_space<vmem>>, vector<1x16xf32>
    %115 = vector.broadcast %114 : vector<1x16xf32> to vector<16x16xf32>
    %116 = arith.addf %113, %115 : vector<16x16xf32>
    %cst_108 = arith.constant 0.000000e+00 : f32
    %117 = vector.broadcast %cst_108 : f32 to vector<16x16xf32>
    %118 = arith.subf %117, %116 : vector<16x16xf32>
    %119 = math.exp %118 : vector<16x16xf32>
    %cst_109 = arith.constant 1.000000e+00 : f32
    %120 = vector.broadcast %cst_109 : f32 to vector<16x16xf32>
    %121 = arith.addf %120, %119 : vector<16x16xf32>
    %cst_110 = arith.constant 1.000000e+00 : f32
    %122 = vector.broadcast %cst_110 : f32 to vector<16x16xf32>
    %123 = arith.divf %122, %121 : vector<16x16xf32>
    %c0_111 = arith.constant 0 : index
    %c0_112 = arith.constant 0 : index
    %c0_113 = arith.constant 0 : index
    %124 = vector.load %arg38[%c0_111, %c0_112, %c0_113] : memref<1x16x16xf32, #tpu.memory_space<vmem>>, vector<1x16x16xf32>
    %125 = vector.shape_cast %124 : vector<1x16x16xf32> to vector<16x16xf32>
    %126 = vector.shape_cast %123 : vector<16x16xf32> to vector<1x16x16xf32>
    tpu.vector_store %arg38[%c0_111, %c0_112, %c0_113], %126 {strides = array<i32>} : memref<1x16x16xf32, #tpu.memory_space<vmem>>, vector<1x16x16xf32>,
    return
  }
  func.func @transform_0(%arg0: i32) -> (i32, i32, i32) {
    %c0_i32 = arith.constant 0 : i32
    %c0_i32_0 = arith.constant 0 : i32
    %c0_i32_1 = arith.constant 0 : i32
    return %arg0, %c0_i32, %c0_i32_0 : i32, i32, i32
  }
  func.func @transform_1(%arg0: i32) -> (i32, i32) {
    %c0_i32 = arith.constant 0 : i32
    %c0_i32_0 = arith.constant 0 : i32
    %c0_i32_1 = arith.constant 0 : i32
    return %c0_i32, %c0_i32_0 : i32, i32
  }
  func.func @transform_2(%arg0: i32) -> (i32, i32) {
    %c0_i32 = arith.constant 0 : i32
    %c0_i32_0 = arith.constant 0 : i32
    %c0_i32_1 = arith.constant 0 : i32
    return %c0_i32, %c0_i32_0 : i32, i32
  }
  func.func @transform_3(%arg0: i32) -> (i32, i32) {
    %c0_i32 = arith.constant 0 : i32
    %c0_i32_0 = arith.constant 0 : i32
    %c0_i32_1 = arith.constant 0 : i32
    return %c0_i32, %c0_i32_0 : i32, i32
  }
  func.func @transform_4(%arg0: i32) -> (i32, i32) {
    %c0_i32 = arith.constant 0 : i32
    %c0_i32_0 = arith.constant 0 : i32
    %c0_i32_1 = arith.constant 0 : i32
    return %c0_i32, %c0_i32_0 : i32, i32
  }
  func.func @transform_5(%arg0: i32) -> (i32, i32) {
    %c0_i32 = arith.constant 0 : i32
    %c0_i32_0 = arith.constant 0 : i32
    %c0_i32_1 = arith.constant 0 : i32
    return %c0_i32, %c0_i32_0 : i32, i32
  }
  func.func @transform_6(%arg0: i32) -> (i32, i32) {
    %c0_i32 = arith.constant 0 : i32
    %c0_i32_0 = arith.constant 0 : i32
    %c0_i32_1 = arith.constant 0 : i32
    return %c0_i32, %c0_i32_0 : i32, i32
  }
  func.func @transform_7(%arg0: i32) -> (i32, i32) {
    %c0_i32 = arith.constant 0 : i32
    %c0_i32_0 = arith.constant 0 : i32
    %c0_i32_1 = arith.constant 0 : i32
    return %c0_i32, %c0_i32_0 : i32, i32
  }
  func.func @transform_8(%arg0: i32) -> (i32, i32) {
    %c0_i32 = arith.constant 0 : i32
    %c0_i32_0 = arith.constant 0 : i32
    %c0_i32_1 = arith.constant 0 : i32
    return %c0_i32, %c0_i32_0 : i32, i32
  }
  func.func @transform_9(%arg0: i32) -> (i32, i32) {
    %c0_i32 = arith.constant 0 : i32
    %c0_i32_0 = arith.constant 0 : i32
    %c0_i32_1 = arith.constant 0 : i32
    return %c0_i32, %c0_i32_0 : i32, i32
  }
  func.func @transform_10(%arg0: i32) -> (i32, i32) {
    %c0_i32 = arith.constant 0 : i32
    %c0_i32_0 = arith.constant 0 : i32
    %c0_i32_1 = arith.constant 0 : i32
    return %c0_i32, %c0_i32_0 : i32, i32
  }
  func.func @transform_11(%arg0: i32) -> (i32, i32) {
    %c0_i32 = arith.constant 0 : i32
    %c0_i32_0 = arith.constant 0 : i32
    %c0_i32_1 = arith.constant 0 : i32
    return %c0_i32, %c0_i32_0 : i32, i32
  }
  func.func @transform_12(%arg0: i32) -> (i32, i32) {
    %c0_i32 = arith.constant 0 : i32
    %c0_i32_0 = arith.constant 0 : i32
    %c0_i32_1 = arith.constant 0 : i32
    return %c0_i32, %c0_i32_0 : i32, i32
  }
  func.func @transform_13(%arg0: i32) -> (i32, i32) {
    %c0_i32 = arith.constant 0 : i32
    %c0_i32_0 = arith.constant 0 : i32
    %c0_i32_1 = arith.constant 0 : i32
    return %c0_i32, %c0_i32_0 : i32, i32
  }
  func.func @transform_14(%arg0: i32) -> (i32, i32) {
    %c0_i32 = arith.constant 0 : i32
    %c0_i32_0 = arith.constant 0 : i32
    %c0_i32_1 = arith.constant 0 : i32
    return %c0_i32, %c0_i32_0 : i32, i32
  }
  func.func @transform_15(%arg0: i32) -> (i32, i32) {
    %c0_i32 = arith.constant 0 : i32
    %c0_i32_0 = arith.constant 0 : i32
    %c0_i32_1 = arith.constant 0 : i32
    return %c0_i32, %c0_i32_0 : i32, i32
  }
  func.func @transform_16(%arg0: i32) -> (i32, i32) {
    %c0_i32 = arith.constant 0 : i32
    %c0_i32_0 = arith.constant 0 : i32
    %c0_i32_1 = arith.constant 0 : i32
    return %c0_i32, %c0_i32_0 : i32, i32
  }
  func.func @transform_17(%arg0: i32) -> (i32, i32) {
    %c0_i32 = arith.constant 0 : i32
    %c0_i32_0 = arith.constant 0 : i32
    %c0_i32_1 = arith.constant 0 : i32
    return %c0_i32, %c0_i32_0 : i32, i32
  }
  func.func @transform_18(%arg0: i32) -> (i32, i32) {
    %c0_i32 = arith.constant 0 : i32
    %c0_i32_0 = arith.constant 0 : i32
    %c0_i32_1 = arith.constant 0 : i32
    return %c0_i32, %c0_i32_0 : i32, i32
  }
  func.func @transform_19(%arg0: i32) -> (i32, i32) {
    %c0_i32 = arith.constant 0 : i32
    %c0_i32_0 = arith.constant 0 : i32
    %c0_i32_1 = arith.constant 0 : i32
    return %c0_i32, %c0_i32_0 : i32, i32
  }
  func.func @transform_20(%arg0: i32) -> (i32, i32) {
    %c0_i32 = arith.constant 0 : i32
    %c0_i32_0 = arith.constant 0 : i32
    %c0_i32_1 = arith.constant 0 : i32
    return %c0_i32, %c0_i32_0 : i32, i32
  }
  func.func @transform_21(%arg0: i32) -> (i32, i32) {
    %c0_i32 = arith.constant 0 : i32
    %c0_i32_0 = arith.constant 0 : i32
    %c0_i32_1 = arith.constant 0 : i32
    return %c0_i32, %c0_i32_0 : i32, i32
  }
  func.func @transform_22(%arg0: i32) -> (i32, i32) {
    %c0_i32 = arith.constant 0 : i32
    %c0_i32_0 = arith.constant 0 : i32
    %c0_i32_1 = arith.constant 0 : i32
    return %c0_i32, %c0_i32_0 : i32, i32
  }
  func.func @transform_23(%arg0: i32) -> (i32, i32) {
    %c0_i32 = arith.constant 0 : i32
    %c0_i32_0 = arith.constant 0 : i32
    %c0_i32_1 = arith.constant 0 : i32
    return %c0_i32, %c0_i32_0 : i32, i32
  }
  func.func @transform_24(%arg0: i32) -> (i32, i32) {
    %c0_i32 = arith.constant 0 : i32
    %c0_i32_0 = arith.constant 0 : i32
    %c0_i32_1 = arith.constant 0 : i32
    return %c0_i32, %c0_i32_0 : i32, i32
  }
  func.func @transform_25(%arg0: i32) -> (i32, i32) {
    %c0_i32 = arith.constant 0 : i32
    %c0_i32_0 = arith.constant 0 : i32
    %c0_i32_1 = arith.constant 0 : i32
    return %c0_i32, %c0_i32_0 : i32, i32
  }
  func.func @transform_26(%arg0: i32) -> (i32, i32) {
    %c0_i32 = arith.constant 0 : i32
    %c0_i32_0 = arith.constant 0 : i32
    %c0_i32_1 = arith.constant 0 : i32
    return %c0_i32, %c0_i32_0 : i32, i32
  }
  func.func @transform_27(%arg0: i32) -> (i32, i32) {
    %c0_i32 = arith.constant 0 : i32
    %c0_i32_0 = arith.constant 0 : i32
    %c0_i32_1 = arith.constant 0 : i32
    return %c0_i32, %c0_i32_0 : i32, i32
  }
  func.func @transform_28(%arg0: i32) -> (i32, i32) {
    %c0_i32 = arith.constant 0 : i32
    %c0_i32_0 = arith.constant 0 : i32
    %c0_i32_1 = arith.constant 0 : i32
    return %c0_i32, %c0_i32_0 : i32, i32
  }
  func.func @transform_29(%arg0: i32) -> (i32, i32) {
    %c0_i32 = arith.constant 0 : i32
    %c0_i32_0 = arith.constant 0 : i32
    %c0_i32_1 = arith.constant 0 : i32
    return %c0_i32, %c0_i32_0 : i32, i32
  }
  func.func @transform_30(%arg0: i32) -> (i32, i32) {
    %c0_i32 = arith.constant 0 : i32
    %c0_i32_0 = arith.constant 0 : i32
    %c0_i32_1 = arith.constant 0 : i32
    return %c0_i32, %c0_i32_0 : i32, i32
  }
  func.func @transform_31(%arg0: i32) -> (i32, i32) {
    %c0_i32 = arith.constant 0 : i32
    %c0_i32_0 = arith.constant 0 : i32
    %c0_i32_1 = arith.constant 0 : i32
    return %c0_i32, %c0_i32_0 : i32, i32
  }
  func.func @transform_32(%arg0: i32) -> (i32, i32) {
    %c0_i32 = arith.constant 0 : i32
    %c0_i32_0 = arith.constant 0 : i32
    %c0_i32_1 = arith.constant 0 : i32
    return %c0_i32, %c0_i32_0 : i32, i32
  }
  func.func @transform_33(%arg0: i32) -> (i32, i32) {
    %c0_i32 = arith.constant 0 : i32
    %c0_i32_0 = arith.constant 0 : i32
    %c0_i32_1 = arith.constant 0 : i32
    return %c0_i32, %c0_i32_0 : i32, i32
  }
  func.func @transform_34(%arg0: i32) -> (i32, i32) {
    %c0_i32 = arith.constant 0 : i32
    %c0_i32_0 = arith.constant 0 : i32
    %c0_i32_1 = arith.constant 0 : i32
    return %c0_i32, %c0_i32_0 : i32, i32
  }
  func.func @transform_35(%arg0: i32) -> (i32, i32) {
    %c0_i32 = arith.constant 0 : i32
    %c0_i32_0 = arith.constant 0 : i32
    %c0_i32_1 = arith.constant 0 : i32
    return %c0_i32, %c0_i32_0 : i32, i32
  }
  func.func @transform_36(%arg0: i32) -> (i32, i32) {
    %c0_i32 = arith.constant 0 : i32
    %c0_i32_0 = arith.constant 0 : i32
    %c0_i32_1 = arith.constant 0 : i32
    return %c0_i32, %c0_i32_0 : i32, i32
  }
  func.func @transform_37(%arg0: i32) -> (i32, i32, i32) {
    %c0_i32 = arith.constant 0 : i32
    %c0_i32_0 = arith.constant 0 : i32
    %c0_i32_1 = arith.constant 0 : i32
    return %arg0, %c0_i32, %c0_i32_0 : i32, i32, i32
  }
}

</mosaic_0001>

<llo_original>
// kernel: forward.1
$region0: #{forward.1}
  #allocation0 [shape = 'u32[]', space=smem, size = 0x4, offset = 0x4, fixed_abs, tag = 'smem constant byte address 0x4 - core index']
  #allocation1 [shape = 'u32[144,128]{1,0:T(1,128)}', space=vmem, size = 0x12000, scoped, tag = 'internal scratch']
  %s0 = inlined_call_operand.smem [shape: u32[38], index: -1, kind: input, shape index: {}]
  %s1 = sld [smem:[%s0]]
  %s2 = scalar_lea.smem %s0, 1
  %s3 = sld [smem:[%s2]]
  %s4 = scalar_lea.smem %s0, 2
  %s5 = sld [smem:[%s4]]
  %s6 = scalar_lea.smem %s0, 3
  %s7 = sld [smem:[%s6]]
  %s8 = scalar_lea.smem %s0, 4
  %s9 = sld [smem:[%s8]]
  %s10 = scalar_lea.smem %s0, 5
  %s11 = sld [smem:[%s10]]
  %s12 = scalar_lea.smem %s0, 6
  %s13 = sld [smem:[%s12]]
  %s14 = scalar_lea.smem %s0, 7
  %s15 = sld [smem:[%s14]]
  %s16 = scalar_lea.smem %s0, 8
  %s17 = sld [smem:[%s16]]
  %s18 = scalar_lea.smem %s0, 9
  %s19 = sld [smem:[%s18]]
  %s20 = scalar_lea.smem %s0, 10
  %s21 = sld [smem:[%s20]]
  %s22 = scalar_lea.smem %s0, 11
  %s23 = sld [smem:[%s22]]
  %s24 = scalar_lea.smem %s0, 12
  %s25 = sld [smem:[%s24]]
  %s26 = scalar_lea.smem %s0, 13
  %s27 = sld [smem:[%s26]]
  %s28 = scalar_lea.smem %s0, 14
  %s29 = sld [smem:[%s28]]
  %s30 = scalar_lea.smem %s0, 15
  %s31 = sld [smem:[%s30]]
  %s32 = scalar_lea.smem %s0, 16
  %s33 = sld [smem:[%s32]]
  %s34 = scalar_lea.smem %s0, 17
  %s35 = sld [smem:[%s34]]
  %s36 = scalar_lea.smem %s0, 18
  %s37 = sld [smem:[%s36]]
  %s38 = scalar_lea.smem %s0, 19
  %s39 = sld [smem:[%s38]]
  %s40 = scalar_lea.smem %s0, 20
  %s41 = sld [smem:[%s40]]
  %s42 = scalar_lea.smem %s0, 21
  %s43 = sld [smem:[%s42]]
  %s44 = scalar_lea.smem %s0, 22
  %s45 = sld [smem:[%s44]]
  %s46 = scalar_lea.smem %s0, 23
  %s47 = sld [smem:[%s46]]
  %s48 = scalar_lea.smem %s0, 24
  %s49 = sld [smem:[%s48]]
  %s50 = scalar_lea.smem %s0, 25
  %s51 = sld [smem:[%s50]]
  %s52 = scalar_lea.smem %s0, 26
  %s53 = sld [smem:[%s52]]
  %s54 = scalar_lea.smem %s0, 27
  %s55 = sld [smem:[%s54]]
  %s56 = scalar_lea.smem %s0, 28
  %s57 = sld [smem:[%s56]]
  %s58 = scalar_lea.smem %s0, 29
  %s59 = sld [smem:[%s58]]
  %s60 = scalar_lea.smem %s0, 30
  %s61 = sld [smem:[%s60]]
  %s62 = scalar_lea.smem %s0, 31
  %s63 = sld [smem:[%s62]]
  %s64 = scalar_lea.smem %s0, 32
  %s65 = sld [smem:[%s64]]
  %s66 = scalar_lea.smem %s0, 33
  %s67 = sld [smem:[%s66]]
  %s68 = scalar_lea.smem %s0, 34
  %s69 = sld [smem:[%s68]]
  %s70 = scalar_lea.smem %s0, 35
  %s71 = sld [smem:[%s70]]
  %s72 = scalar_lea.smem %s0, 36
  %s73 = sld [smem:[%s72]]
  %s74 = scalar_lea.smem %s0, 37
  %s75 = sld [smem:[%s74]]
  %s76 = sld [smem:[#allocation0]]
  $region225: #{forward.1} parent=0
    _
  %s78 = ssub.s32 1, %s76
  %s79 = scalar_select 0, %s78, %s76
  $region1: #{forward.1} parent=0
    #allocation2 [shape = 'u8[4096]{0}', space=vmem, size = 0x1000, scoped, tag = 'input window, operand 2, single buffered']
    #allocation3 [shape = 's32[2]{0}', space=sflag, size = 0x8, scoped, tag = 'scoped memory for forward.1']
    #allocation4 [shape = 's32[2]{0}', space=sflag, size = 0x8, scoped, tag = 'scoped memory for forward.1']
    #allocation5 [shape = 'u8[4096]{0}', space=vmem, size = 0x1000, scoped, tag = 'input window, operand 3, single buffered']
    #allocation6 [shape = 's32[1]{0}', space=sflag, size = 0x4, scoped, tag = 'scoped memory for forward.1']
    #allocation7 [shape = 'u8[4096]{0}', space=vmem, size = 0x1000, scoped, tag = 'input window, operand 4, single buffered']
    #allocation8 [shape = 'u8[512]{0}', space=vmem, size = 0x400, scoped, tag = 'input window, operand 5, single buffered']
    #allocation9 [shape = 's32[1]{0}', space=sflag, size = 0x4, scoped, tag = 'scoped memory for forward.1']
    #allocation10 [shape = 'u8[2048]{0}', space=vmem, size = 0x800, scoped, tag = 'input window, operand 7, single buffered']
    #allocation11 [shape = 'u8[2048]{0}', space=vmem, size = 0x800, scoped, tag = 'input window, operand 8, single buffered']
    #allocation12 [shape = 's32[1]{0}', space=sflag, size = 0x4, scoped, tag = 'scoped memory for forward.1']
    #allocation13 [shape = 'u8[2048]{0}', space=vmem, size = 0x800, scoped, tag = 'input window, operand 9, single buffered']
    #allocation14 [shape = 'u8[512]{0}', space=vmem, size = 0x400, scoped, tag = 'input window, operand 10, single buffered']
    #allocation15 [shape = 's32[1]{0}', space=sflag, size = 0x4, scoped, tag = 'scoped memory for forward.1']
    #allocation16 [shape = 'u8[1024]{0}', space=vmem, size = 0x400, scoped, tag = 'input window, operand 12, single buffered']
    #allocation17 [shape = 'u8[1024]{0}', space=vmem, size = 0x400, scoped, tag = 'input window, operand 13, single buffered']
    #allocation18 [shape = 's32[1]{0}', space=sflag, size = 0x4, scoped, tag = 'scoped memory for forward.1']
    #allocation19 [shape = 'u8[512]{0}', space=vmem, size = 0x400, scoped, tag = 'input window, operand 15, single buffered']
    #allocation20 [shape = 'u8[16384]{0}', space=vmem, size = 0x4000, scoped, tag = 'output window, operand 0']
    %80 = vsyncpa [#allocation3], 0
    %81 = vsyncpa [#allocation6], 0
    %82 = vsyncpa [#allocation9], 0
    %83 = vsyncpa [#allocation12], 0
    %84 = vsyncpa [#allocation15], 0
    %85 = vsyncpa [#allocation18], 0
    %86 = vsyncpa [#allocation4], 0
    %s87 = scalar_lea.sflag [#allocation4], 1
    %88 = vsyncpa %s87, 0
    loop: start=0, step=1, limit=4
    $region2: #{forward.1} parent=1 // loop_pre_header
      _
    $region3: #{forward.1} parent=1 // loop_header
      %s90 = sphi 0, %s94
      %p91 = scmp.ge.s32.totalorder %s90, 4
      %s100 = sphi 0, %s102
      %s103 = sphi 0, %s100
      %s104 = sphi 0, %s103
      %s120 = sphi 0, %s104
      %s124 = sphi 0, %s124
      %s126 = sphi 0, %s124
      %s127 = sphi 0, %s126
      %s141 = sphi 0, %s127
      %s145 = sphi 0, %s145
      %s147 = sphi 0, %s145
      %s148 = sphi 0, %s147
      %s162 = sphi 0, %s148
      %s166 = sphi 0, %s166
      %s168 = sphi 0, %s166
      %s169 = sphi 0, %s168
      %s183 = sphi 0, %s169
      %s187 = sphi 0, %s187
      %s189 = sphi 0, %s187
      %s190 = sphi 0, %s189
      %s204 = sphi 0, %s190
      %s208 = sphi 0, %s208
      %s210 = sphi 0, %s208
      %s211 = sphi 0, %s210
      %s225 = sphi 0, %s211
      %s229 = sphi 0, %s229
      %s231 = sphi 0, %s229
      %s232 = sphi 0, %s231
      %s246 = sphi 0, %s232
      %s250 = sphi 0, %s250
      %s252 = sphi 0, %s250
      %s253 = sphi 0, %s252
      %s267 = sphi 0, %s253
      %s271 = sphi 0, %s271
      %s273 = sphi 0, %s271
      %s274 = sphi 0, %s273
      %s288 = sphi 0, %s274
      %s292 = sphi 0, %s292
      %s294 = sphi 0, %s292
      %s295 = sphi 0, %s294
      %s309 = sphi 0, %s295
      %s313 = sphi 0, %s313
      %s315 = sphi 0, %s313
      %s316 = sphi 0, %s315
      %s330 = sphi 0, %s316
      %s334 = sphi 0, %s334
      %s336 = sphi 0, %s334
      %s337 = sphi 0, %s336
      %s351 = sphi 0, %s337
      %s355 = sphi 0, %s355
      %s357 = sphi 0, %s355
      %s358 = sphi 0, %s357
      %s372 = sphi 0, %s358
      %s376 = sphi 0, %s376
      %s378 = sphi 0, %s376
      %s379 = sphi 0, %s378
      %s393 = sphi 0, %s379
      %s397 = sphi 0, %s397
      %s399 = sphi 0, %s397
      %s400 = sphi 0, %s399
      %s414 = sphi 0, %s400
      %s418 = sphi 0, %s418
      %s420 = sphi 0, %s418
      %s421 = sphi 0, %s420
      %s435 = sphi 0, %s421
      %s439 = sphi 0, %s439
      %s441 = sphi 0, %s439
      %s442 = sphi 0, %s441
      %s456 = sphi 0, %s442
      %s460 = sphi 0, %s460
      %s462 = sphi 0, %s460
      %s463 = sphi 0, %s462
      %s477 = sphi 0, %s463
      %s481 = sphi 0, %s481
      %s483 = sphi 0, %s481
      %s484 = sphi 0, %s483
      %s498 = sphi 0, %s484
      %s502 = sphi 0, %s502
      %s504 = sphi 0, %s502
      %s505 = sphi 0, %s504
      %s519 = sphi 0, %s505
      %s523 = sphi 0, %s523
      %s525 = sphi 0, %s523
      %s526 = sphi 0, %s525
      %s540 = sphi 0, %s526
      %s544 = sphi 0, %s544
      %s546 = sphi 0, %s544
      %s547 = sphi 0, %s546
      %s561 = sphi 0, %s547
      %s565 = sphi 0, %s565
      %s567 = sphi 0, %s565
      %s568 = sphi 0, %s567
      %s582 = sphi 0, %s568
      %s586 = sphi 0, %s586
      %s588 = sphi 0, %s586
      %s589 = sphi 0, %s588
      %s603 = sphi 0, %s589
      %s607 = sphi 0, %s607
      %s609 = sphi 0, %s607
      %s610 = sphi 0, %s609
      %s624 = sphi 0, %s610
      %s628 = sphi 0, %s628
      %s630 = sphi 0, %s628
      %s631 = sphi 0, %s630
      %s645 = sphi 0, %s631
      %s649 = sphi 0, %s649
      %s651 = sphi 0, %s649
      %s652 = sphi 0, %s651
      %s666 = sphi 0, %s652
      %s670 = sphi 0, %s670
      %s672 = sphi 0, %s670
      %s673 = sphi 0, %s672
      %s687 = sphi 0, %s673
      %s691 = sphi 0, %s691
      %s693 = sphi 0, %s691
      %s694 = sphi 0, %s693
      %s708 = sphi 0, %s694
      %s712 = sphi 0, %s712
      %s714 = sphi 0, %s712
      %s715 = sphi 0, %s714
      %s729 = sphi 0, %s715
      %s733 = sphi 0, %s733
      %s735 = sphi 0, %s733
      %s736 = sphi 0, %s735
      %s750 = sphi 0, %s736
      %s754 = sphi 0, %s754
      %s756 = sphi 0, %s754
      %s757 = sphi 0, %s756
      %s771 = sphi 0, %s757
      %s775 = sphi 0, %s775
      %s777 = sphi 0, %s775
      %s778 = sphi 0, %s777
      %s792 = sphi 0, %s778
      %s796 = sphi 0, %s796
      %s798 = sphi 0, %s796
      %s799 = sphi 0, %s798
      %s813 = sphi 0, %s799
      %s817 = sphi 0, %s817
      %s819 = sphi 0, %s817
      %s820 = sphi 0, %s819
      %s834 = sphi 0, %s820
      %s838 = sphi 0, %s838
      %s840 = sphi 0, %s838
      %s841 = sphi 0, %s840
      %s855 = sphi 0, %s841
      %s859 = sphi 0, %s859
      %s861 = sphi 0, %s859
      %s862 = sphi 0, %s861
      %s876 = sphi 0, %s862
      %s882 = sphi 0, %s884
      %s885 = sphi 0, %s882
      %s886 = sphi 0, %s885
      %s902 = sphi 0, %s886
    $region4: #{forward.1} parent=1 // loop_header_branch
      %93 = sbr.rel (%p91) target = $region8
    $region5: #{forward.1} parent=1 // loop_body
      %s95 = ssub.s32 %s90, 1
      %s96 = ssub.s32 %s90, 2
      %s97 = sadd.s32 %s90, 1
      %s98 = ssub.s32 %s90, %s97
      %p99 = scmp.eq.s32.totalorder %s98, 0
      %s101 = sadd.s32 %s100, 1
      %s102 = scalar_select %p99, %s100, %s101
      %p105 = pneg %p99
      %p106 = scmp.eq.s32.totalorder %s90, 1
      %p107 = por %p105, %p106
      %p108 = scmp.ne.s32.totalorder %s100, %s103
      %p109 = scmp.eq.s32.totalorder %s90, 0
      %p110 = por %p108, %p109
      %p111 = scmp.ne.s32.totalorder %s100, %s103
      %p112 = scmp.eq.s32.totalorder %s95, 1
      %p113 = por %p111, %p112
      %p114 = scmp.ne.s32.totalorder %s103, %s104
      %p115 = scmp.eq.s32.totalorder %s95, 0
      %p116 = por %p114, %p115
      %p117 = scmp.ne.s32.totalorder %s103, %s104
      %p118 = scmp.eq.s32.totalorder %s96, 1
      %p119 = por %p117, %p118
      %p121 = scmp.ne.s32.totalorder %s104, %s120
      %p122 = scmp.eq.s32.totalorder %s96, 0
      %p123 = por %p121, %p122
      %s125 = sadd.s32 %s124, 1
      %p128 = scmp.eq.s32.totalorder %s90, 1
      %p129 = scmp.ne.s32.totalorder %s124, %s126
      %p130 = scmp.eq.s32.totalorder %s90, 0
      %p131 = por %p129, %p130
      %p132 = scmp.ne.s32.totalorder %s124, %s126
      %p133 = scmp.eq.s32.totalorder %s95, 1
      %p134 = por %p132, %p133
      %p135 = scmp.ne.s32.totalorder %s126, %s127
      %p136 = scmp.eq.s32.totalorder %s95, 0
      %p137 = por %p135, %p136
      %p138 = scmp.ne.s32.totalorder %s126, %s127
      %p139 = scmp.eq.s32.totalorder %s96, 1
      %p140 = por %p138, %p139
      %p142 = scmp.ne.s32.totalorder %s127, %s141
      %p143 = scmp.eq.s32.totalorder %s96, 0
      %p144 = por %p142, %p143
      %s146 = sadd.s32 %s145, 1
      %p149 = scmp.eq.s32.totalorder %s90, 1
      %p150 = scmp.ne.s32.totalorder %s145, %s147
      %p151 = scmp.eq.s32.totalorder %s90, 0
      %p152 = por %p150, %p151
      %p153 = scmp.ne.s32.totalorder %s145, %s147
      %p154 = scmp.eq.s32.totalorder %s95, 1
      %p155 = por %p153, %p154
      %p156 = scmp.ne.s32.totalorder %s147, %s148
      %p157 = scmp.eq.s32.totalorder %s95, 0
      %p158 = por %p156, %p157
      %p159 = scmp.ne.s32.totalorder %s147, %s148
      %p160 = scmp.eq.s32.totalorder %s96, 1
      %p161 = por %p159, %p160
      %p163 = scmp.ne.s32.totalorder %s148, %s162
      %p164 = scmp.eq.s32.totalorder %s96, 0
      %p165 = por %p163, %p164
      %s167 = sadd.s32 %s166, 1
      %p170 = scmp.eq.s32.totalorder %s90, 1
      %p171 = scmp.ne.s32.totalorder %s166, %s168
      %p172 = scmp.eq.s32.totalorder %s90, 0
      %p173 = por %p171, %p172
      %p174 = scmp.ne.s32.totalorder %s166, %s168
      %p175 = scmp.eq.s32.totalorder %s95, 1
      %p176 = por %p174, %p175
      %p177 = scmp.ne.s32.totalorder %s168, %s169
      %p178 = scmp.eq.s32.totalorder %s95, 0
      %p179 = por %p177, %p178
      %p180 = scmp.ne.s32.totalorder %s168, %s169
      %p181 = scmp.eq.s32.totalorder %s96, 1
      %p182 = por %p180, %p181
      %p184 = scmp.ne.s32.totalorder %s169, %s183
      %p185 = scmp.eq.s32.totalorder %s96, 0
      %p186 = por %p184, %p185
      %s188 = sadd.s32 %s187, 1
      %p191 = scmp.eq.s32.totalorder %s90, 1
      %p192 = scmp.ne.s32.totalorder %s187, %s189
      %p193 = scmp.eq.s32.totalorder %s90, 0
      %p194 = por %p192, %p193
      %p195 = scmp.ne.s32.totalorder %s187, %s189
      %p196 = scmp.eq.s32.totalorder %s95, 1
      %p197 = por %p195, %p196
      %p198 = scmp.ne.s32.totalorder %s189, %s190
      %p199 = scmp.eq.s32.totalorder %s95, 0
      %p200 = por %p198, %p199
      %p201 = scmp.ne.s32.totalorder %s189, %s190
      %p202 = scmp.eq.s32.totalorder %s96, 1
      %p203 = por %p201, %p202
      %p205 = scmp.ne.s32.totalorder %s190, %s204
      %p206 = scmp.eq.s32.totalorder %s96, 0
      %p207 = por %p205, %p206
      %s209 = sadd.s32 %s208, 1
      %p212 = scmp.eq.s32.totalorder %s90, 1
      %p213 = scmp.ne.s32.totalorder %s208, %s210
      %p214 = scmp.eq.s32.totalorder %s90, 0
      %p215 = por %p213, %p214
      %p216 = scmp.ne.s32.totalorder %s208, %s210
      %p217 = scmp.eq.s32.totalorder %s95, 1
      %p218 = por %p216, %p217
      %p219 = scmp.ne.s32.totalorder %s210, %s211
      %p220 = scmp.eq.s32.totalorder %s95, 0
      %p221 = por %p219, %p220
      %p222 = scmp.ne.s32.totalorder %s210, %s211
      %p223 = scmp.eq.s32.totalorder %s96, 1
      %p224 = por %p222, %p223
      %p226 = scmp.ne.s32.totalorder %s211, %s225
      %p227 = scmp.eq.s32.totalorder %s96, 0
      %p228 = por %p226, %p227
      %s230 = sadd.s32 %s229, 1
      %p233 = scmp.eq.s32.totalorder %s90, 1
      %p234 = scmp.ne.s32.totalorder %s229, %s231
      %p235 = scmp.eq.s32.totalorder %s90, 0
      %p236 = por %p234, %p235
      %p237 = scmp.ne.s32.totalorder %s229, %s231
      %p238 = scmp.eq.s32.totalorder %s95, 1
      %p239 = por %p237, %p238
      %p240 = scmp.ne.s32.totalorder %s231, %s232
      %p241 = scmp.eq.s32.totalorder %s95, 0
      %p242 = por %p240, %p241
      %p243 = scmp.ne.s32.totalorder %s231, %s232
      %p244 = scmp.eq.s32.totalorder %s96, 1
      %p245 = por %p243, %p244
      %p247 = scmp.ne.s32.totalorder %s232, %s246
      %p248 = scmp.eq.s32.totalorder %s96, 0
      %p249 = por %p247, %p248
      %s251 = sadd.s32 %s250, 1
      %p254 = scmp.eq.s32.totalorder %s90, 1
      %p255 = scmp.ne.s32.totalorder %s250, %s252
      %p256 = scmp.eq.s32.totalorder %s90, 0
      %p257 = por %p255, %p256
      %p258 = scmp.ne.s32.totalorder %s250, %s252
      %p259 = scmp.eq.s32.totalorder %s95, 1
      %p260 = por %p258, %p259
      %p261 = scmp.ne.s32.totalorder %s252, %s253
      %p262 = scmp.eq.s32.totalorder %s95, 0
      %p263 = por %p261, %p262
      %p264 = scmp.ne.s32.totalorder %s252, %s253
      %p265 = scmp.eq.s32.totalorder %s96, 1
      %p266 = por %p264, %p265
      %p268 = scmp.ne.s32.totalorder %s253, %s267
      %p269 = scmp.eq.s32.totalorder %s96, 0
      %p270 = por %p268, %p269
      %s272 = sadd.s32 %s271, 1
      %p275 = scmp.eq.s32.totalorder %s90, 1
      %p276 = scmp.ne.s32.totalorder %s271, %s273
      %p277 = scmp.eq.s32.totalorder %s90, 0
      %p278 = por %p276, %p277
      %p279 = scmp.ne.s32.totalorder %s271, %s273
      %p280 = scmp.eq.s32.totalorder %s95, 1
      %p281 = por %p279, %p280
      %p282 = scmp.ne.s32.totalorder %s273, %s274
      %p283 = scmp.eq.s32.totalorder %s95, 0
      %p284 = por %p282, %p283
      %p285 = scmp.ne.s32.totalorder %s273, %s274
      %p286 = scmp.eq.s32.totalorder %s96, 1
      %p287 = por %p285, %p286
      %p289 = scmp.ne.s32.totalorder %s274, %s288
      %p290 = scmp.eq.s32.totalorder %s96, 0
      %p291 = por %p289, %p290
      %s293 = sadd.s32 %s292, 1
      %p296 = scmp.eq.s32.totalorder %s90, 1
      %p297 = scmp.ne.s32.totalorder %s292, %s294
      %p298 = scmp.eq.s32.totalorder %s90, 0
      %p299 = por %p297, %p298
      %p300 = scmp.ne.s32.totalorder %s292, %s294
      %p301 = scmp.eq.s32.totalorder %s95, 1
      %p302 = por %p300, %p301
      %p303 = scmp.ne.s32.totalorder %s294, %s295
      %p304 = scmp.eq.s32.totalorder %s95, 0
      %p305 = por %p303, %p304
      %p306 = scmp.ne.s32.totalorder %s294, %s295
      %p307 = scmp.eq.s32.totalorder %s96, 1
      %p308 = por %p306, %p307
      %p310 = scmp.ne.s32.totalorder %s295, %s309
      %p311 = scmp.eq.s32.totalorder %s96, 0
      %p312 = por %p310, %p311
      %s314 = sadd.s32 %s313, 1
      %p317 = scmp.eq.s32.totalorder %s90, 1
      %p318 = scmp.ne.s32.totalorder %s313, %s315
      %p319 = scmp.eq.s32.totalorder %s90, 0
      %p320 = por %p318, %p319
      %p321 = scmp.ne.s32.totalorder %s313, %s315
      %p322 = scmp.eq.s32.totalorder %s95, 1
      %p323 = por %p321, %p322
      %p324 = scmp.ne.s32.totalorder %s315, %s316
      %p325 = scmp.eq.s32.totalorder %s95, 0
      %p326 = por %p324, %p325
      %p327 = scmp.ne.s32.totalorder %s315, %s316
      %p328 = scmp.eq.s32.totalorder %s96, 1
      %p329 = por %p327, %p328
      %p331 = scmp.ne.s32.totalorder %s316, %s330
      %p332 = scmp.eq.s32.totalorder %s96, 0
      %p333 = por %p331, %p332
      %s335 = sadd.s32 %s334, 1
      %p338 = scmp.eq.s32.totalorder %s90, 1
      %p339 = scmp.ne.s32.totalorder %s334, %s336
      %p340 = scmp.eq.s32.totalorder %s90, 0
      %p341 = por %p339, %p340
      %p342 = scmp.ne.s32.totalorder %s334, %s336
      %p343 = scmp.eq.s32.totalorder %s95, 1
      %p344 = por %p342, %p343
      %p345 = scmp.ne.s32.totalorder %s336, %s337
      %p346 = scmp.eq.s32.totalorder %s95, 0
      %p347 = por %p345, %p346
      %p348 = scmp.ne.s32.totalorder %s336, %s337
      %p349 = scmp.eq.s32.totalorder %s96, 1
      %p350 = por %p348, %p349
      %p352 = scmp.ne.s32.totalorder %s337, %s351
      %p353 = scmp.eq.s32.totalorder %s96, 0
      %p354 = por %p352, %p353
      %s356 = sadd.s32 %s355, 1
      %p359 = scmp.eq.s32.totalorder %s90, 1
      %p360 = scmp.ne.s32.totalorder %s355, %s357
      %p361 = scmp.eq.s32.totalorder %s90, 0
      %p362 = por %p360, %p361
      %p363 = scmp.ne.s32.totalorder %s355, %s357
      %p364 = scmp.eq.s32.totalorder %s95, 1
      %p365 = por %p363, %p364
      %p366 = scmp.ne.s32.totalorder %s357, %s358
      %p367 = scmp.eq.s32.totalorder %s95, 0
      %p368 = por %p366, %p367
      %p369 = scmp.ne.s32.totalorder %s357, %s358
      %p370 = scmp.eq.s32.totalorder %s96, 1
      %p371 = por %p369, %p370
      %p373 = scmp.ne.s32.totalorder %s358, %s372
      %p374 = scmp.eq.s32.totalorder %s96, 0
      %p375 = por %p373, %p374
      %s377 = sadd.s32 %s376, 1
      %p380 = scmp.eq.s32.totalorder %s90, 1
      %p381 = scmp.ne.s32.totalorder %s376, %s378
      %p382 = scmp.eq.s32.totalorder %s90, 0
      %p383 = por %p381, %p382
      %p384 = scmp.ne.s32.totalorder %s376, %s378
      %p385 = scmp.eq.s32.totalorder %s95, 1
      %p386 = por %p384, %p385
      %p387 = scmp.ne.s32.totalorder %s378, %s379
      %p388 = scmp.eq.s32.totalorder %s95, 0
      %p389 = por %p387, %p388
      %p390 = scmp.ne.s32.totalorder %s378, %s379
      %p391 = scmp.eq.s32.totalorder %s96, 1
      %p392 = por %p390, %p391
      %p394 = scmp.ne.s32.totalorder %s379, %s393
      %p395 = scmp.eq.s32.totalorder %s96, 0
      %p396 = por %p394, %p395
      %s398 = sadd.s32 %s397, 1
      %p401 = scmp.eq.s32.totalorder %s90, 1
      %p402 = scmp.ne.s32.totalorder %s397, %s399
      %p403 = scmp.eq.s32.totalorder %s90, 0
      %p404 = por %p402, %p403
      %p405 = scmp.ne.s32.totalorder %s397, %s399
      %p406 = scmp.eq.s32.totalorder %s95, 1
      %p407 = por %p405, %p406
      %p408 = scmp.ne.s32.totalorder %s399, %s400
      %p409 = scmp.eq.s32.totalorder %s95, 0
      %p410 = por %p408, %p409
      %p411 = scmp.ne.s32.totalorder %s399, %s400
      %p412 = scmp.eq.s32.totalorder %s96, 1
      %p413 = por %p411, %p412
      %p415 = scmp.ne.s32.totalorder %s400, %s414
      %p416 = scmp.eq.s32.totalorder %s96, 0
      %p417 = por %p415, %p416
      %s419 = sadd.s32 %s418, 1
      %p422 = scmp.eq.s32.totalorder %s90, 1
      %p423 = scmp.ne.s32.totalorder %s418, %s420
      %p424 = scmp.eq.s32.totalorder %s90, 0
      %p425 = por %p423, %p424
      %p426 = scmp.ne.s32.totalorder %s418, %s420
      %p427 = scmp.eq.s32.totalorder %s95, 1
      %p428 = por %p426, %p427
      %p429 = scmp.ne.s32.totalorder %s420, %s421
      %p430 = scmp.eq.s32.totalorder %s95, 0
      %p431 = por %p429, %p430
      %p432 = scmp.ne.s32.totalorder %s420, %s421
      %p433 = scmp.eq.s32.totalorder %s96, 1
      %p434 = por %p432, %p433
      %p436 = scmp.ne.s32.totalorder %s421, %s435
      %p437 = scmp.eq.s32.totalorder %s96, 0
      %p438 = por %p436, %p437
      %s440 = sadd.s32 %s439, 1
      %p443 = scmp.eq.s32.totalorder %s90, 1
      %p444 = scmp.ne.s32.totalorder %s439, %s441
      %p445 = scmp.eq.s32.totalorder %s90, 0
      %p446 = por %p444, %p445
      %p447 = scmp.ne.s32.totalorder %s439, %s441
      %p448 = scmp.eq.s32.totalorder %s95, 1
      %p449 = por %p447, %p448
      %p450 = scmp.ne.s32.totalorder %s441, %s442
      %p451 = scmp.eq.s32.totalorder %s95, 0
      %p452 = por %p450, %p451
      %p453 = scmp.ne.s32.totalorder %s441, %s442
      %p454 = scmp.eq.s32.totalorder %s96, 1
      %p455 = por %p453, %p454
      %p457 = scmp.ne.s32.totalorder %s442, %s456
      %p458 = scmp.eq.s32.totalorder %s96, 0
      %p459 = por %p457, %p458
      %s461 = sadd.s32 %s460, 1
      %p464 = scmp.eq.s32.totalorder %s90, 1
      %p465 = scmp.ne.s32.totalorder %s460, %s462
      %p466 = scmp.eq.s32.totalorder %s90, 0
      %p467 = por %p465, %p466
      %p468 = scmp.ne.s32.totalorder %s460, %s462
      %p469 = scmp.eq.s32.totalorder %s95, 1
      %p470 = por %p468, %p469
      %p471 = scmp.ne.s32.totalorder %s462, %s463
      %p472 = scmp.eq.s32.totalorder %s95, 0
      %p473 = por %p471, %p472
      %p474 = scmp.ne.s32.totalorder %s462, %s463
      %p475 = scmp.eq.s32.totalorder %s96, 1
      %p476 = por %p474, %p475
      %p478 = scmp.ne.s32.totalorder %s463, %s477
      %p479 = scmp.eq.s32.totalorder %s96, 0
      %p480 = por %p478, %p479
      %s482 = sadd.s32 %s481, 1
      %p485 = scmp.eq.s32.totalorder %s90, 1
      %p486 = scmp.ne.s32.totalorder %s481, %s483
      %p487 = scmp.eq.s32.totalorder %s90, 0
      %p488 = por %p486, %p487
      %p489 = scmp.ne.s32.totalorder %s481, %s483
      %p490 = scmp.eq.s32.totalorder %s95, 1
      %p491 = por %p489, %p490
      %p492 = scmp.ne.s32.totalorder %s483, %s484
      %p493 = scmp.eq.s32.totalorder %s95, 0
      %p494 = por %p492, %p493
      %p495 = scmp.ne.s32.totalorder %s483, %s484
      %p496 = scmp.eq.s32.totalorder %s96, 1
      %p497 = por %p495, %p496
      %p499 = scmp.ne.s32.totalorder %s484, %s498
      %p500 = scmp.eq.s32.totalorder %s96, 0
      %p501 = por %p499, %p500
      %s503 = sadd.s32 %s502, 1
      %p506 = scmp.eq.s32.totalorder %s90, 1
      %p507 = scmp.ne.s32.totalorder %s502, %s504
      %p508 = scmp.eq.s32.totalorder %s90, 0
      %p509 = por %p507, %p508
      %p510 = scmp.ne.s32.totalorder %s502, %s504
      %p511 = scmp.eq.s32.totalorder %s95, 1
      %p512 = por %p510, %p511
      %p513 = scmp.ne.s32.totalorder %s504, %s505
      %p514 = scmp.eq.s32.totalorder %s95, 0
      %p515 = por %p513, %p514
      %p516 = scmp.ne.s32.totalorder %s504, %s505
      %p517 = scmp.eq.s32.totalorder %s96, 1
      %p518 = por %p516, %p517
      %p520 = scmp.ne.s32.totalorder %s505, %s519
      %p521 = scmp.eq.s32.totalorder %s96, 0
      %p522 = por %p520, %p521
      %s524 = sadd.s32 %s523, 1
      %p527 = scmp.eq.s32.totalorder %s90, 1
      %p528 = scmp.ne.s32.totalorder %s523, %s525
      %p529 = scmp.eq.s32.totalorder %s90, 0
      %p530 = por %p528, %p529
      %p531 = scmp.ne.s32.totalorder %s523, %s525
      %p532 = scmp.eq.s32.totalorder %s95, 1
      %p533 = por %p531, %p532
      %p534 = scmp.ne.s32.totalorder %s525, %s526
      %p535 = scmp.eq.s32.totalorder %s95, 0
      %p536 = por %p534, %p535
      %p537 = scmp.ne.s32.totalorder %s525, %s526
      %p538 = scmp.eq.s32.totalorder %s96, 1
      %p539 = por %p537, %p538
      %p541 = scmp.ne.s32.totalorder %s526, %s540
      %p542 = scmp.eq.s32.totalorder %s96, 0
      %p543 = por %p541, %p542
      %s545 = sadd.s32 %s544, 1
      %p548 = scmp.eq.s32.totalorder %s90, 1
      %p549 = scmp.ne.s32.totalorder %s544, %s546
      %p550 = scmp.eq.s32.totalorder %s90, 0
      %p551 = por %p549, %p550
      %p552 = scmp.ne.s32.totalorder %s544, %s546
      %p553 = scmp.eq.s32.totalorder %s95, 1
      %p554 = por %p552, %p553
      %p555 = scmp.ne.s32.totalorder %s546, %s547
      %p556 = scmp.eq.s32.totalorder %s95, 0
      %p557 = por %p555, %p556
      %p558 = scmp.ne.s32.totalorder %s546, %s547
      %p559 = scmp.eq.s32.totalorder %s96, 1
      %p560 = por %p558, %p559
      %p562 = scmp.ne.s32.totalorder %s547, %s561
      %p563 = scmp.eq.s32.totalorder %s96, 0
      %p564 = por %p562, %p563
      %s566 = sadd.s32 %s565, 1
      %p569 = scmp.eq.s32.totalorder %s90, 1
      %p570 = scmp.ne.s32.totalorder %s565, %s567
      %p571 = scmp.eq.s32.totalorder %s90, 0
      %p572 = por %p570, %p571
      %p573 = scmp.ne.s32.totalorder %s565, %s567
      %p574 = scmp.eq.s32.totalorder %s95, 1
      %p575 = por %p573, %p574
      %p576 = scmp.ne.s32.totalorder %s567, %s568
      %p577 = scmp.eq.s32.totalorder %s95, 0
      %p578 = por %p576, %p577
      %p579 = scmp.ne.s32.totalorder %s567, %s568
      %p580 = scmp.eq.s32.totalorder %s96, 1
      %p581 = por %p579, %p580
      %p583 = scmp.ne.s32.totalorder %s568, %s582
      %p584 = scmp.eq.s32.totalorder %s96, 0
      %p585 = por %p583, %p584
      %s587 = sadd.s32 %s586, 1
      %p590 = scmp.eq.s32.totalorder %s90, 1
      %p591 = scmp.ne.s32.totalorder %s586, %s588
      %p592 = scmp.eq.s32.totalorder %s90, 0
      %p593 = por %p591, %p592
      %p594 = scmp.ne.s32.totalorder %s586, %s588
      %p595 = scmp.eq.s32.totalorder %s95, 1
      %p596 = por %p594, %p595
      %p597 = scmp.ne.s32.totalorder %s588, %s589
      %p598 = scmp.eq.s32.totalorder %s95, 0
      %p599 = por %p597, %p598
      %p600 = scmp.ne.s32.totalorder %s588, %s589
      %p601 = scmp.eq.s32.totalorder %s96, 1
      %p602 = por %p600, %p601
      %p604 = scmp.ne.s32.totalorder %s589, %s603
      %p605 = scmp.eq.s32.totalorder %s96, 0
      %p606 = por %p604, %p605
      %s608 = sadd.s32 %s607, 1
      %p611 = scmp.eq.s32.totalorder %s90, 1
      %p612 = scmp.ne.s32.totalorder %s607, %s609
      %p613 = scmp.eq.s32.totalorder %s90, 0
      %p614 = por %p612, %p613
      %p615 = scmp.ne.s32.totalorder %s607, %s609
      %p616 = scmp.eq.s32.totalorder %s95, 1
      %p617 = por %p615, %p616
      %p618 = scmp.ne.s32.totalorder %s609, %s610
      %p619 = scmp.eq.s32.totalorder %s95, 0
      %p620 = por %p618, %p619
      %p621 = scmp.ne.s32.totalorder %s609, %s610
      %p622 = scmp.eq.s32.totalorder %s96, 1
      %p623 = por %p621, %p622
      %p625 = scmp.ne.s32.totalorder %s610, %s624
      %p626 = scmp.eq.s32.totalorder %s96, 0
      %p627 = por %p625, %p626
      %s629 = sadd.s32 %s628, 1
      %p632 = scmp.eq.s32.totalorder %s90, 1
      %p633 = scmp.ne.s32.totalorder %s628, %s630
      %p634 = scmp.eq.s32.totalorder %s90, 0
      %p635 = por %p633, %p634
      %p636 = scmp.ne.s32.totalorder %s628, %s630
      %p637 = scmp.eq.s32.totalorder %s95, 1
      %p638 = por %p636, %p637
      %p639 = scmp.ne.s32.totalorder %s630, %s631
      %p640 = scmp.eq.s32.totalorder %s95, 0
      %p641 = por %p639, %p640
      %p642 = scmp.ne.s32.totalorder %s630, %s631
      %p643 = scmp.eq.s32.totalorder %s96, 1
      %p644 = por %p642, %p643
      %p646 = scmp.ne.s32.totalorder %s631, %s645
      %p647 = scmp.eq.s32.totalorder %s96, 0
      %p648 = por %p646, %p647
      %s650 = sadd.s32 %s649, 1
      %p653 = scmp.eq.s32.totalorder %s90, 1
      %p654 = scmp.ne.s32.totalorder %s649, %s651
      %p655 = scmp.eq.s32.totalorder %s90, 0
      %p656 = por %p654, %p655
      %p657 = scmp.ne.s32.totalorder %s649, %s651
      %p658 = scmp.eq.s32.totalorder %s95, 1
      %p659 = por %p657, %p658
      %p660 = scmp.ne.s32.totalorder %s651, %s652
      %p661 = scmp.eq.s32.totalorder %s95, 0
      %p662 = por %p660, %p661
      %p663 = scmp.ne.s32.totalorder %s651, %s652
      %p664 = scmp.eq.s32.totalorder %s96, 1
      %p665 = por %p663, %p664
      %p667 = scmp.ne.s32.totalorder %s652, %s666
      %p668 = scmp.eq.s32.totalorder %s96, 0
      %p669 = por %p667, %p668
      %s671 = sadd.s32 %s670, 1
      %p674 = scmp.eq.s32.totalorder %s90, 1
      %p675 = scmp.ne.s32.totalorder %s670, %s672
      %p676 = scmp.eq.s32.totalorder %s90, 0
      %p677 = por %p675, %p676
      %p678 = scmp.ne.s32.totalorder %s670, %s672
      %p679 = scmp.eq.s32.totalorder %s95, 1
      %p680 = por %p678, %p679
      %p681 = scmp.ne.s32.totalorder %s672, %s673
      %p682 = scmp.eq.s32.totalorder %s95, 0
      %p683 = por %p681, %p682
      %p684 = scmp.ne.s32.totalorder %s672, %s673
      %p685 = scmp.eq.s32.totalorder %s96, 1
      %p686 = por %p684, %p685
      %p688 = scmp.ne.s32.totalorder %s673, %s687
      %p689 = scmp.eq.s32.totalorder %s96, 0
      %p690 = por %p688, %p689
      %s692 = sadd.s32 %s691, 1
      %p695 = scmp.eq.s32.totalorder %s90, 1
      %p696 = scmp.ne.s32.totalorder %s691, %s693
      %p697 = scmp.eq.s32.totalorder %s90, 0
      %p698 = por %p696, %p697
      %p699 = scmp.ne.s32.totalorder %s691, %s693
      %p700 = scmp.eq.s32.totalorder %s95, 1
      %p701 = por %p699, %p700
      %p702 = scmp.ne.s32.totalorder %s693, %s694
      %p703 = scmp.eq.s32.totalorder %s95, 0
      %p704 = por %p702, %p703
      %p705 = scmp.ne.s32.totalorder %s693, %s694
      %p706 = scmp.eq.s32.totalorder %s96, 1
      %p707 = por %p705, %p706
      %p709 = scmp.ne.s32.totalorder %s694, %s708
      %p710 = scmp.eq.s32.totalorder %s96, 0
      %p711 = por %p709, %p710
      %s713 = sadd.s32 %s712, 1
      %p716 = scmp.eq.s32.totalorder %s90, 1
      %p717 = scmp.ne.s32.totalorder %s712, %s714
      %p718 = scmp.eq.s32.totalorder %s90, 0
      %p719 = por %p717, %p718
      %p720 = scmp.ne.s32.totalorder %s712, %s714
      %p721 = scmp.eq.s32.totalorder %s95, 1
      %p722 = por %p720, %p721
      %p723 = scmp.ne.s32.totalorder %s714, %s715
      %p724 = scmp.eq.s32.totalorder %s95, 0
      %p725 = por %p723, %p724
      %p726 = scmp.ne.s32.totalorder %s714, %s715
      %p727 = scmp.eq.s32.totalorder %s96, 1
      %p728 = por %p726, %p727
      %p730 = scmp.ne.s32.totalorder %s715, %s729
      %p731 = scmp.eq.s32.totalorder %s96, 0
      %p732 = por %p730, %p731
      %s734 = sadd.s32 %s733, 1
      %p737 = scmp.eq.s32.totalorder %s90, 1
      %p738 = scmp.ne.s32.totalorder %s733, %s735
      %p739 = scmp.eq.s32.totalorder %s90, 0
      %p740 = por %p738, %p739
      %p741 = scmp.ne.s32.totalorder %s733, %s735
      %p742 = scmp.eq.s32.totalorder %s95, 1
      %p743 = por %p741, %p742
      %p744 = scmp.ne.s32.totalorder %s735, %s736
      %p745 = scmp.eq.s32.totalorder %s95, 0
      %p746 = por %p744, %p745
      %p747 = scmp.ne.s32.totalorder %s735, %s736
      %p748 = scmp.eq.s32.totalorder %s96, 1
      %p749 = por %p747, %p748
      %p751 = scmp.ne.s32.totalorder %s736, %s750
      %p752 = scmp.eq.s32.totalorder %s96, 0
      %p753 = por %p751, %p752
      %s755 = sadd.s32 %s754, 1
      %p758 = scmp.eq.s32.totalorder %s90, 1
      %p759 = scmp.ne.s32.totalorder %s754, %s756
      %p760 = scmp.eq.s32.totalorder %s90, 0
      %p761 = por %p759, %p760
      %p762 = scmp.ne.s32.totalorder %s754, %s756
      %p763 = scmp.eq.s32.totalorder %s95, 1
      %p764 = por %p762, %p763
      %p765 = scmp.ne.s32.totalorder %s756, %s757
      %p766 = scmp.eq.s32.totalorder %s95, 0
      %p767 = por %p765, %p766
      %p768 = scmp.ne.s32.totalorder %s756, %s757
      %p769 = scmp.eq.s32.totalorder %s96, 1
      %p770 = por %p768, %p769
      %p772 = scmp.ne.s32.totalorder %s757, %s771
      %p773 = scmp.eq.s32.totalorder %s96, 0
      %p774 = por %p772, %p773
      %s776 = sadd.s32 %s775, 1
      %p779 = scmp.eq.s32.totalorder %s90, 1
      %p780 = scmp.ne.s32.totalorder %s775, %s777
      %p781 = scmp.eq.s32.totalorder %s90, 0
      %p782 = por %p780, %p781
      %p783 = scmp.ne.s32.totalorder %s775, %s777
      %p784 = scmp.eq.s32.totalorder %s95, 1
      %p785 = por %p783, %p784
      %p786 = scmp.ne.s32.totalorder %s777, %s778
      %p787 = scmp.eq.s32.totalorder %s95, 0
      %p788 = por %p786, %p787
      %p789 = scmp.ne.s32.totalorder %s777, %s778
      %p790 = scmp.eq.s32.totalorder %s96, 1
      %p791 = por %p789, %p790
      %p793 = scmp.ne.s32.totalorder %s778, %s792
      %p794 = scmp.eq.s32.totalorder %s96, 0
      %p795 = por %p793, %p794
      %s797 = sadd.s32 %s796, 1
      %p800 = scmp.eq.s32.totalorder %s90, 1
      %p801 = scmp.ne.s32.totalorder %s796, %s798
      %p802 = scmp.eq.s32.totalorder %s90, 0
      %p803 = por %p801, %p802
      %p804 = scmp.ne.s32.totalorder %s796, %s798
      %p805 = scmp.eq.s32.totalorder %s95, 1
      %p806 = por %p804, %p805
      %p807 = scmp.ne.s32.totalorder %s798, %s799
      %p808 = scmp.eq.s32.totalorder %s95, 0
      %p809 = por %p807, %p808
      %p810 = scmp.ne.s32.totalorder %s798, %s799
      %p811 = scmp.eq.s32.totalorder %s96, 1
      %p812 = por %p810, %p811
      %p814 = scmp.ne.s32.totalorder %s799, %s813
      %p815 = scmp.eq.s32.totalorder %s96, 0
      %p816 = por %p814, %p815
      %s818 = sadd.s32 %s817, 1
      %p821 = scmp.eq.s32.totalorder %s90, 1
      %p822 = scmp.ne.s32.totalorder %s817, %s819
      %p823 = scmp.eq.s32.totalorder %s90, 0
      %p824 = por %p822, %p823
      %p825 = scmp.ne.s32.totalorder %s817, %s819
      %p826 = scmp.eq.s32.totalorder %s95, 1
      %p827 = por %p825, %p826
      %p828 = scmp.ne.s32.totalorder %s819, %s820
      %p829 = scmp.eq.s32.totalorder %s95, 0
      %p830 = por %p828, %p829
      %p831 = scmp.ne.s32.totalorder %s819, %s820
      %p832 = scmp.eq.s32.totalorder %s96, 1
      %p833 = por %p831, %p832
      %p835 = scmp.ne.s32.totalorder %s820, %s834
      %p836 = scmp.eq.s32.totalorder %s96, 0
      %p837 = por %p835, %p836
      %s839 = sadd.s32 %s838, 1
      %p842 = scmp.eq.s32.totalorder %s90, 1
      %p843 = scmp.ne.s32.totalorder %s838, %s840
      %p844 = scmp.eq.s32.totalorder %s90, 0
      %p845 = por %p843, %p844
      %p846 = scmp.ne.s32.totalorder %s838, %s840
      %p847 = scmp.eq.s32.totalorder %s95, 1
      %p848 = por %p846, %p847
      %p849 = scmp.ne.s32.totalorder %s840, %s841
      %p850 = scmp.eq.s32.totalorder %s95, 0
      %p851 = por %p849, %p850
      %p852 = scmp.ne.s32.totalorder %s840, %s841
      %p853 = scmp.eq.s32.totalorder %s96, 1
      %p854 = por %p852, %p853
      %p856 = scmp.ne.s32.totalorder %s841, %s855
      %p857 = scmp.eq.s32.totalorder %s96, 0
      %p858 = por %p856, %p857
      %s860 = sadd.s32 %s859, 1
      %p863 = scmp.eq.s32.totalorder %s90, 1
      %p864 = scmp.ne.s32.totalorder %s859, %s861
      %p865 = scmp.eq.s32.totalorder %s90, 0
      %p866 = por %p864, %p865
      %p867 = scmp.ne.s32.totalorder %s859, %s861
      %p868 = scmp.eq.s32.totalorder %s95, 1
      %p869 = por %p867, %p868
      %p870 = scmp.ne.s32.totalorder %s861, %s862
      %p871 = scmp.eq.s32.totalorder %s95, 0
      %p872 = por %p870, %p871
      %p873 = scmp.ne.s32.totalorder %s861, %s862
      %p874 = scmp.eq.s32.totalorder %s96, 1
      %p875 = por %p873, %p874
      %p877 = scmp.ne.s32.totalorder %s862, %s876
      %p878 = scmp.eq.s32.totalorder %s96, 0
      %p879 = por %p877, %p878
      %s880 = ssub.s32 %s90, %s97
      %p881 = scmp.eq.s32.totalorder %s880, 0
      %s883 = sadd.s32 %s882, 1
      %s884 = scalar_select %p881, %s882, %s883
      %p887 = pneg %p881
      %p888 = scmp.eq.s32.totalorder %s90, 1
      %p889 = por %p887, %p888
      %p890 = scmp.ne.s32.totalorder %s882, %s885
      %p891 = scmp.eq.s32.totalorder %s90, 0
      %p892 = por %p890, %p891
      %p893 = scmp.ne.s32.totalorder %s882, %s885
      %p894 = scmp.eq.s32.totalorder %s95, 1
      %p895 = por %p893, %p894
      %p896 = scmp.ne.s32.totalorder %s885, %s886
      %p897 = scmp.eq.s32.totalorder %s95, 0
      %p898 = por %p896, %p897
      %p899 = scmp.ne.s32.totalorder %s885, %s886
      %p900 = scmp.eq.s32.totalorder %s96, 1
      %p901 = por %p899, %p900
      %p903 = scmp.ne.s32.totalorder %s886, %s902
      %p904 = scmp.eq.s32.totalorder %s96, 0
      %p905 = por %p903, %p904
      %p906 = scmp.le.s32.totalorder 1, %s90
      %p907 = scmp.lt.s32.totalorder %s90, 3
      %p908 = pnand %p906, %p907
      %p909 = pneg %p908
      // Predicated region
      $region9: #{forward.1} parent=5 // pred_check
        _
      $region10: #{forward.1} parent=5 // pred_check_branch
        %911 = sbr.rel (%p908) target = $region12
      $region11: #{forward.1} parent=5 // pred_region
        %s912 = ssub.s32 %s90, 1
        // Predicated region
        $region13: #{forward.1} parent=11 // pred_check
          %p913 = pneg %p137
        $region14: #{forward.1} parent=11 // pred_check_branch
          %915 = sbr.rel (%p913) target = $region16
        $region15: #{forward.1} parent=11 // pred_region
          _
        $region16: #{forward.1} parent=11 // pred_fallthru
          _
        // Predicated region
        $region17: #{forward.1} parent=11 // pred_check
          %p916 = pneg %p158
        $region18: #{forward.1} parent=11 // pred_check_branch
          %918 = sbr.rel (%p916) target = $region20
        $region19: #{forward.1} parent=11 // pred_region
          %s920 = ssub.s32 128, 128
          %921 = vsyncadd [#allocation3], %s920
          %s923 = sshll.u32 [#allocation2], 4
          %s924 = int_to_ptr.vmem [resolvable:$true] %s923
          %926 = dma.hbm_to_vmem [thread:$0]  %s5, 128, %s924, [#allocation3]
        $region20: #{forward.1} parent=11 // pred_fallthru
          _
        // Predicated region
        $region21: #{forward.1} parent=11 // pred_check
          %p927 = pneg %p179
        $region22: #{forward.1} parent=11 // pred_check_branch
          %929 = sbr.rel (%p927) target = $region24
        $region23: #{forward.1} parent=11 // pred_region
          %s931 = ssub.s32 128, 128
          %932 = vsyncadd [#allocation6], %s931
          %s934 = sshll.u32 [#allocation5], 4
          %s935 = int_to_ptr.vmem [resolvable:$true] %s934
          %937 = dma.hbm_to_vmem [thread:$0]  %s7, 128, %s935, [#allocation6]
        $region24: #{forward.1} parent=11 // pred_fallthru
          _
        // Predicated region
        $region25: #{forward.1} parent=11 // pred_check
          %p938 = pneg %p200
        $region26: #{forward.1} parent=11 // pred_check_branch
          %940 = sbr.rel (%p938) target = $region28
        $region27: #{forward.1} parent=11 // pred_region
          %s942 = ssub.s32 128, 128
          %943 = vsyncadd [#allocation6], %s942
          %s945 = sshll.u32 [#allocation7], 4
          %s946 = int_to_ptr.vmem [resolvable:$true] %s945
          %948 = dma.hbm_to_vmem [thread:$0]  %s9, 128, %s946, [#allocation6]
        $region28: #{forward.1} parent=11 // pred_fallthru
          _
        // Predicated region
        $region29: #{forward.1} parent=11 // pred_check
          %p949 = pneg %p221
        $region30: #{forward.1} parent=11 // pred_check_branch
          %951 = sbr.rel (%p949) target = $region32
        $region31: #{forward.1} parent=11 // pred_region
          %s953 = ssub.s32 16, 16
          %954 = vsyncadd [#allocation9], %s953
          %s956 = sshll.u32 [#allocation8], 4
          %s957 = int_to_ptr.vmem [resolvable:$true] %s956
          %959 = dma.hbm_to_vmem [thread:$0]  %s11, 16, %s957, [#allocation9]
        $region32: #{forward.1} parent=11 // pred_fallthru
          _
        // Predicated region
        $region33: #{forward.1} parent=11 // pred_check
          %p960 = pneg %p242
        $region34: #{forward.1} parent=11 // pred_check_branch
          %962 = sbr.rel (%p960) target = $region36
        $region35: #{forward.1} parent=11 // pred_region
          _
        $region36: #{forward.1} parent=11 // pred_fallthru
          _
        // Predicated region
        $region37: #{forward.1} parent=11 // pred_check
          %p963 = pneg %p263
        $region38: #{forward.1} parent=11 // pred_check_branch
          %965 = sbr.rel (%p963) target = $region40
        $region39: #{forward.1} parent=11 // pred_region
          %s967 = ssub.s32 64, 64
          %968 = vsyncadd [#allocation9], %s967
          %s970 = sshll.u32 [#allocation10], 4
          %s971 = int_to_ptr.vmem [resolvable:$true] %s970
          %973 = dma.hbm_to_vmem [thread:$0]  %s15, 64, %s971, [#allocation9]
        $region40: #{forward.1} parent=11 // pred_fallthru
          _
        // Predicated region
        $region41: #{forward.1} parent=11 // pred_check
          %p974 = pneg %p284
        $region42: #{forward.1} parent=11 // pred_check_branch
          %976 = sbr.rel (%p974) target = $region44
        $region43: #{forward.1} parent=11 // pred_region
          %s978 = ssub.s32 64, 64
          %979 = vsyncadd [#allocation12], %s978
          %s981 = sshll.u32 [#allocation11], 4
          %s982 = int_to_ptr.vmem [resolvable:$true] %s981
          %984 = dma.hbm_to_vmem [thread:$0]  %s17, 64, %s982, [#allocation12]
        $region44: #{forward.1} parent=11 // pred_fallthru
          _
        // Predicated region
        $region45: #{forward.1} parent=11 // pred_check
          %p985 = pneg %p305
        $region46: #{forward.1} parent=11 // pred_check_branch
          %987 = sbr.rel (%p985) target = $region48
        $region47: #{forward.1} parent=11 // pred_region
          %s989 = ssub.s32 64, 64
          %990 = vsyncadd [#allocation12], %s989
          %s992 = sshll.u32 [#allocation13], 4
          %s993 = int_to_ptr.vmem [resolvable:$true] %s992
          %995 = dma.hbm_to_vmem [thread:$0]  %s19, 64, %s993, [#allocation12]
        $region48: #{forward.1} parent=11 // pred_fallthru
          _
        // Predicated region
        $region49: #{forward.1} parent=11 // pred_check
          %p996 = pneg %p326
        $region50: #{forward.1} parent=11 // pred_check_branch
          %998 = sbr.rel (%p996) target = $region52
        $region51: #{forward.1} parent=11 // pred_region
          %s1000 = ssub.s32 16, 16
          %1001 = vsyncadd [#allocation15], %s1000
          %s1003 = sshll.u32 [#allocation14], 4
          %s1004 = int_to_ptr.vmem [resolvable:$true] %s1003
          %1006 = dma.hbm_to_vmem [thread:$0]  %s21, 16, %s1004, [#allocation15]
        $region52: #{forward.1} parent=11 // pred_fallthru
          _
        // Predicated region
        $region53: #{forward.1} parent=11 // pred_check
          %p1007 = pneg %p347
        $region54: #{forward.1} parent=11 // pred_check_branch
          %1009 = sbr.rel (%p1007) target = $region56
        $region55: #{forward.1} parent=11 // pred_region
          _
        $region56: #{forward.1} parent=11 // pred_fallthru
          _
        // Predicated region
        $region57: #{forward.1} parent=11 // pred_check
          %p1010 = pneg %p368
        $region58: #{forward.1} parent=11 // pred_check_branch
          %1012 = sbr.rel (%p1010) target = $region60
        $region59: #{forward.1} parent=11 // pred_region
          %s1014 = ssub.s32 32, 32
          %1015 = vsyncadd [#allocation15], %s1014
          %s1017 = sshll.u32 [#allocation16], 4
          %s1018 = int_to_ptr.vmem [resolvable:$true] %s1017
          %1020 = dma.hbm_to_vmem [thread:$0]  %s25, 32, %s1018, [#allocation15]
        $region60: #{forward.1} parent=11 // pred_fallthru
          _
        // Predicated region
        $region61: #{forward.1} parent=11 // pred_check
          %p1021 = pneg %p389
        $region62: #{forward.1} parent=11 // pred_check_branch
          %1023 = sbr.rel (%p1021) target = $region64
        $region63: #{forward.1} parent=11 // pred_region
          %s1025 = ssub.s32 32, 32
          %1026 = vsyncadd [#allocation18], %s1025
          %s1028 = sshll.u32 [#allocation17], 4
          %s1029 = int_to_ptr.vmem [resolvable:$true] %s1028
          %1031 = dma.hbm_to_vmem [thread:$0]  %s27, 32, %s1029, [#allocation18]
        $region64: #{forward.1} parent=11 // pred_fallthru
          _
        // Predicated region
        $region65: #{forward.1} parent=11 // pred_check
          %p1032 = pneg %p410
        $region66: #{forward.1} parent=11 // pred_check_branch
          %1034 = sbr.rel (%p1032) target = $region68
        $region67: #{forward.1} parent=11 // pred_region
          _
        $region68: #{forward.1} parent=11 // pred_fallthru
          _
        // Predicated region
        $region69: #{forward.1} parent=11 // pred_check
          %p1035 = pneg %p431
        $region70: #{forward.1} parent=11 // pred_check_branch
          %1037 = sbr.rel (%p1035) target = $region72
        $region71: #{forward.1} parent=11 // pred_region
          %s1039 = ssub.s32 16, 16
          %1040 = vsyncadd [#allocation18], %s1039
          %s1042 = sshll.u32 [#allocation19], 4
          %s1043 = int_to_ptr.vmem [resolvable:$true] %s1042
          %1045 = dma.hbm_to_vmem [thread:$0]  %s31, 16, %s1043, [#allocation18]
        $region72: #{forward.1} parent=11 // pred_fallthru
          _
        // Predicated region
        $region73: #{forward.1} parent=11 // pred_check
          %p1046 = pneg %p452
        $region74: #{forward.1} parent=11 // pred_check_branch
          %1048 = sbr.rel (%p1046) target = $region76
        $region75: #{forward.1} parent=11 // pred_region
          _
        $region76: #{forward.1} parent=11 // pred_fallthru
          _
        // Predicated region
        $region77: #{forward.1} parent=11 // pred_check
          %p1049 = pneg %p473
        $region78: #{forward.1} parent=11 // pred_check_branch
          %1051 = sbr.rel (%p1049) target = $region80
        $region79: #{forward.1} parent=11 // pred_region
          _
        $region80: #{forward.1} parent=11 // pred_fallthru
          _
        // Predicated region
        $region81: #{forward.1} parent=11 // pred_check
          %p1052 = pneg %p494
        $region82: #{forward.1} parent=11 // pred_check_branch
          %1054 = sbr.rel (%p1052) target = $region84
        $region83: #{forward.1} parent=11 // pred_region
          _
        $region84: #{forward.1} parent=11 // pred_fallthru
          _
        // Predicated region
        $region85: #{forward.1} parent=11 // pred_check
          %p1055 = pneg %p515
        $region86: #{forward.1} parent=11 // pred_check_branch
          %1057 = sbr.rel (%p1055) target = $region88
        $region87: #{forward.1} parent=11 // pred_region
          _
        $region88: #{forward.1} parent=11 // pred_fallthru
          _
        // Predicated region
        $region89: #{forward.1} parent=11 // pred_check
          %p1058 = pneg %p536
        $region90: #{forward.1} parent=11 // pred_check_branch
          %1060 = sbr.rel (%p1058) target = $region92
        $region91: #{forward.1} parent=11 // pred_region
          _
        $region92: #{forward.1} parent=11 // pred_fallthru
          _
        // Predicated region
        $region93: #{forward.1} parent=11 // pred_check
          %p1061 = pneg %p557
        $region94: #{forward.1} parent=11 // pred_check_branch
          %1063 = sbr.rel (%p1061) target = $region96
        $region95: #{forward.1} parent=11 // pred_region
          _
        $region96: #{forward.1} parent=11 // pred_fallthru
          _
        // Predicated region
        $region97: #{forward.1} parent=11 // pred_check
          %p1064 = pneg %p578
        $region98: #{forward.1} parent=11 // pred_check_branch
          %1066 = sbr.rel (%p1064) target = $region100
        $region99: #{forward.1} parent=11 // pred_region
          _
        $region100: #{forward.1} parent=11 // pred_fallthru
          _
        // Predicated region
        $region101: #{forward.1} parent=11 // pred_check
          %p1067 = pneg %p599
        $region102: #{forward.1} parent=11 // pred_check_branch
          %1069 = sbr.rel (%p1067) target = $region104
        $region103: #{forward.1} parent=11 // pred_region
          _
        $region104: #{forward.1} parent=11 // pred_fallthru
          _
        // Predicated region
        $region105: #{forward.1} parent=11 // pred_check
          %p1070 = pneg %p620
        $region106: #{forward.1} parent=11 // pred_check_branch
          %1072 = sbr.rel (%p1070) target = $region108
        $region107: #{forward.1} parent=11 // pred_region
          _
        $region108: #{forward.1} parent=11 // pred_fallthru
          _
        // Predicated region
        $region109: #{forward.1} parent=11 // pred_check
          %p1073 = pneg %p641
        $region110: #{forward.1} parent=11 // pred_check_branch
          %1075 = sbr.rel (%p1073) target = $region112
        $region111: #{forward.1} parent=11 // pred_region
          _
        $region112: #{forward.1} parent=11 // pred_fallthru
          _
        // Predicated region
        $region113: #{forward.1} parent=11 // pred_check
          %p1076 = pneg %p662
        $region114: #{forward.1} parent=11 // pred_check_branch
          %1078 = sbr.rel (%p1076) target = $region116
        $region115: #{forward.1} parent=11 // pred_region
          _
        $region116: #{forward.1} parent=11 // pred_fallthru
          _
        // Predicated region
        $region117: #{forward.1} parent=11 // pred_check
          %p1079 = pneg %p683
        $region118: #{forward.1} parent=11 // pred_check_branch
          %1081 = sbr.rel (%p1079) target = $region120
        $region119: #{forward.1} parent=11 // pred_region
          _
        $region120: #{forward.1} parent=11 // pred_fallthru
          _
        // Predicated region
        $region121: #{forward.1} parent=11 // pred_check
          %p1082 = pneg %p704
        $region122: #{forward.1} parent=11 // pred_check_branch
          %1084 = sbr.rel (%p1082) target = $region124
        $region123: #{forward.1} parent=11 // pred_region
          _
        $region124: #{forward.1} parent=11 // pred_fallthru
          _
        // Predicated region
        $region125: #{forward.1} parent=11 // pred_check
          %p1085 = pneg %p725
        $region126: #{forward.1} parent=11 // pred_check_branch
          %1087 = sbr.rel (%p1085) target = $region128
        $region127: #{forward.1} parent=11 // pred_region
          _
        $region128: #{forward.1} parent=11 // pred_fallthru
          _
        // Predicated region
        $region129: #{forward.1} parent=11 // pred_check
          %p1088 = pneg %p746
        $region130: #{forward.1} parent=11 // pred_check_branch
          %1090 = sbr.rel (%p1088) target = $region132
        $region131: #{forward.1} parent=11 // pred_region
          _
        $region132: #{forward.1} parent=11 // pred_fallthru
          _
        // Predicated region
        $region133: #{forward.1} parent=11 // pred_check
          %p1091 = pneg %p767
        $region134: #{forward.1} parent=11 // pred_check_branch
          %1093 = sbr.rel (%p1091) target = $region136
        $region135: #{forward.1} parent=11 // pred_region
          _
        $region136: #{forward.1} parent=11 // pred_fallthru
          _
        // Predicated region
        $region137: #{forward.1} parent=11 // pred_check
          %p1094 = pneg %p788
        $region138: #{forward.1} parent=11 // pred_check_branch
          %1096 = sbr.rel (%p1094) target = $region140
        $region139: #{forward.1} parent=11 // pred_region
          _
        $region140: #{forward.1} parent=11 // pred_fallthru
          _
        // Predicated region
        $region141: #{forward.1} parent=11 // pred_check
          %p1097 = pneg %p809
        $region142: #{forward.1} parent=11 // pred_check_branch
          %1099 = sbr.rel (%p1097) target = $region144
        $region143: #{forward.1} parent=11 // pred_region
          _
        $region144: #{forward.1} parent=11 // pred_fallthru
          _
        // Predicated region
        $region145: #{forward.1} parent=11 // pred_check
          %p1100 = pneg %p830
        $region146: #{forward.1} parent=11 // pred_check_branch
          %1102 = sbr.rel (%p1100) target = $region148
        $region147: #{forward.1} parent=11 // pred_region
          _
        $region148: #{forward.1} parent=11 // pred_fallthru
          _
        // Predicated region
        $region149: #{forward.1} parent=11 // pred_check
          %p1103 = pneg %p851
        $region150: #{forward.1} parent=11 // pred_check_branch
          %1105 = sbr.rel (%p1103) target = $region152
        $region151: #{forward.1} parent=11 // pred_region
          _
        $region152: #{forward.1} parent=11 // pred_fallthru
          _
        // Predicated region
        $region153: #{forward.1} parent=11 // pred_check
          %p1106 = pneg %p872
        $region154: #{forward.1} parent=11 // pred_check_branch
          %1108 = sbr.rel (%p1106) target = $region156
        $region155: #{forward.1} parent=11 // pred_region
          _
        $region156: #{forward.1} parent=11 // pred_fallthru
          _
      $region12: #{forward.1} parent=5 // pred_fallthru
        _
      %p1109 = scmp.lt.s32.totalorder %s90, 2
      // Predicated region
      $region157: #{forward.1} parent=5 // pred_check
        %p1110 = pneg %p1109
      $region158: #{forward.1} parent=5 // pred_check_branch
        %1112 = sbr.rel (%p1110) target = $region160
      $region159: #{forward.1} parent=5 // pred_region
        // Predicated region
        $region161: #{forward.1} parent=159 // pred_check
          %p1113 = pneg %p110
        $region162: #{forward.1} parent=159 // pred_check_branch
          %1115 = sbr.rel (%p1113) target = $region164
        $region163: #{forward.1} parent=159 // pred_region
          %p1116 = scmp.lt.s32.totalorder %s90, 1
          %s1117 = scalar_select %p1116, %s90, 1
          %s1118 = smul.addr %s1117, 2
          %s1119 = smul.addr %s1118, 8
          %s1120 = scalar_lea.vmem %s1, %s1119
        $region164: #{forward.1} parent=159 // pred_fallthru
          _
      $region160: #{forward.1} parent=5 // pred_fallthru
        _
      %p1121 = scmp.le.s32.totalorder 1, %s90
      %p1122 = scmp.lt.s32.totalorder %s90, 3
      %p1123 = pnand %p1121, %p1122
      %p1124 = pneg %p1123
      // Predicated region
      $region165: #{forward.1} parent=5 // pred_check
        _
      $region166: #{forward.1} parent=5 // pred_check_branch
        %1126 = sbr.rel (%p1123) target = $region168
      $region167: #{forward.1} parent=5 // pred_region
        %s1127 = ssub.s32 %s90, 1
        // Predicated region
        $region169: #{forward.1} parent=167 // pred_check
          %p1128 = pneg %p158
        $region170: #{forward.1} parent=167 // pred_check_branch
          %1130 = sbr.rel (%p1128) target = $region172
        $region171: #{forward.1} parent=167 // pred_region
          %1131 = dma.done [#allocation3], 128
        $region172: #{forward.1} parent=167 // pred_fallthru
          _
        // Predicated region
        $region173: #{forward.1} parent=167 // pred_check
          %p1132 = pneg %p179
        $region174: #{forward.1} parent=167 // pred_check_branch
          %1134 = sbr.rel (%p1132) target = $region176
        $region175: #{forward.1} parent=167 // pred_region
          %1135 = dma.done [#allocation6], 128
        $region176: #{forward.1} parent=167 // pred_fallthru
          _
        // Predicated region
        $region177: #{forward.1} parent=167 // pred_check
          %p1136 = pneg %p200
        $region178: #{forward.1} parent=167 // pred_check_branch
          %1138 = sbr.rel (%p1136) target = $region180
        $region179: #{forward.1} parent=167 // pred_region
          %1139 = dma.done [#allocation6], 128
        $region180: #{forward.1} parent=167 // pred_fallthru
          _
        // Predicated region
        $region181: #{forward.1} parent=167 // pred_check
          %p1140 = pneg %p221
        $region182: #{forward.1} parent=167 // pred_check_branch
          %1142 = sbr.rel (%p1140) target = $region184
        $region183: #{forward.1} parent=167 // pred_region
          %1143 = dma.done [#allocation9], 16
        $region184: #{forward.1} parent=167 // pred_fallthru
          _
        // Predicated region
        $region185: #{forward.1} parent=167 // pred_check
          %p1144 = pneg %p263
        $region186: #{forward.1} parent=167 // pred_check_branch
          %1146 = sbr.rel (%p1144) target = $region188
        $region187: #{forward.1} parent=167 // pred_region
          %1147 = dma.done [#allocation9], 64
        $region188: #{forward.1} parent=167 // pred_fallthru
          _
        // Predicated region
        $region189: #{forward.1} parent=167 // pred_check
          %p1148 = pneg %p284
        $region190: #{forward.1} parent=167 // pred_check_branch
          %1150 = sbr.rel (%p1148) target = $region192
        $region191: #{forward.1} parent=167 // pred_region
          %1151 = dma.done [#allocation12], 64
        $region192: #{forward.1} parent=167 // pred_fallthru
          _
        // Predicated region
        $region193: #{forward.1} parent=167 // pred_check
          %p1152 = pneg %p305
        $region194: #{forward.1} parent=167 // pred_check_branch
          %1154 = sbr.rel (%p1152) target = $region196
        $region195: #{forward.1} parent=167 // pred_region
          %1155 = dma.done [#allocation12], 64
        $region196: #{forward.1} parent=167 // pred_fallthru
          _
        // Predicated region
        $region197: #{forward.1} parent=167 // pred_check
          %p1156 = pneg %p326
        $region198: #{forward.1} parent=167 // pred_check_branch
          %1158 = sbr.rel (%p1156) target = $region200
        $region199: #{forward.1} parent=167 // pred_region
          %1159 = dma.done [#allocation15], 16
        $region200: #{forward.1} parent=167 // pred_fallthru
          _
        // Predicated region
        $region201: #{forward.1} parent=167 // pred_check
          %p1160 = pneg %p368
        $region202: #{forward.1} parent=167 // pred_check_branch
          %1162 = sbr.rel (%p1160) target = $region204
        $region203: #{forward.1} parent=167 // pred_region
          %1163 = dma.done [#allocation15], 32
        $region204: #{forward.1} parent=167 // pred_fallthru
          _
        // Predicated region
        $region205: #{forward.1} parent=167 // pred_check
          %p1164 = pneg %p389
        $region206: #{forward.1} parent=167 // pred_check_branch
          %1166 = sbr.rel (%p1164) target = $region208
        $region207: #{forward.1} parent=167 // pred_region
          %1167 = dma.done [#allocation18], 32
        $region208: #{forward.1} parent=167 // pred_fallthru
          _
        // Predicated region
        $region209: #{forward.1} parent=167 // pred_check
          %p1168 = pneg %p431
        $region210: #{forward.1} parent=167 // pred_check_branch
          %1170 = sbr.rel (%p1168) target = $region212
        $region211: #{forward.1} parent=167 // pred_region
          %1171 = dma.done [#allocation18], 16
        $region212: #{forward.1} parent=167 // pred_fallthru
          _
        %p1172 = scmp.lt.s32.totalorder %s95, 1
        %s1173 = scalar_select %p1172, %s95, 1
        %s1174 = smul.addr %s1173, 2
        %s1175 = smul.addr %s1174, 8
        %s1176 = scalar_lea.vmem %s1, %s1175
        %p1177 = pneg %p116
        %p1178 = pneg %p113
        %p1179 = pneg %p137
        %p1180 = pneg %p134
        %p1181 = pneg %p158
        %p1182 = pneg %p155
        %p1183 = pneg %p179
        %p1184 = pneg %p176
        %p1185 = pneg %p200
        %p1186 = pneg %p197
        %p1187 = pneg %p221
        %p1188 = pneg %p218
        %p1189 = pneg %p242
        %p1190 = pneg %p239
        %p1191 = pneg %p263
        %p1192 = pneg %p260
        %p1193 = pneg %p284
        %p1194 = pneg %p281
        %p1195 = pneg %p305
        %p1196 = pneg %p302
        %p1197 = pneg %p326
        %p1198 = pneg %p323
        %p1199 = pneg %p347
        %p1200 = pneg %p344
        %p1201 = pneg %p368
        %p1202 = pneg %p365
        %p1203 = pneg %p389
        %p1204 = pneg %p386
        %p1205 = pneg %p410
        %p1206 = pneg %p407
        %p1207 = pneg %p431
        %p1208 = pneg %p428
        %p1209 = pneg %p452
        %p1210 = pneg %p449
        %p1211 = pneg %p473
        %p1212 = pneg %p470
        %p1213 = pneg %p494
        %p1214 = pneg %p491
        %p1215 = pneg %p515
        %p1216 = pneg %p512
        %p1217 = pneg %p536
        %p1218 = pneg %p533
        %p1219 = pneg %p557
        %p1220 = pneg %p554
        %p1221 = pneg %p578
        %p1222 = pneg %p575
        %p1223 = pneg %p599
        %p1224 = pneg %p596
        %p1225 = pneg %p620
        %p1226 = pneg %p617
        %p1227 = pneg %p641
        %p1228 = pneg %p638
        %p1229 = pneg %p662
        %p1230 = pneg %p659
        %p1231 = pneg %p683
        %p1232 = pneg %p680
        %p1233 = pneg %p704
        %p1234 = pneg %p701
        %p1235 = pneg %p725
        %p1236 = pneg %p722
        %p1237 = pneg %p746
        %p1238 = pneg %p743
        %p1239 = pneg %p767
        %p1240 = pneg %p764
        %p1241 = pneg %p788
        %p1242 = pneg %p785
        %p1243 = pneg %p809
        %p1244 = pneg %p806
        %p1245 = pneg %p830
        %p1246 = pneg %p827
        %p1247 = pneg %p851
        %p1248 = pneg %p848
        %p1249 = pneg %p872
        %p1250 = pneg %p869
        %p1251 = pneg %p898
        %p1252 = pneg %p895
        %s1253 = sand.u32 %s885, 1
        %s1254 = scalar_lea.sflag [#allocation4], %s1253
        %s1255 = sand.u32 %s885, 1
        %s1256 = smul.addr %s1255, 16
        %s1257 = scalar_lea.vmem [#allocation20], %s1256
        %p1258 = scmp.lt.s32.totalorder %s95, 1
        %s1259 = scalar_select %p1258, %s95, 1
        %s1260 = smul.addr %s1259, 2
        %s1261 = smul.addr %s1260, 8
        %s1262 = scalar_lea.vmem %s1, %s1261
        %v1264 = vld [vmem:[%s1262] sm:$0xff]
        %v1265 = vld [vmem:[%s1262 + $0x8] sm:$0xff]
        %v1266 = vpack.c.bf16 %v1265, %v1264
        %v1267 = vld [vmem:[%s3] sm:$0xff]
        %v1268 = vld [vmem:[%s3 + $0x8] sm:$0xf]
        %v1269 = vld [vmem:[%s3 + $0xc] sm:$0xff]
        %v1270 = vld [vmem:[%s3 + $0x14] sm:$0xf]
        %v1275 = vunpack.c.l.b16 %v1267
        %v1276 = vunpack.c.h.b16 %v1267
        %v1277 = vunpack.c.l.b16 %v1268
        %v1278 = vunpack.c.l.b16 %v1269
        %v1279 = vunpack.c.h.b16 %v1269
        %v1280 = vunpack.c.l.b16 %v1270
        %v1281 = vpack.c.b16 %v1278, %v1275
        %v1282 = vpack.c.b16 %v1279, %v1276
        %v1283 = vpack.c.b16 %v1280, %v1277
        %vm1287 = vcmask 130048
        %v1289 = vsel %vm1287, %v1266, 0
        %1291 = vmatprep.subr.bf16.mxu0 %v1282
        %1292 = vmatpush1.bf16.msra.mxu0 %v1281
        %1293 = vmatprep.subr.bf16.mxu0 0
        %1294 = vmatpush1.bf16.msra.mxu0 0
        %1295 = vmatprep.subr.bf16.mxu0 0
        %1296 = vmatpush1.bf16.msra.mxu0 0
        %1297 = vmatprep.subr.bf16.mxu0 0
        %1298 = vmatpush1.bf16.msra.mxu0 0
        %1299 = vmatprep.subr.bf16.mxu0 0
        %1300 = vmatpush1.bf16.msra.mxu0 0
        %1301 = vmatprep.subr.bf16.mxu0 0
        %1302 = vmatpush1.bf16.msra.mxu0 0
        %1303 = vmatprep.subr.bf16.mxu0 0
        %1304 = vmatpush1.bf16.msra.mxu0 0
        %1305 = vmatprep.subr.bf16.mxu0 0
        %1306 = vmatpush1.bf16.msra.mxu0 0
        %1307 = vmatprep.subr.bf16.mxu0 0
        %1308 = vmatpush1.bf16.msra.mxu0 0
        %1309 = vmatprep.subr.bf16.mxu0 0
        %1310 = vmatpush1.bf16.msra.mxu0 0
        %1311 = vmatprep.subr.bf16.mxu0 0
        %1312 = vmatpush1.bf16.msra.mxu0 0
        %1313 = vmatprep.subr.bf16.mxu0 0
        %1314 = vmatpush1.bf16.msra.mxu0 0
        %1315 = vmatprep.subr.bf16.mxu0 0
        %1316 = vmatpush1.bf16.msra.mxu0 0
        %1317 = vmatprep.subr.bf16.mxu0 0
        %1318 = vmatpush1.bf16.msra.mxu0 0
        %1319 = vmatprep.subr.bf16.mxu0 0
        %1320 = vmatpush1.bf16.msra.mxu0 0
        %1321 = vmatprep.subr.bf16.mxu0 0
        %1322 = vmatpush1.bf16.msra.mxu0 0
        %1323 = vmatprep.mubr.bf16.mxu0 0
        %1324 = vmatmul.mubr.bf16.gmra.mrb[0].mxu0 %v1289
        %v1325 = vpop.f32.mrb[0].mxu0
        %v1326 = vadd.f32 0.0, %v1325
        %v1327 = vpop.f32.mrb[0].mxu0
        %v1328 = vadd.f32 0.0, %v1327
        %v1329 = vpop.f32.mrb[0].mxu0
        %v1330 = vadd.f32 0.0, %v1329
        %v1331 = vpop.f32.mrb[0].mxu0
        %v1332 = vadd.f32 0.0, %v1331
        %1333 = vdwg.mxu0
        %1334 = vmatprep.subr.bf16.mxu0 0
        %1335 = vmatpush1.bf16.msra.mxu0 %v1283
        %1336 = vmatprep.subr.bf16.mxu0 0
        %1337 = vmatpush1.bf16.msra.mxu0 0
        %1338 = vmatprep.subr.bf16.mxu0 0
        %1339 = vmatpush1.bf16.msra.mxu0 0
        %1340 = vmatprep.subr.bf16.mxu0 0
        %1341 = vmatpush1.bf16.msra.mxu0 0
        %1342 = vmatprep.subr.bf16.mxu0 0
        %1343 = vmatpush1.bf16.msra.mxu0 0
        %1344 = vmatprep.subr.bf16.mxu0 0
        %1345 = vmatpush1.bf16.msra.mxu0 0
        %1346 = vmatprep.subr.bf16.mxu0 0
        %1347 = vmatpush1.bf16.msra.mxu0 0
        %1348 = vmatprep.subr.bf16.mxu0 0
        %1349 = vmatpush1.bf16.msra.mxu0 0
        %1350 = vmatprep.subr.bf16.mxu0 0
        %1351 = vmatpush1.bf16.msra.mxu0 0
        %1352 = vmatprep.subr.bf16.mxu0 0
        %1353 = vmatpush1.bf16.msra.mxu0 0
        %1354 = vmatprep.subr.bf16.mxu0 0
        %1355 = vmatpush1.bf16.msra.mxu0 0
        %1356 = vmatprep.subr.bf16.mxu0 0
        %1357 = vmatpush1.bf16.msra.mxu0 0
        %1358 = vmatprep.subr.bf16.mxu0 0
        %1359 = vmatpush1.bf16.msra.mxu0 0
        %1360 = vmatprep.subr.bf16.mxu0 0
        %1361 = vmatpush1.bf16.msra.mxu0 0
        %1362 = vmatprep.subr.bf16.mxu0 0
        %1363 = vmatpush1.bf16.msra.mxu0 0
        %1364 = vmatprep.subr.bf16.mxu0 0
        %1365 = vmatpush1.bf16.msra.mxu0 0
        %1366 = vmatprep.mubr.bf16.mxu0 0
        %1367 = vmatmul.mubr.bf16.gmra.mrb[0].mxu0 %v1289
        %v1368 = vpop.f32.mrb[0].mxu0
        %v1369 = vadd.f32 0.0, %v1368
        %v1370 = vpop.f32.mrb[0].mxu0
        %v1371 = vpop.f32.mrb[0].mxu0
        %v1372 = vadd.f32 0.0, %v1371
        %v1373 = vpop.f32.mrb[0].mxu0
        %1374 = vdwg.mxu0
        %v1375 = vld [vmem:[#allocation2] sm:$0xff]
        %v1376 = vld [vmem:[#allocation5] sm:$0xff]
        %v1378 = vsel %vm1287, %v1376, 0
        %1380 = vmatprep.subr.mxu0 0.0
        %1381 = vmatpush1.msra.mxu0 %v1328
        %1382 = vmatprep.subr.mxu0 0.0
        %1383 = vmatpush1.msra.mxu0 %v1332
        %1384 = vmatprep.subr.mxu0 0.0
        %1385 = vmatpush1.msra.mxu0 0.0
        %1386 = vmatprep.subr.mxu0 0.0
        %1387 = vmatpush1.msra.mxu0 0.0
        %1388 = vmatprep.subr.mxu0 0.0
        %1389 = vmatpush1.msra.mxu0 0.0
        %1390 = vmatprep.subr.mxu0 0.0
        %1391 = vmatpush1.msra.mxu0 0.0
        %1392 = vmatprep.subr.mxu0 0.0
        %1393 = vmatpush1.msra.mxu0 0.0
        %1394 = vmatprep.subr.mxu0 0.0
        %1395 = vmatpush1.msra.mxu0 0.0
        %1396 = vmatprep.subr.mxu0 0.0
        %1397 = vmatpush1.msra.mxu0 0.0
        %1398 = vmatprep.subr.mxu0 0.0
        %1399 = vmatpush1.msra.mxu0 0.0
        %1400 = vmatprep.subr.mxu0 0.0
        %1401 = vmatpush1.msra.mxu0 0.0
        %1402 = vmatprep.subr.mxu0 0.0
        %1403 = vmatpush1.msra.mxu0 0.0
        %1404 = vmatprep.subr.mxu0 0.0
        %1405 = vmatpush1.msra.mxu0 0.0
        %1406 = vmatprep.subr.mxu0 0.0
        %1407 = vmatpush1.msra.mxu0 0.0
        %1408 = vmatprep.subr.mxu0 0.0
        %1409 = vmatpush1.msra.mxu0 0.0
        %1410 = vmatprep.subr.mxu0 0.0
        %1411 = vmatpush1.msra.mxu0 0.0
        %1412 = vmatprep.subr.mxu0 0.0
        %1413 = vmatpush1.msra.mxu0 0.0
        %1414 = vmatprep.subr.mxu0 0.0
        %1415 = vmatpush1.msra.mxu0 0.0
        %1416 = vmatprep.subr.mxu0 0.0
        %1417 = vmatpush1.msra.mxu0 0.0
        %1418 = vmatprep.subr.mxu0 0.0
        %1419 = vmatpush1.msra.mxu0 0.0
        %1420 = vmatprep.subr.mxu0 0.0
        %1421 = vmatpush1.msra.mxu0 0.0
        %1422 = vmatprep.subr.mxu0 0.0
        %1423 = vmatpush1.msra.mxu0 0.0
        %1424 = vmatprep.subr.mxu0 0.0
        %1425 = vmatpush1.msra.mxu0 0.0
        %1426 = vmatprep.subr.mxu0 0.0
        %1427 = vmatpush1.msra.mxu0 0.0
        %1428 = vmatprep.subr.mxu0 0.0
        %1429 = vmatpush1.msra.mxu0 0.0
        %1430 = vmatprep.subr.mxu0 0.0
        %1431 = vmatpush1.msra.mxu0 0.0
        %1432 = vmatprep.subr.mxu0 0.0
        %1433 = vmatpush1.msra.mxu0 0.0
        %1434 = vmatprep.subr.mxu0 0.0
        %1435 = vmatpush1.msra.mxu0 0.0
        %1436 = vmatprep.subr.mxu0 0.0
        %1437 = vmatpush1.msra.mxu0 0.0
        %1438 = vmatprep.subr.mxu0 0.0
        %1439 = vmatpush1.msra.mxu0 0.0
        %1440 = vmatprep.subr.mxu0 0.0
        %1441 = vmatpush1.msra.mxu0 0.0
        %1442 = vmatprep.subr.mxu0 0.0
        %1443 = vmatpush1.msra.mxu0 0.0
        %1444 = vmatprep.mubr.f32.mxu0 0.0
        %1445 = vmatmul.mubr.f32.gmra.mrb[0].mxu0 %v1378
        %v1446 = vpop.f32.mrb[0].mxu0
        %v1447 = vadd.f32 0.0, %v1446
        %v1448 = vpop.f32.mrb[0].mxu0
        %1449 = vdwg.mxu0
        %v1451 = vsel %vm1287, %v1375, 0
        %1453 = vmatprep.subr.mxu0 0.0
        %1454 = vmatpush1.msra.mxu0 %v1326
        %1455 = vmatprep.subr.mxu0 0.0
        %1456 = vmatpush1.msra.mxu0 %v1330
        %1457 = vmatprep.subr.mxu0 0.0
        %1458 = vmatpush1.msra.mxu0 0.0
        %1459 = vmatprep.subr.mxu0 0.0
        %1460 = vmatpush1.msra.mxu0 0.0
        %1461 = vmatprep.subr.mxu0 0.0
        %1462 = vmatpush1.msra.mxu0 0.0
        %1463 = vmatprep.subr.mxu0 0.0
        %1464 = vmatpush1.msra.mxu0 0.0
        %1465 = vmatprep.subr.mxu0 0.0
        %1466 = vmatpush1.msra.mxu0 0.0
        %1467 = vmatprep.subr.mxu0 0.0
        %1468 = vmatpush1.msra.mxu0 0.0
        %1469 = vmatprep.subr.mxu0 0.0
        %1470 = vmatpush1.msra.mxu0 0.0
        %1471 = vmatprep.subr.mxu0 0.0
        %1472 = vmatpush1.msra.mxu0 0.0
        %1473 = vmatprep.subr.mxu0 0.0
        %1474 = vmatpush1.msra.mxu0 0.0
        %1475 = vmatprep.subr.mxu0 0.0
        %1476 = vmatpush1.msra.mxu0 0.0
        %1477 = vmatprep.subr.mxu0 0.0
        %1478 = vmatpush1.msra.mxu0 0.0
        %1479 = vmatprep.subr.mxu0 0.0
        %1480 = vmatpush1.msra.mxu0 0.0
        %1481 = vmatprep.subr.mxu0 0.0
        %1482 = vmatpush1.msra.mxu0 0.0
        %1483 = vmatprep.subr.mxu0 0.0
        %1484 = vmatpush1.msra.mxu0 0.0
        %1485 = vmatprep.subr.mxu0 0.0
        %1486 = vmatpush1.msra.mxu0 0.0
        %1487 = vmatprep.subr.mxu0 0.0
        %1488 = vmatpush1.msra.mxu0 0.0
        %1489 = vmatprep.subr.mxu0 0.0
        %1490 = vmatpush1.msra.mxu0 0.0
        %1491 = vmatprep.subr.mxu0 0.0
        %1492 = vmatpush1.msra.mxu0 0.0
        %1493 = vmatprep.subr.mxu0 0.0
        %1494 = vmatpush1.msra.mxu0 0.0
        %1495 = vmatprep.subr.mxu0 0.0
        %1496 = vmatpush1.msra.mxu0 0.0
        %1497 = vmatprep.subr.mxu0 0.0
        %1498 = vmatpush1.msra.mxu0 0.0
        %1499 = vmatprep.subr.mxu0 0.0
        %1500 = vmatpush1.msra.mxu0 0.0
        %1501 = vmatprep.subr.mxu0 0.0
        %1502 = vmatpush1.msra.mxu0 0.0
        %1503 = vmatprep.subr.mxu0 0.0
        %1504 = vmatpush1.msra.mxu0 0.0
        %1505 = vmatprep.subr.mxu0 0.0
        %1506 = vmatpush1.msra.mxu0 0.0
        %1507 = vmatprep.subr.mxu0 0.0
        %1508 = vmatpush1.msra.mxu0 0.0
        %1509 = vmatprep.subr.mxu0 0.0
        %1510 = vmatpush1.msra.mxu0 0.0
        %1511 = vmatprep.subr.mxu0 0.0
        %1512 = vmatpush1.msra.mxu0 0.0
        %1513 = vmatprep.subr.mxu0 0.0
        %1514 = vmatpush1.msra.mxu0 0.0
        %1515 = vmatprep.subr.mxu0 0.0
        %1516 = vmatpush1.msra.mxu0 0.0
        %1517 = vmatprep.mubr.f32.mxu0 0.0
        %1518 = vmatmul.mubr.f32.gmra.mrb[0].mxu0 %v1451
        %v1519 = vpop.f32.mrb[0].mxu0
        %v1520 = vadd.f32 %v1447, %v1519
        %v1521 = vpop.f32.mrb[0].mxu0
        %1522 = vdwg.mxu0
        %v1523 = vld [vmem:[#allocation7] sm:$0xff]
        %v1525 = vsel %vm1287, %v1523, 0
        %1527 = vmatprep.subr.mxu0 0.0
        %1528 = vmatpush1.msra.mxu0 %v1369
        %1529 = vmatprep.subr.mxu0 0.0
        %1530 = vmatpush1.msra.mxu0 %v1372
        %1531 = vmatprep.subr.mxu0 0.0
        %1532 = vmatpush1.msra.mxu0 0.0
        %1533 = vmatprep.subr.mxu0 0.0
        %1534 = vmatpush1.msra.mxu0 0.0
        %1535 = vmatprep.subr.mxu0 0.0
        %1536 = vmatpush1.msra.mxu0 0.0
        %1537 = vmatprep.subr.mxu0 0.0
        %1538 = vmatpush1.msra.mxu0 0.0
        %1539 = vmatprep.subr.mxu0 0.0
        %1540 = vmatpush1.msra.mxu0 0.0
        %1541 = vmatprep.subr.mxu0 0.0
        %1542 = vmatpush1.msra.mxu0 0.0
        %1543 = vmatprep.subr.mxu0 0.0
        %1544 = vmatpush1.msra.mxu0 0.0
        %1545 = vmatprep.subr.mxu0 0.0
        %1546 = vmatpush1.msra.mxu0 0.0
        %1547 = vmatprep.subr.mxu0 0.0
        %1548 = vmatpush1.msra.mxu0 0.0
        %1549 = vmatprep.subr.mxu0 0.0
        %1550 = vmatpush1.msra.mxu0 0.0
        %1551 = vmatprep.subr.mxu0 0.0
        %1552 = vmatpush1.msra.mxu0 0.0
        %1553 = vmatprep.subr.mxu0 0.0
        %1554 = vmatpush1.msra.mxu0 0.0
        %1555 = vmatprep.subr.mxu0 0.0
        %1556 = vmatpush1.msra.mxu0 0.0
        %1557 = vmatprep.subr.mxu0 0.0
        %1558 = vmatpush1.msra.mxu0 0.0
        %1559 = vmatprep.subr.mxu0 0.0
        %1560 = vmatpush1.msra.mxu0 0.0
        %1561 = vmatprep.subr.mxu0 0.0
        %1562 = vmatpush1.msra.mxu0 0.0
        %1563 = vmatprep.subr.mxu0 0.0
        %1564 = vmatpush1.msra.mxu0 0.0
        %1565 = vmatprep.subr.mxu0 0.0
        %1566 = vmatpush1.msra.mxu0 0.0
        %1567 = vmatprep.subr.mxu0 0.0
        %1568 = vmatpush1.msra.mxu0 0.0
        %1569 = vmatprep.subr.mxu0 0.0
        %1570 = vmatpush1.msra.mxu0 0.0
        %1571 = vmatprep.subr.mxu0 0.0
        %1572 = vmatpush1.msra.mxu0 0.0
        %1573 = vmatprep.subr.mxu0 0.0
        %1574 = vmatpush1.msra.mxu0 0.0
        %1575 = vmatprep.subr.mxu0 0.0
        %1576 = vmatpush1.msra.mxu0 0.0
        %1577 = vmatprep.subr.mxu0 0.0
        %1578 = vmatpush1.msra.mxu0 0.0
        %1579 = vmatprep.subr.mxu0 0.0
        %1580 = vmatpush1.msra.mxu0 0.0
        %1581 = vmatprep.subr.mxu0 0.0
        %1582 = vmatpush1.msra.mxu0 0.0
        %1583 = vmatprep.subr.mxu0 0.0
        %1584 = vmatpush1.msra.mxu0 0.0
        %1585 = vmatprep.subr.mxu0 0.0
        %1586 = vmatpush1.msra.mxu0 0.0
        %1587 = vmatprep.subr.mxu0 0.0
        %1588 = vmatpush1.msra.mxu0 0.0
        %1589 = vmatprep.subr.mxu0 0.0
        %1590 = vmatpush1.msra.mxu0 0.0
        %1591 = vmatprep.mubr.f32.mxu0 0.0
        %1592 = vmatmul.mubr.f32.gmra.mrb[0].mxu0 %v1525
        %v1593 = vpop.f32.mrb[0].mxu0
        %v1594 = vadd.f32 0.0, %v1593
        %v1595 = vpop.f32.mrb[0].mxu0
        %1596 = vdwg.mxu0
        %v1597 = vadd.f32 %v1520, %v1594
        %v1598 = vld [vmem:[#allocation8] sm:$0x1]
        %v1600 = vlaneseq
        %v1601 = vshrl.u32 %v1600, 7
        %v1602 = vsub.s32 0, %v1601
        %v1603 = vrot.slane %v1598, %v1602
        %v1605 = vadd.f32 %v1597, %v1603
        %v1606 = vmax.f32 %v1605, 0.0
        %v1607 = vpack.c.bf16 %v1606, %v1606
        %v1608 = vld [vmem:[%s13] sm:$0xff]
        %v1609 = vld [vmem:[%s13 + $0x8] sm:$0xf]
        %v1610 = vld [vmem:[%s13 + $0xc] sm:$0xff]
        %v1611 = vld [vmem:[%s13 + $0x14] sm:$0xf]
        %v1612 = vld [vmem:[%s13 + $0x18] sm:$0xff]
        %v1613 = vld [vmem:[%s13 + $0x20] sm:$0xf]
        %v1614 = vld [vmem:[%s13 + $0x24] sm:$0xff]
        %v1615 = vld [vmem:[%s13 + $0x2c] sm:$0xf]
        %v1616 = vld [vmem:[%s13 + $0x30] sm:$0xff]
        %v1617 = vld [vmem:[%s13 + $0x38] sm:$0xf]
        %v1618 = vld [vmem:[%s13 + $0x3c] sm:$0xff]
        %v1619 = vld [vmem:[%s13 + $0x44] sm:$0xf]
        %v1620 = vld [vmem:[%s13 + $0x48] sm:$0xff]
        %v1621 = vld [vmem:[%s13 + $0x50] sm:$0xf]
        %v1622 = vld [vmem:[%s13 + $0x54] sm:$0xff]
        %v1623 = vld [vmem:[%s13 + $0x5c] sm:$0xf]
        %v1624 = vld [vmem:[%s13 + $0x60] sm:$0xff]
        %v1625 = vld [vmem:[%s13 + $0x68] sm:$0xf]
        %v1626 = vld [vmem:[%s13 + $0x6c] sm:$0xff]
        %v1627 = vld [vmem:[%s13 + $0x74] sm:$0xf]
        %v1628 = vld [vmem:[%s13 + $0x78] sm:$0xff]
        %v1629 = vld [vmem:[%s13 + $0x80] sm:$0xf]
        %v1630 = vld [vmem:[%s13 + $0x84] sm:$0xff]
        %v1631 = vld [vmem:[%s13 + $0x8c] sm:$0xf]
        %v1632 = vld [vmem:[%s13 + $0x90] sm:$0xff]
        %v1633 = vld [vmem:[%s13 + $0x98] sm:$0xf]
        %v1634 = vld [vmem:[%s13 + $0x9c] sm:$0xff]
        %v1635 = vld [vmem:[%s13 + $0xa4] sm:$0xf]
        %v1636 = vld [vmem:[%s13 + $0xa8] sm:$0xff]
        %v1637 = vld [vmem:[%s13 + $0xb0] sm:$0xf]
        %v1638 = vld [vmem:[%s13 + $0xb4] sm:$0xff]
        %v1639 = vld [vmem:[%s13 + $0xbc] sm:$0xf]
        %v1672 = vunpack.c.l.b16 %v1608
        %v1673 = vunpack.c.h.b16 %v1608
        %v1674 = vunpack.c.l.b16 %v1609
        %v1675 = vunpack.c.l.b16 %v1610
        %v1676 = vunpack.c.h.b16 %v1610
        %v1677 = vunpack.c.l.b16 %v1611
        %v1678 = vunpack.c.l.b16 %v1612
        %v1679 = vunpack.c.h.b16 %v1612
        %v1680 = vunpack.c.l.b16 %v1613
        %v1681 = vunpack.c.l.b16 %v1614
        %v1682 = vunpack.c.h.b16 %v1614
        %v1683 = vunpack.c.l.b16 %v1615
        %v1684 = vunpack.c.l.b16 %v1616
        %v1685 = vunpack.c.h.b16 %v1616
        %v1686 = vunpack.c.l.b16 %v1617
        %v1687 = vunpack.c.l.b16 %v1618
        %v1688 = vunpack.c.h.b16 %v1618
        %v1689 = vunpack.c.l.b16 %v1619
        %v1690 = vunpack.c.l.b16 %v1620
        %v1691 = vunpack.c.h.b16 %v1620
        %v1692 = vunpack.c.l.b16 %v1621
        %v1693 = vunpack.c.l.b16 %v1622
        %v1694 = vunpack.c.h.b16 %v1622
        %v1695 = vunpack.c.l.b16 %v1623
        %v1696 = vunpack.c.l.b16 %v1624
        %v1697 = vunpack.c.h.b16 %v1624
        %v1698 = vunpack.c.l.b16 %v1625
        %v1699 = vunpack.c.l.b16 %v1626
        %v1700 = vunpack.c.h.b16 %v1626
        %v1701 = vunpack.c.l.b16 %v1627
        %v1702 = vunpack.c.l.b16 %v1628
        %v1703 = vunpack.c.h.b16 %v1628
        %v1704 = vunpack.c.l.b16 %v1629
        %v1705 = vunpack.c.l.b16 %v1630
        %v1706 = vunpack.c.h.b16 %v1630
        %v1707 = vunpack.c.l.b16 %v1631
        %v1708 = vunpack.c.l.b16 %v1632
        %v1709 = vunpack.c.h.b16 %v1632
        %v1710 = vunpack.c.l.b16 %v1633
        %v1711 = vunpack.c.l.b16 %v1634
        %v1712 = vunpack.c.h.b16 %v1634
        %v1713 = vunpack.c.l.b16 %v1635
        %v1714 = vunpack.c.l.b16 %v1636
        %v1715 = vunpack.c.h.b16 %v1636
        %v1716 = vunpack.c.l.b16 %v1637
        %v1717 = vunpack.c.l.b16 %v1638
        %v1718 = vunpack.c.h.b16 %v1638
        %v1719 = vunpack.c.l.b16 %v1639
        %v1720 = vpack.c.b16 %v1675, %v1672
        %v1721 = vpack.c.b16 %v1676, %v1673
        %v1722 = vpack.c.b16 %v1677, %v1674
        %v1723 = vpack.c.b16 %v1681, %v1678
        %v1724 = vpack.c.b16 %v1682, %v1679
        %v1725 = vpack.c.b16 %v1683, %v1680
        %v1726 = vpack.c.b16 %v1687, %v1684
        %v1727 = vpack.c.b16 %v1688, %v1685
        %v1728 = vpack.c.b16 %v1689, %v1686
        %v1729 = vpack.c.b16 %v1693, %v1690
        %v1730 = vpack.c.b16 %v1694, %v1691
        %v1731 = vpack.c.b16 %v1695, %v1692
        %v1732 = vpack.c.b16 %v1699, %v1696
        %v1733 = vpack.c.b16 %v1700, %v1697
        %v1734 = vpack.c.b16 %v1701, %v1698
        %v1735 = vpack.c.b16 %v1705, %v1702
        %v1736 = vpack.c.b16 %v1706, %v1703
        %v1737 = vpack.c.b16 %v1707, %v1704
        %v1738 = vpack.c.b16 %v1711, %v1708
        %v1739 = vpack.c.b16 %v1712, %v1709
        %v1740 = vpack.c.b16 %v1713, %v1710
        %v1741 = vpack.c.b16 %v1717, %v1714
        %v1742 = vpack.c.b16 %v1718, %v1715
        %v1743 = vpack.c.b16 %v1719, %v1716
        %1768 = vmatprep.subr.bf16.mxu0 %v1721
        %1769 = vmatpush1.bf16.msra.mxu0 %v1720
        %1770 = vmatprep.subr.bf16.mxu0 %v1724
        %1771 = vmatpush1.bf16.msra.mxu0 %v1723
        %1772 = vmatprep.subr.bf16.mxu0 %v1727
        %1773 = vmatpush1.bf16.msra.mxu0 %v1726
        %1774 = vmatprep.subr.bf16.mxu0 %v1730
        %1775 = vmatpush1.bf16.msra.mxu0 %v1729
        %1776 = vmatprep.subr.bf16.mxu0 %v1733
        %1777 = vmatpush1.bf16.msra.mxu0 %v1732
        %1778 = vmatprep.subr.bf16.mxu0 %v1736
        %1779 = vmatpush1.bf16.msra.mxu0 %v1735
        %1780 = vmatprep.subr.bf16.mxu0 %v1739
        %1781 = vmatpush1.bf16.msra.mxu0 %v1738
        %1782 = vmatprep.subr.bf16.mxu0 %v1742
        %1783 = vmatpush1.bf16.msra.mxu0 %v1741
        %1784 = vmatprep.subr.bf16.mxu0 0
        %1785 = vmatpush1.bf16.msra.mxu0 0
        %1786 = vmatprep.subr.bf16.mxu0 0
        %1787 = vmatpush1.bf16.msra.mxu0 0
        %1788 = vmatprep.subr.bf16.mxu0 0
        %1789 = vmatpush1.bf16.msra.mxu0 0
        %1790 = vmatprep.subr.bf16.mxu0 0
        %1791 = vmatpush1.bf16.msra.mxu0 0
        %1792 = vmatprep.subr.bf16.mxu0 0
        %1793 = vmatpush1.bf16.msra.mxu0 0
        %1794 = vmatprep.subr.bf16.mxu0 0
        %1795 = vmatpush1.bf16.msra.mxu0 0
        %1796 = vmatprep.subr.bf16.mxu0 0
        %1797 = vmatpush1.bf16.msra.mxu0 0
        %1798 = vmatprep.subr.bf16.mxu0 0
        %1799 = vmatpush1.bf16.msra.mxu0 0
        %1800 = vmatprep.mubr.bf16.mxu0 0
        %1801 = vmatmul.mubr.bf16.gmra.mrb[0].mxu0 %v1607
        %v1802 = vpop.f32.mrb[0].mxu0
        %v1803 = vadd.f32 0.0, %v1802
        %v1804 = vpop.f32.mrb[0].mxu0
        %v1805 = vadd.f32 0.0, %v1804
        %v1806 = vpop.f32.mrb[0].mxu0
        %v1807 = vpop.f32.mrb[0].mxu0
        %1808 = vdwg.mxu0
        %1809 = vmatprep.subr.bf16.mxu0 0
        %1810 = vmatpush1.bf16.msra.mxu0 %v1722
        %1811 = vmatprep.subr.bf16.mxu0 0
        %1812 = vmatpush1.bf16.msra.mxu0 %v1725
        %1813 = vmatprep.subr.bf16.mxu0 0
        %1814 = vmatpush1.bf16.msra.mxu0 %v1728
        %1815 = vmatprep.subr.bf16.mxu0 0
        %1816 = vmatpush1.bf16.msra.mxu0 %v1731
        %1817 = vmatprep.subr.bf16.mxu0 0
        %1818 = vmatpush1.bf16.msra.mxu0 %v1734
        %1819 = vmatprep.subr.bf16.mxu0 0
        %1820 = vmatpush1.bf16.msra.mxu0 %v1737
        %1821 = vmatprep.subr.bf16.mxu0 0
        %1822 = vmatpush1.bf16.msra.mxu0 %v1740
        %1823 = vmatprep.subr.bf16.mxu0 0
        %1824 = vmatpush1.bf16.msra.mxu0 %v1743
        %1825 = vmatprep.subr.bf16.mxu0 0
        %1826 = vmatpush1.bf16.msra.mxu0 0
        %1827 = vmatprep.subr.bf16.mxu0 0
        %1828 = vmatpush1.bf16.msra.mxu0 0
        %1829 = vmatprep.subr.bf16.mxu0 0
        %1830 = vmatpush1.bf16.msra.mxu0 0
        %1831 = vmatprep.subr.bf16.mxu0 0
        %1832 = vmatpush1.bf16.msra.mxu0 0
        %1833 = vmatprep.subr.bf16.mxu0 0
        %1834 = vmatpush1.bf16.msra.mxu0 0
        %1835 = vmatprep.subr.bf16.mxu0 0
        %1836 = vmatpush1.bf16.msra.mxu0 0
        %1837 = vmatprep.subr.bf16.mxu0 0
        %1838 = vmatpush1.bf16.msra.mxu0 0
        %1839 = vmatprep.subr.bf16.mxu0 0
        %1840 = vmatpush1.bf16.msra.mxu0 0
        %1841 = vmatprep.mubr.bf16.mxu0 0
        %1842 = vmatmul.mubr.bf16.gmra.mrb[0].mxu0 %v1607
        %v1843 = vpop.f32.mrb[0].mxu0
        %v1844 = vadd.f32 0.0, %v1843
        %v1845 = vpop.f32.mrb[0].mxu0
        %v1846 = vpop.f32.mrb[0].mxu0
        %v1847 = vpop.f32.mrb[0].mxu0
        %1848 = vdwg.mxu0
        %v1849 = vld [vmem:[#allocation10] sm:$0xf]
        %v1850 = vld [vmem:[#allocation11] sm:$0xf]
        %vm1851 = vcmask 64512
        %v1853 = vsel %vm1851, %v1850, 0
        %1855 = vmatprep.subr.mxu0 0.0
        %1856 = vmatpush1.msra.mxu0 %v1805
        %1857 = vmatprep.subr.mxu0 0.0
        %1858 = vmatpush1.msra.mxu0 0.0
        %1859 = vmatprep.subr.mxu0 0.0
        %1860 = vmatpush1.msra.mxu0 0.0
        %1861 = vmatprep.subr.mxu0 0.0
        %1862 = vmatpush1.msra.mxu0 0.0
        %1863 = vmatprep.subr.mxu0 0.0
        %1864 = vmatpush1.msra.mxu0 0.0
        %1865 = vmatprep.subr.mxu0 0.0
        %1866 = vmatpush1.msra.mxu0 0.0
        %1867 = vmatprep.subr.mxu0 0.0
        %1868 = vmatpush1.msra.mxu0 0.0
        %1869 = vmatprep.subr.mxu0 0.0
        %1870 = vmatpush1.msra.mxu0 0.0
        %1871 = vmatprep.subr.mxu0 0.0
        %1872 = vmatpush1.msra.mxu0 0.0
        %1873 = vmatprep.subr.mxu0 0.0
        %1874 = vmatpush1.msra.mxu0 0.0
        %1875 = vmatprep.subr.mxu0 0.0
        %1876 = vmatpush1.msra.mxu0 0.0
        %1877 = vmatprep.subr.mxu0 0.0
        %1878 = vmatpush1.msra.mxu0 0.0
        %1879 = vmatprep.subr.mxu0 0.0
        %1880 = vmatpush1.msra.mxu0 0.0
        %1881 = vmatprep.subr.mxu0 0.0
        %1882 = vmatpush1.msra.mxu0 0.0
        %1883 = vmatprep.subr.mxu0 0.0
        %1884 = vmatpush1.msra.mxu0 0.0
        %1885 = vmatprep.subr.mxu0 0.0
        %1886 = vmatpush1.msra.mxu0 0.0
        %1887 = vmatprep.subr.mxu0 0.0
        %1888 = vmatpush1.msra.mxu0 0.0
        %1889 = vmatprep.subr.mxu0 0.0
        %1890 = vmatpush1.msra.mxu0 0.0
        %1891 = vmatprep.subr.mxu0 0.0
        %1892 = vmatpush1.msra.mxu0 0.0
        %1893 = vmatprep.subr.mxu0 0.0
        %1894 = vmatpush1.msra.mxu0 0.0
        %1895 = vmatprep.subr.mxu0 0.0
        %1896 = vmatpush1.msra.mxu0 0.0
        %1897 = vmatprep.subr.mxu0 0.0
        %1898 = vmatpush1.msra.mxu0 0.0
        %1899 = vmatprep.subr.mxu0 0.0
        %1900 = vmatpush1.msra.mxu0 0.0
        %1901 = vmatprep.subr.mxu0 0.0
        %1902 = vmatpush1.msra.mxu0 0.0
        %1903 = vmatprep.subr.mxu0 0.0
        %1904 = vmatpush1.msra.mxu0 0.0
        %1905 = vmatprep.subr.mxu0 0.0
        %1906 = vmatpush1.msra.mxu0 0.0
        %1907 = vmatprep.subr.mxu0 0.0
        %1908 = vmatpush1.msra.mxu0 0.0
        %1909 = vmatprep.subr.mxu0 0.0
        %1910 = vmatpush1.msra.mxu0 0.0
        %1911 = vmatprep.subr.mxu0 0.0
        %1912 = vmatpush1.msra.mxu0 0.0
        %1913 = vmatprep.subr.mxu0 0.0
        %1914 = vmatpush1.msra.mxu0 0.0
        %1915 = vmatprep.subr.mxu0 0.0
        %1916 = vmatpush1.msra.mxu0 0.0
        %1917 = vmatprep.subr.mxu0 0.0
        %1918 = vmatpush1.msra.mxu0 0.0
        %1919 = vmatprep.mubr.f32.mxu0 0.0
        %1920 = vmatmul.mubr.f32.gmra.mrb[0].mxu0 %v1853
        %v1921 = vpop.f32.mrb[0].mxu0
        %v1922 = vadd.f32 0.0, %v1921
        %v1923 = vpop.f32.mrb[0].mxu0
        %1924 = vdwg.mxu0
        %v1926 = vsel %vm1851, %v1849, 0
        %1928 = vmatprep.subr.mxu0 0.0
        %1929 = vmatpush1.msra.mxu0 %v1803
        %1930 = vmatprep.subr.mxu0 0.0
        %1931 = vmatpush1.msra.mxu0 0.0
        %1932 = vmatprep.subr.mxu0 0.0
        %1933 = vmatpush1.msra.mxu0 0.0
        %1934 = vmatprep.subr.mxu0 0.0
        %1935 = vmatpush1.msra.mxu0 0.0
        %1936 = vmatprep.subr.mxu0 0.0
        %1937 = vmatpush1.msra.mxu0 0.0
        %1938 = vmatprep.subr.mxu0 0.0
        %1939 = vmatpush1.msra.mxu0 0.0
        %1940 = vmatprep.subr.mxu0 0.0
        %1941 = vmatpush1.msra.mxu0 0.0
        %1942 = vmatprep.subr.mxu0 0.0
        %1943 = vmatpush1.msra.mxu0 0.0
        %1944 = vmatprep.subr.mxu0 0.0
        %1945 = vmatpush1.msra.mxu0 0.0
        %1946 = vmatprep.subr.mxu0 0.0
        %1947 = vmatpush1.msra.mxu0 0.0
        %1948 = vmatprep.subr.mxu0 0.0
        %1949 = vmatpush1.msra.mxu0 0.0
        %1950 = vmatprep.subr.mxu0 0.0
        %1951 = vmatpush1.msra.mxu0 0.0
        %1952 = vmatprep.subr.mxu0 0.0
        %1953 = vmatpush1.msra.mxu0 0.0
        %1954 = vmatprep.subr.mxu0 0.0
        %1955 = vmatpush1.msra.mxu0 0.0
        %1956 = vmatprep.subr.mxu0 0.0
        %1957 = vmatpush1.msra.mxu0 0.0
        %1958 = vmatprep.subr.mxu0 0.0
        %1959 = vmatpush1.msra.mxu0 0.0
        %1960 = vmatprep.subr.mxu0 0.0
        %1961 = vmatpush1.msra.mxu0 0.0
        %1962 = vmatprep.subr.mxu0 0.0
        %1963 = vmatpush1.msra.mxu0 0.0
        %1964 = vmatprep.subr.mxu0 0.0
        %1965 = vmatpush1.msra.mxu0 0.0
        %1966 = vmatprep.subr.mxu0 0.0
        %1967 = vmatpush1.msra.mxu0 0.0
        %1968 = vmatprep.subr.mxu0 0.0
        %1969 = vmatpush1.msra.mxu0 0.0
        %1970 = vmatprep.subr.mxu0 0.0
        %1971 = vmatpush1.msra.mxu0 0.0
        %1972 = vmatprep.subr.mxu0 0.0
        %1973 = vmatpush1.msra.mxu0 0.0
        %1974 = vmatprep.subr.mxu0 0.0
        %1975 = vmatpush1.msra.mxu0 0.0
        %1976 = vmatprep.subr.mxu0 0.0
        %1977 = vmatpush1.msra.mxu0 0.0
        %1978 = vmatprep.subr.mxu0 0.0
        %1979 = vmatpush1.msra.mxu0 0.0
        %1980 = vmatprep.subr.mxu0 0.0
        %1981 = vmatpush1.msra.mxu0 0.0
        %1982 = vmatprep.subr.mxu0 0.0
        %1983 = vmatpush1.msra.mxu0 0.0
        %1984 = vmatprep.subr.mxu0 0.0
        %1985 = vmatpush1.msra.mxu0 0.0
        %1986 = vmatprep.subr.mxu0 0.0
        %1987 = vmatpush1.msra.mxu0 0.0
        %1988 = vmatprep.subr.mxu0 0.0
        %1989 = vmatpush1.msra.mxu0 0.0
        %1990 = vmatprep.subr.mxu0 0.0
        %1991 = vmatpush1.msra.mxu0 0.0
        %1992 = vmatprep.mubr.f32.mxu0 0.0
        %1993 = vmatmul.mubr.f32.gmra.mrb[0].mxu0 %v1926
        %v1994 = vpop.f32.mrb[0].mxu0
        %v1995 = vadd.f32 %v1922, %v1994
        %v1996 = vpop.f32.mrb[0].mxu0
        %1997 = vdwg.mxu0
        %v1998 = vld [vmem:[#allocation13] sm:$0xf]
        %v2000 = vsel %vm1851, %v1998, 0
        %2002 = vmatprep.subr.mxu0 0.0
        %2003 = vmatpush1.msra.mxu0 %v1844
        %2004 = vmatprep.subr.mxu0 0.0
        %2005 = vmatpush1.msra.mxu0 0.0
        %2006 = vmatprep.subr.mxu0 0.0
        %2007 = vmatpush1.msra.mxu0 0.0
        %2008 = vmatprep.subr.mxu0 0.0
        %2009 = vmatpush1.msra.mxu0 0.0
        %2010 = vmatprep.subr.mxu0 0.0
        %2011 = vmatpush1.msra.mxu0 0.0
        %2012 = vmatprep.subr.mxu0 0.0
        %2013 = vmatpush1.msra.mxu0 0.0
        %2014 = vmatprep.subr.mxu0 0.0
        %2015 = vmatpush1.msra.mxu0 0.0
        %2016 = vmatprep.subr.mxu0 0.0
        %2017 = vmatpush1.msra.mxu0 0.0
        %2018 = vmatprep.subr.mxu0 0.0
        %2019 = vmatpush1.msra.mxu0 0.0
        %2020 = vmatprep.subr.mxu0 0.0
        %2021 = vmatpush1.msra.mxu0 0.0
        %2022 = vmatprep.subr.mxu0 0.0
        %2023 = vmatpush1.msra.mxu0 0.0
        %2024 = vmatprep.subr.mxu0 0.0
        %2025 = vmatpush1.msra.mxu0 0.0
        %2026 = vmatprep.subr.mxu0 0.0
        %2027 = vmatpush1.msra.mxu0 0.0
        %2028 = vmatprep.subr.mxu0 0.0
        %2029 = vmatpush1.msra.mxu0 0.0
        %2030 = vmatprep.subr.mxu0 0.0
        %2031 = vmatpush1.msra.mxu0 0.0
        %2032 = vmatprep.subr.mxu0 0.0
        %2033 = vmatpush1.msra.mxu0 0.0
        %2034 = vmatprep.subr.mxu0 0.0
        %2035 = vmatpush1.msra.mxu0 0.0
        %2036 = vmatprep.subr.mxu0 0.0
        %2037 = vmatpush1.msra.mxu0 0.0
        %2038 = vmatprep.subr.mxu0 0.0
        %2039 = vmatpush1.msra.mxu0 0.0
        %2040 = vmatprep.subr.mxu0 0.0
        %2041 = vmatpush1.msra.mxu0 0.0
        %2042 = vmatprep.subr.mxu0 0.0
        %2043 = vmatpush1.msra.mxu0 0.0
        %2044 = vmatprep.subr.mxu0 0.0
        %2045 = vmatpush1.msra.mxu0 0.0
        %2046 = vmatprep.subr.mxu0 0.0
        %2047 = vmatpush1.msra.mxu0 0.0
        %2048 = vmatprep.subr.mxu0 0.0
        %2049 = vmatpush1.msra.mxu0 0.0
        %2050 = vmatprep.subr.mxu0 0.0
        %2051 = vmatpush1.msra.mxu0 0.0
        %2052 = vmatprep.subr.mxu0 0.0
        %2053 = vmatpush1.msra.mxu0 0.0
        %2054 = vmatprep.subr.mxu0 0.0
        %2055 = vmatpush1.msra.mxu0 0.0
        %2056 = vmatprep.subr.mxu0 0.0
        %2057 = vmatpush1.msra.mxu0 0.0
        %2058 = vmatprep.subr.mxu0 0.0
        %2059 = vmatpush1.msra.mxu0 0.0
        %2060 = vmatprep.subr.mxu0 0.0
        %2061 = vmatpush1.msra.mxu0 0.0
        %2062 = vmatprep.subr.mxu0 0.0
        %2063 = vmatpush1.msra.mxu0 0.0
        %2064 = vmatprep.subr.mxu0 0.0
        %2065 = vmatpush1.msra.mxu0 0.0
        %2066 = vmatprep.mubr.f32.mxu0 0.0
        %2067 = vmatmul.mubr.f32.gmra.mrb[0].mxu0 %v2000
        %v2068 = vpop.f32.mrb[0].mxu0
        %v2069 = vadd.f32 0.0, %v2068
        %v2070 = vpop.f32.mrb[0].mxu0
        %2071 = vdwg.mxu0
        %v2072 = vadd.f32 %v1995, %v2069
        %v2073 = vld [vmem:[#allocation14] sm:$0x1]
        %v2075 = vlaneseq
        %v2076 = vshrl.u32 %v2075, 7
        %v2077 = vsub.s32 0, %v2076
        %v2078 = vrot.slane %v2073, %v2077
        %v2080 = vadd.f32 %v2072, %v2078
        %v2081 = vmax.f32 %v2080, 0.0
        %v2082 = vpack.c.bf16 %v2081, %v2081
        %v2083 = vld [vmem:[%s23] sm:$0xff]
        %v2084 = vld [vmem:[%s23 + $0x8] sm:$0xf]
        %v2085 = vld [vmem:[%s23 + $0xc] sm:$0xff]
        %v2086 = vld [vmem:[%s23 + $0x14] sm:$0xf]
        %v2087 = vld [vmem:[%s23 + $0x18] sm:$0xff]
        %v2088 = vld [vmem:[%s23 + $0x20] sm:$0xf]
        %v2089 = vld [vmem:[%s23 + $0x24] sm:$0xff]
        %v2090 = vld [vmem:[%s23 + $0x2c] sm:$0xf]
        %v2091 = vld [vmem:[%s23 + $0x30] sm:$0xff]
        %v2092 = vld [vmem:[%s23 + $0x38] sm:$0xf]
        %v2093 = vld [vmem:[%s23 + $0x3c] sm:$0xff]
        %v2094 = vld [vmem:[%s23 + $0x44] sm:$0xf]
        %v2095 = vld [vmem:[%s23 + $0x48] sm:$0xff]
        %v2096 = vld [vmem:[%s23 + $0x50] sm:$0xf]
        %v2097 = vld [vmem:[%s23 + $0x54] sm:$0xff]
        %v2098 = vld [vmem:[%s23 + $0x5c] sm:$0xf]
        %v2099 = vld [vmem:[%s23 + $0x60] sm:$0xff]
        %v2100 = vld [vmem:[%s23 + $0x68] sm:$0xf]
        %v2101 = vld [vmem:[%s23 + $0x6c] sm:$0xff]
        %v2102 = vld [vmem:[%s23 + $0x74] sm:$0xf]
        %v2103 = vld [vmem:[%s23 + $0x78] sm:$0xff]
        %v2104 = vld [vmem:[%s23 + $0x80] sm:$0xf]
        %v2105 = vld [vmem:[%s23 + $0x84] sm:$0xff]
        %v2106 = vld [vmem:[%s23 + $0x8c] sm:$0xf]
        %v2107 = vld [vmem:[%s23 + $0x90] sm:$0xff]
        %v2108 = vld [vmem:[%s23 + $0x98] sm:$0xf]
        %v2109 = vld [vmem:[%s23 + $0x9c] sm:$0xff]
        %v2110 = vld [vmem:[%s23 + $0xa4] sm:$0xf]
        %v2111 = vld [vmem:[%s23 + $0xa8] sm:$0xff]
        %v2112 = vld [vmem:[%s23 + $0xb0] sm:$0xf]
        %v2113 = vld [vmem:[%s23 + $0xb4] sm:$0xff]
        %v2114 = vld [vmem:[%s23 + $0xbc] sm:$0xf]
        %v2147 = vunpack.c.l.b16 %v2083
        %v2148 = vunpack.c.h.b16 %v2083
        %v2149 = vunpack.c.l.b16 %v2084
        %v2150 = vunpack.c.l.b16 %v2085
        %v2151 = vunpack.c.h.b16 %v2085
        %v2152 = vunpack.c.l.b16 %v2086
        %v2153 = vunpack.c.l.b16 %v2087
        %v2154 = vunpack.c.h.b16 %v2087
        %v2155 = vunpack.c.l.b16 %v2088
        %v2156 = vunpack.c.l.b16 %v2089
        %v2157 = vunpack.c.h.b16 %v2089
        %v2158 = vunpack.c.l.b16 %v2090
        %v2159 = vunpack.c.l.b16 %v2091
        %v2160 = vunpack.c.h.b16 %v2091
        %v2161 = vunpack.c.l.b16 %v2092
        %v2162 = vunpack.c.l.b16 %v2093
        %v2163 = vunpack.c.h.b16 %v2093
        %v2164 = vunpack.c.l.b16 %v2094
        %v2165 = vunpack.c.l.b16 %v2095
        %v2166 = vunpack.c.h.b16 %v2095
        %v2167 = vunpack.c.l.b16 %v2096
        %v2168 = vunpack.c.l.b16 %v2097
        %v2169 = vunpack.c.h.b16 %v2097
        %v2170 = vunpack.c.l.b16 %v2098
        %v2171 = vunpack.c.l.b16 %v2099
        %v2172 = vunpack.c.h.b16 %v2099
        %v2173 = vunpack.c.l.b16 %v2100
        %v2174 = vunpack.c.l.b16 %v2101
        %v2175 = vunpack.c.h.b16 %v2101
        %v2176 = vunpack.c.l.b16 %v2102
        %v2177 = vunpack.c.l.b16 %v2103
        %v2178 = vunpack.c.h.b16 %v2103
        %v2179 = vunpack.c.l.b16 %v2104
        %v2180 = vunpack.c.l.b16 %v2105
        %v2181 = vunpack.c.h.b16 %v2105
        %v2182 = vunpack.c.l.b16 %v2106
        %v2183 = vunpack.c.l.b16 %v2107
        %v2184 = vunpack.c.h.b16 %v2107
        %v2185 = vunpack.c.l.b16 %v2108
        %v2186 = vunpack.c.l.b16 %v2109
        %v2187 = vunpack.c.h.b16 %v2109
        %v2188 = vunpack.c.l.b16 %v2110
        %v2189 = vunpack.c.l.b16 %v2111
        %v2190 = vunpack.c.h.b16 %v2111
        %v2191 = vunpack.c.l.b16 %v2112
        %v2192 = vunpack.c.l.b16 %v2113
        %v2193 = vunpack.c.h.b16 %v2113
        %v2194 = vunpack.c.l.b16 %v2114
        %v2195 = vpack.c.b16 %v2150, %v2147
        %v2196 = vpack.c.b16 %v2151, %v2148
        %v2197 = vpack.c.b16 %v2152, %v2149
        %v2198 = vpack.c.b16 %v2156, %v2153
        %v2199 = vpack.c.b16 %v2157, %v2154
        %v2200 = vpack.c.b16 %v2158, %v2155
        %v2201 = vpack.c.b16 %v2162, %v2159
        %v2202 = vpack.c.b16 %v2163, %v2160
        %v2203 = vpack.c.b16 %v2164, %v2161
        %v2204 = vpack.c.b16 %v2168, %v2165
        %v2205 = vpack.c.b16 %v2169, %v2166
        %v2206 = vpack.c.b16 %v2170, %v2167
        %v2207 = vpack.c.b16 %v2174, %v2171
        %v2208 = vpack.c.b16 %v2175, %v2172
        %v2209 = vpack.c.b16 %v2176, %v2173
        %v2210 = vpack.c.b16 %v2180, %v2177
        %v2211 = vpack.c.b16 %v2181, %v2178
        %v2212 = vpack.c.b16 %v2182, %v2179
        %v2213 = vpack.c.b16 %v2186, %v2183
        %v2214 = vpack.c.b16 %v2187, %v2184
        %v2215 = vpack.c.b16 %v2188, %v2185
        %v2216 = vpack.c.b16 %v2192, %v2189
        %v2217 = vpack.c.b16 %v2193, %v2190
        %v2218 = vpack.c.b16 %v2194, %v2191
        %2243 = vmatprep.subr.bf16.mxu0 %v2196
        %2244 = vmatpush1.bf16.msra.mxu0 %v2195
        %2245 = vmatprep.subr.bf16.mxu0 %v2199
        %2246 = vmatpush1.bf16.msra.mxu0 %v2198
        %2247 = vmatprep.subr.bf16.mxu0 %v2202
        %2248 = vmatpush1.bf16.msra.mxu0 %v2201
        %2249 = vmatprep.subr.bf16.mxu0 %v2205
        %2250 = vmatpush1.bf16.msra.mxu0 %v2204
        %2251 = vmatprep.subr.bf16.mxu0 %v2208
        %2252 = vmatpush1.bf16.msra.mxu0 %v2207
        %2253 = vmatprep.subr.bf16.mxu0 %v2211
        %2254 = vmatpush1.bf16.msra.mxu0 %v2210
        %2255 = vmatprep.subr.bf16.mxu0 %v2214
        %2256 = vmatpush1.bf16.msra.mxu0 %v2213
        %2257 = vmatprep.subr.bf16.mxu0 %v2217
        %2258 = vmatpush1.bf16.msra.mxu0 %v2216
        %2259 = vmatprep.subr.bf16.mxu0 0
        %2260 = vmatpush1.bf16.msra.mxu0 0
        %2261 = vmatprep.subr.bf16.mxu0 0
        %2262 = vmatpush1.bf16.msra.mxu0 0
        %2263 = vmatprep.subr.bf16.mxu0 0
        %2264 = vmatpush1.bf16.msra.mxu0 0
        %2265 = vmatprep.subr.bf16.mxu0 0
        %2266 = vmatpush1.bf16.msra.mxu0 0
        %2267 = vmatprep.subr.bf16.mxu0 0
        %2268 = vmatpush1.bf16.msra.mxu0 0
        %2269 = vmatprep.subr.bf16.mxu0 0
        %2270 = vmatpush1.bf16.msra.mxu0 0
        %2271 = vmatprep.subr.bf16.mxu0 0
        %2272 = vmatpush1.bf16.msra.mxu0 0
        %2273 = vmatprep.subr.bf16.mxu0 0
        %2274 = vmatpush1.bf16.msra.mxu0 0
        %2275 = vmatprep.mubr.bf16.mxu0 0
        %2276 = vmatmul.mubr.bf16.gmra.mrb[0].mxu0 %v2082
        %v2277 = vpop.f32.mrb[0].mxu0
        %v2278 = vadd.f32 0.0, %v2277
        %v2279 = vpop.f32.mrb[0].mxu0
        %v2280 = vadd.f32 0.0, %v2279
        %v2281 = vpop.f32.mrb[0].mxu0
        %v2282 = vpop.f32.mrb[0].mxu0
        %2283 = vdwg.mxu0
        %2284 = vmatprep.subr.bf16.mxu0 0
        %2285 = vmatpush1.bf16.msra.mxu0 %v2197
        %2286 = vmatprep.subr.bf16.mxu0 0
        %2287 = vmatpush1.bf16.msra.mxu0 %v2200
        %2288 = vmatprep.subr.bf16.mxu0 0
        %2289 = vmatpush1.bf16.msra.mxu0 %v2203
        %2290 = vmatprep.subr.bf16.mxu0 0
        %2291 = vmatpush1.bf16.msra.mxu0 %v2206
        %2292 = vmatprep.subr.bf16.mxu0 0
        %2293 = vmatpush1.bf16.msra.mxu0 %v2209
        %2294 = vmatprep.subr.bf16.mxu0 0
        %2295 = vmatpush1.bf16.msra.mxu0 %v2212
        %2296 = vmatprep.subr.bf16.mxu0 0
        %2297 = vmatpush1.bf16.msra.mxu0 %v2215
        %2298 = vmatprep.subr.bf16.mxu0 0
        %2299 = vmatpush1.bf16.msra.mxu0 %v2218
        %2300 = vmatprep.subr.bf16.mxu0 0
        %2301 = vmatpush1.bf16.msra.mxu0 0
        %2302 = vmatprep.subr.bf16.mxu0 0
        %2303 = vmatpush1.bf16.msra.mxu0 0
        %2304 = vmatprep.subr.bf16.mxu0 0
        %2305 = vmatpush1.bf16.msra.mxu0 0
        %2306 = vmatprep.subr.bf16.mxu0 0
        %2307 = vmatpush1.bf16.msra.mxu0 0
        %2308 = vmatprep.subr.bf16.mxu0 0
        %2309 = vmatpush1.bf16.msra.mxu0 0
        %2310 = vmatprep.subr.bf16.mxu0 0
        %2311 = vmatpush1.bf16.msra.mxu0 0
        %2312 = vmatprep.subr.bf16.mxu0 0
        %2313 = vmatpush1.bf16.msra.mxu0 0
        %2314 = vmatprep.subr.bf16.mxu0 0
        %2315 = vmatpush1.bf16.msra.mxu0 0
        %2316 = vmatprep.mubr.bf16.mxu0 0
        %2317 = vmatmul.mubr.bf16.gmra.mrb[0].mxu0 %v2082
        %v2318 = vpop.f32.mrb[0].mxu0
        %v2319 = vadd.f32 0.0, %v2318
        %v2320 = vpop.f32.mrb[0].mxu0
        %v2321 = vpop.f32.mrb[0].mxu0
        %v2322 = vpop.f32.mrb[0].mxu0
        %2323 = vdwg.mxu0
        %v2324 = vld [vmem:[#allocation16] sm:$0x3]
        %v2325 = vld [vmem:[#allocation17] sm:$0x3]
        %vm2326 = vcmask 31744
        %v2328 = vsel %vm2326, %v2325, 0
        %vm2330 = vcmask 1043456
        %v2332 = vsel %vm2330, %v2280, 0
        %2334 = vmatprep.subr.mxu0 0.0
        %2335 = vmatpush1.msra.mxu0 %v2332
        %2336 = vmatprep.subr.mxu0 0.0
        %2337 = vmatpush1.msra.mxu0 0.0
        %2338 = vmatprep.subr.mxu0 0.0
        %2339 = vmatpush1.msra.mxu0 0.0
        %2340 = vmatprep.subr.mxu0 0.0
        %2341 = vmatpush1.msra.mxu0 0.0
        %2342 = vmatprep.subr.mxu0 0.0
        %2343 = vmatpush1.msra.mxu0 0.0
        %2344 = vmatprep.subr.mxu0 0.0
        %2345 = vmatpush1.msra.mxu0 0.0
        %2346 = vmatprep.subr.mxu0 0.0
        %2347 = vmatpush1.msra.mxu0 0.0
        %2348 = vmatprep.subr.mxu0 0.0
        %2349 = vmatpush1.msra.mxu0 0.0
        %2350 = vmatprep.subr.mxu0 0.0
        %2351 = vmatpush1.msra.mxu0 0.0
        %2352 = vmatprep.subr.mxu0 0.0
        %2353 = vmatpush1.msra.mxu0 0.0
        %2354 = vmatprep.subr.mxu0 0.0
        %2355 = vmatpush1.msra.mxu0 0.0
        %2356 = vmatprep.subr.mxu0 0.0
        %2357 = vmatpush1.msra.mxu0 0.0
        %2358 = vmatprep.subr.mxu0 0.0
        %2359 = vmatpush1.msra.mxu0 0.0
        %2360 = vmatprep.subr.mxu0 0.0
        %2361 = vmatpush1.msra.mxu0 0.0
        %2362 = vmatprep.subr.mxu0 0.0
        %2363 = vmatpush1.msra.mxu0 0.0
        %2364 = vmatprep.subr.mxu0 0.0
        %2365 = vmatpush1.msra.mxu0 0.0
        %2366 = vmatprep.subr.mxu0 0.0
        %2367 = vmatpush1.msra.mxu0 0.0
        %2368 = vmatprep.subr.mxu0 0.0
        %2369 = vmatpush1.msra.mxu0 0.0
        %2370 = vmatprep.subr.mxu0 0.0
        %2371 = vmatpush1.msra.mxu0 0.0
        %2372 = vmatprep.subr.mxu0 0.0
        %2373 = vmatpush1.msra.mxu0 0.0
        %2374 = vmatprep.subr.mxu0 0.0
        %2375 = vmatpush1.msra.mxu0 0.0
        %2376 = vmatprep.subr.mxu0 0.0
        %2377 = vmatpush1.msra.mxu0 0.0
        %2378 = vmatprep.subr.mxu0 0.0
        %2379 = vmatpush1.msra.mxu0 0.0
        %2380 = vmatprep.subr.mxu0 0.0
        %2381 = vmatpush1.msra.mxu0 0.0
        %2382 = vmatprep.subr.mxu0 0.0
        %2383 = vmatpush1.msra.mxu0 0.0
        %2384 = vmatprep.subr.mxu0 0.0
        %2385 = vmatpush1.msra.mxu0 0.0
        %2386 = vmatprep.subr.mxu0 0.0
        %2387 = vmatpush1.msra.mxu0 0.0
        %2388 = vmatprep.subr.mxu0 0.0
        %2389 = vmatpush1.msra.mxu0 0.0
        %2390 = vmatprep.subr.mxu0 0.0
        %2391 = vmatpush1.msra.mxu0 0.0
        %2392 = vmatprep.subr.mxu0 0.0
        %2393 = vmatpush1.msra.mxu0 0.0
        %2394 = vmatprep.subr.mxu0 0.0
        %2395 = vmatpush1.msra.mxu0 0.0
        %2396 = vmatprep.subr.mxu0 0.0
        %2397 = vmatpush1.msra.mxu0 0.0
        %2398 = vmatprep.mubr.f32.mxu0 0.0
        %2399 = vmatmul.mubr.f32.gmra.mrb[0].mxu0 %v2328
        %v2400 = vpop.f32.mrb[0].mxu0
        %v2401 = vadd.f32 0.0, %v2400
        %v2402 = vpop.f32.mrb[0].mxu0
        %2403 = vdwg.mxu0
        %v2405 = vsel %vm2326, %v2324, 0
        %v2408 = vsel %vm2330, %v2278, 0
        %2410 = vmatprep.subr.mxu0 0.0
        %2411 = vmatpush1.msra.mxu0 %v2408
        %2412 = vmatprep.subr.mxu0 0.0
        %2413 = vmatpush1.msra.mxu0 0.0
        %2414 = vmatprep.subr.mxu0 0.0
        %2415 = vmatpush1.msra.mxu0 0.0
        %2416 = vmatprep.subr.mxu0 0.0
        %2417 = vmatpush1.msra.mxu0 0.0
        %2418 = vmatprep.subr.mxu0 0.0
        %2419 = vmatpush1.msra.mxu0 0.0
        %2420 = vmatprep.subr.mxu0 0.0
        %2421 = vmatpush1.msra.mxu0 0.0
        %2422 = vmatprep.subr.mxu0 0.0
        %2423 = vmatpush1.msra.mxu0 0.0
        %2424 = vmatprep.subr.mxu0 0.0
        %2425 = vmatpush1.msra.mxu0 0.0
        %2426 = vmatprep.subr.mxu0 0.0
        %2427 = vmatpush1.msra.mxu0 0.0
        %2428 = vmatprep.subr.mxu0 0.0
        %2429 = vmatpush1.msra.mxu0 0.0
        %2430 = vmatprep.subr.mxu0 0.0
        %2431 = vmatpush1.msra.mxu0 0.0
        %2432 = vmatprep.subr.mxu0 0.0
        %2433 = vmatpush1.msra.mxu0 0.0
        %2434 = vmatprep.subr.mxu0 0.0
        %2435 = vmatpush1.msra.mxu0 0.0
        %2436 = vmatprep.subr.mxu0 0.0
        %2437 = vmatpush1.msra.mxu0 0.0
        %2438 = vmatprep.subr.mxu0 0.0
        %2439 = vmatpush1.msra.mxu0 0.0
        %2440 = vmatprep.subr.mxu0 0.0
        %2441 = vmatpush1.msra.mxu0 0.0
        %2442 = vmatprep.subr.mxu0 0.0
        %2443 = vmatpush1.msra.mxu0 0.0
        %2444 = vmatprep.subr.mxu0 0.0
        %2445 = vmatpush1.msra.mxu0 0.0
        %2446 = vmatprep.subr.mxu0 0.0
        %2447 = vmatpush1.msra.mxu0 0.0
        %2448 = vmatprep.subr.mxu0 0.0
        %2449 = vmatpush1.msra.mxu0 0.0
        %2450 = vmatprep.subr.mxu0 0.0
        %2451 = vmatpush1.msra.mxu0 0.0
        %2452 = vmatprep.subr.mxu0 0.0
        %2453 = vmatpush1.msra.mxu0 0.0
        %2454 = vmatprep.subr.mxu0 0.0
        %2455 = vmatpush1.msra.mxu0 0.0
        %2456 = vmatprep.subr.mxu0 0.0
        %2457 = vmatpush1.msra.mxu0 0.0
        %2458 = vmatprep.subr.mxu0 0.0
        %2459 = vmatpush1.msra.mxu0 0.0
        %2460 = vmatprep.subr.mxu0 0.0
        %2461 = vmatpush1.msra.mxu0 0.0
        %2462 = vmatprep.subr.mxu0 0.0
        %2463 = vmatpush1.msra.mxu0 0.0
        %2464 = vmatprep.subr.mxu0 0.0
        %2465 = vmatpush1.msra.mxu0 0.0
        %2466 = vmatprep.subr.mxu0 0.0
        %2467 = vmatpush1.msra.mxu0 0.0
        %2468 = vmatprep.subr.mxu0 0.0
        %2469 = vmatpush1.msra.mxu0 0.0
        %2470 = vmatprep.subr.mxu0 0.0
        %2471 = vmatpush1.msra.mxu0 0.0
        %2472 = vmatprep.subr.mxu0 0.0
        %2473 = vmatpush1.msra.mxu0 0.0
        %2474 = vmatprep.mubr.f32.mxu0 0.0
        %2475 = vmatmul.mubr.f32.gmra.mrb[0].mxu0 %v2405
        %v2476 = vpop.f32.mrb[0].mxu0
        %v2477 = vadd.f32 %v2401, %v2476
        %v2478 = vpop.f32.mrb[0].mxu0
        %2479 = vdwg.mxu0
        %v2480 = vld [vmem:[%s29] sm:$0x3]
        %v2482 = vsel %vm2326, %v2480, 0
        %v2485 = vsel %vm2330, %v2319, 0
        %2487 = vmatprep.subr.mxu0 0.0
        %2488 = vmatpush1.msra.mxu0 %v2485
        %2489 = vmatprep.subr.mxu0 0.0
        %2490 = vmatpush1.msra.mxu0 0.0
        %2491 = vmatprep.subr.mxu0 0.0
        %2492 = vmatpush1.msra.mxu0 0.0
        %2493 = vmatprep.subr.mxu0 0.0
        %2494 = vmatpush1.msra.mxu0 0.0
        %2495 = vmatprep.subr.mxu0 0.0
        %2496 = vmatpush1.msra.mxu0 0.0
        %2497 = vmatprep.subr.mxu0 0.0
        %2498 = vmatpush1.msra.mxu0 0.0
        %2499 = vmatprep.subr.mxu0 0.0
        %2500 = vmatpush1.msra.mxu0 0.0
        %2501 = vmatprep.subr.mxu0 0.0
        %2502 = vmatpush1.msra.mxu0 0.0
        %2503 = vmatprep.subr.mxu0 0.0
        %2504 = vmatpush1.msra.mxu0 0.0
        %2505 = vmatprep.subr.mxu0 0.0
        %2506 = vmatpush1.msra.mxu0 0.0
        %2507 = vmatprep.subr.mxu0 0.0
        %2508 = vmatpush1.msra.mxu0 0.0
        %2509 = vmatprep.subr.mxu0 0.0
        %2510 = vmatpush1.msra.mxu0 0.0
        %2511 = vmatprep.subr.mxu0 0.0
        %2512 = vmatpush1.msra.mxu0 0.0
        %2513 = vmatprep.subr.mxu0 0.0
        %2514 = vmatpush1.msra.mxu0 0.0
        %2515 = vmatprep.subr.mxu0 0.0
        %2516 = vmatpush1.msra.mxu0 0.0
        %2517 = vmatprep.subr.mxu0 0.0
        %2518 = vmatpush1.msra.mxu0 0.0
        %2519 = vmatprep.subr.mxu0 0.0
        %2520 = vmatpush1.msra.mxu0 0.0
        %2521 = vmatprep.subr.mxu0 0.0
        %2522 = vmatpush1.msra.mxu0 0.0
        %2523 = vmatprep.subr.mxu0 0.0
        %2524 = vmatpush1.msra.mxu0 0.0
        %2525 = vmatprep.subr.mxu0 0.0
        %2526 = vmatpush1.msra.mxu0 0.0
        %2527 = vmatprep.subr.mxu0 0.0
        %2528 = vmatpush1.msra.mxu0 0.0
        %2529 = vmatprep.subr.mxu0 0.0
        %2530 = vmatpush1.msra.mxu0 0.0
        %2531 = vmatprep.subr.mxu0 0.0
        %2532 = vmatpush1.msra.mxu0 0.0
        %2533 = vmatprep.subr.mxu0 0.0
        %2534 = vmatpush1.msra.mxu0 0.0
        %2535 = vmatprep.subr.mxu0 0.0
        %2536 = vmatpush1.msra.mxu0 0.0
        %2537 = vmatprep.subr.mxu0 0.0
        %2538 = vmatpush1.msra.mxu0 0.0
        %2539 = vmatprep.subr.mxu0 0.0
        %2540 = vmatpush1.msra.mxu0 0.0
        %2541 = vmatprep.subr.mxu0 0.0
        %2542 = vmatpush1.msra.mxu0 0.0
        %2543 = vmatprep.subr.mxu0 0.0
        %2544 = vmatpush1.msra.mxu0 0.0
        %2545 = vmatprep.subr.mxu0 0.0
        %2546 = vmatpush1.msra.mxu0 0.0
        %2547 = vmatprep.subr.mxu0 0.0
        %2548 = vmatpush1.msra.mxu0 0.0
        %2549 = vmatprep.subr.mxu0 0.0
        %2550 = vmatpush1.msra.mxu0 0.0
        %2551 = vmatprep.mubr.f32.mxu0 0.0
        %2552 = vmatmul.mubr.f32.gmra.mrb[0].mxu0 %v2482
        %v2553 = vpop.f32.mrb[0].mxu0
        %v2554 = vadd.f32 0.0, %v2553
        %v2555 = vpop.f32.mrb[0].mxu0
        %2556 = vdwg.mxu0
        %v2557 = vadd.f32 %v2477, %v2554
        %v2558 = vld [vmem:[#allocation19] sm:$0x1]
        %v2560 = vlaneseq
        %v2561 = vshrl.u32 %v2560, 7
        %v2562 = vsub.s32 0, %v2561
        %v2563 = vrot.slane %v2558, %v2562
        %v2565 = vadd.f32 %v2557, %v2563
        %v2566 = vmax.f32 %v2565, 0.0
        %v2567 = vpack.c.bf16 %v2566, %v2566
        %v2568 = vld [vmem:[%s33] sm:$0xf]
        %v2569 = vld [vmem:[%s33 + $0x4] sm:$0xf]
        %v2570 = vld [vmem:[%s33 + $0x8] sm:$0xf]
        %v2571 = vld [vmem:[%s33 + $0xc] sm:$0xf]
        %v2572 = vld [vmem:[%s33 + $0x10] sm:$0xf]
        %v2573 = vld [vmem:[%s33 + $0x14] sm:$0xf]
        %v2574 = vld [vmem:[%s33 + $0x18] sm:$0xf]
        %v2575 = vld [vmem:[%s33 + $0x1c] sm:$0xf]
        %v2576 = vld [vmem:[%s33 + $0x20] sm:$0xf]
        %v2577 = vld [vmem:[%s33 + $0x24] sm:$0xf]
        %v2578 = vld [vmem:[%s33 + $0x28] sm:$0xf]
        %v2579 = vld [vmem:[%s33 + $0x2c] sm:$0xf]
        %v2580 = vld [vmem:[%s33 + $0x30] sm:$0xf]
        %v2581 = vld [vmem:[%s33 + $0x34] sm:$0xf]
        %v2582 = vld [vmem:[%s33 + $0x38] sm:$0xf]
        %v2583 = vld [vmem:[%s33 + $0x3c] sm:$0xf]
        %v2600 = vunpack.c.l.b16 %v2568
        %v2601 = vunpack.c.l.b16 %v2569
        %v2602 = vunpack.c.l.b16 %v2570
        %v2603 = vunpack.c.l.b16 %v2571
        %v2604 = vunpack.c.l.b16 %v2572
        %v2605 = vunpack.c.l.b16 %v2573
        %v2606 = vunpack.c.l.b16 %v2574
        %v2607 = vunpack.c.l.b16 %v2575
        %v2608 = vunpack.c.l.b16 %v2576
        %v2609 = vunpack.c.l.b16 %v2577
        %v2610 = vunpack.c.l.b16 %v2578
        %v2611 = vunpack.c.l.b16 %v2579
        %v2612 = vunpack.c.l.b16 %v2580
        %v2613 = vunpack.c.l.b16 %v2581
        %v2614 = vunpack.c.l.b16 %v2582
        %v2615 = vunpack.c.l.b16 %v2583
        %v2616 = vpack.c.b16 %v2601, %v2600
        %v2617 = vpack.c.b16 %v2603, %v2602
        %v2618 = vpack.c.b16 %v2605, %v2604
        %v2619 = vpack.c.b16 %v2607, %v2606
        %v2620 = vpack.c.b16 %v2609, %v2608
        %v2621 = vpack.c.b16 %v2611, %v2610
        %v2622 = vpack.c.b16 %v2613, %v2612
        %v2623 = vpack.c.b16 %v2615, %v2614
        %2632 = vmatprep.subr.bf16.mxu0 0
        %2633 = vmatpush1.bf16.msra.mxu0 %v2616
        %2634 = vmatprep.subr.bf16.mxu0 0
        %2635 = vmatpush1.bf16.msra.mxu0 %v2617
        %2636 = vmatprep.subr.bf16.mxu0 0
        %2637 = vmatpush1.bf16.msra.mxu0 %v2618
        %2638 = vmatprep.subr.bf16.mxu0 0
        %2639 = vmatpush1.bf16.msra.mxu0 %v2619
        %2640 = vmatprep.subr.bf16.mxu0 0
        %2641 = vmatpush1.bf16.msra.mxu0 %v2620
        %2642 = vmatprep.subr.bf16.mxu0 0
        %2643 = vmatpush1.bf16.msra.mxu0 %v2621
        %2644 = vmatprep.subr.bf16.mxu0 0
        %2645 = vmatpush1.bf16.msra.mxu0 %v2622
        %2646 = vmatprep.subr.bf16.mxu0 0
        %2647 = vmatpush1.bf16.msra.mxu0 %v2623
        %2648 = vmatprep.subr.bf16.mxu0 0
        %2649 = vmatpush1.bf16.msra.mxu0 0
        %2650 = vmatprep.subr.bf16.mxu0 0
        %2651 = vmatpush1.bf16.msra.mxu0 0
        %2652 = vmatprep.subr.bf16.mxu0 0
        %2653 = vmatpush1.bf16.msra.mxu0 0
        %2654 = vmatprep.subr.bf16.mxu0 0
        %2655 = vmatpush1.bf16.msra.mxu0 0
        %2656 = vmatprep.subr.bf16.mxu0 0
        %2657 = vmatpush1.bf16.msra.mxu0 0
        %2658 = vmatprep.subr.bf16.mxu0 0
        %2659 = vmatpush1.bf16.msra.mxu0 0
        %2660 = vmatprep.subr.bf16.mxu0 0
        %2661 = vmatpush1.bf16.msra.mxu0 0
        %2662 = vmatprep.subr.bf16.mxu0 0
        %2663 = vmatpush1.bf16.msra.mxu0 0
        %2664 = vmatprep.mubr.bf16.mxu0 0
        %2665 = vmatmul.mubr.bf16.gmra.mrb[0].mxu0 %v2567
        %v2666 = vpop.f32.mrb[0].mxu0
        %v2667 = vadd.f32 0.0, %v2666
        %v2668 = vpop.f32.mrb[0].mxu0
        %v2669 = vpop.f32.mrb[0].mxu0
        %v2670 = vpop.f32.mrb[0].mxu0
        %2671 = vdwg.mxu0
        %v2672 = vld [vmem:[%s35] sm:$0xf]
        %v2673 = vld [vmem:[%s35 + $0x4] sm:$0xf]
        %v2674 = vld [vmem:[%s35 + $0x8] sm:$0xf]
        %v2675 = vld [vmem:[%s35 + $0xc] sm:$0xf]
        %v2676 = vld [vmem:[%s35 + $0x10] sm:$0xf]
        %v2677 = vld [vmem:[%s35 + $0x14] sm:$0xf]
        %v2678 = vld [vmem:[%s35 + $0x18] sm:$0xf]
        %v2679 = vld [vmem:[%s35 + $0x1c] sm:$0xf]
        %v2680 = vld [vmem:[%s35 + $0x20] sm:$0xf]
        %v2681 = vld [vmem:[%s35 + $0x24] sm:$0xf]
        %v2682 = vld [vmem:[%s35 + $0x28] sm:$0xf]
        %v2683 = vld [vmem:[%s35 + $0x2c] sm:$0xf]
        %v2684 = vld [vmem:[%s35 + $0x30] sm:$0xf]
        %v2685 = vld [vmem:[%s35 + $0x34] sm:$0xf]
        %v2686 = vld [vmem:[%s35 + $0x38] sm:$0xf]
        %v2687 = vld [vmem:[%s35 + $0x3c] sm:$0xf]
        %v2704 = vunpack.c.l.b16 %v2672
        %v2705 = vunpack.c.l.b16 %v2673
        %v2706 = vunpack.c.l.b16 %v2674
        %v2707 = vunpack.c.l.b16 %v2675
        %v2708 = vunpack.c.l.b16 %v2676
        %v2709 = vunpack.c.l.b16 %v2677
        %v2710 = vunpack.c.l.b16 %v2678
        %v2711 = vunpack.c.l.b16 %v2679
        %v2712 = vunpack.c.l.b16 %v2680
        %v2713 = vunpack.c.l.b16 %v2681
        %v2714 = vunpack.c.l.b16 %v2682
        %v2715 = vunpack.c.l.b16 %v2683
        %v2716 = vunpack.c.l.b16 %v2684
        %v2717 = vunpack.c.l.b16 %v2685
        %v2718 = vunpack.c.l.b16 %v2686
        %v2719 = vunpack.c.l.b16 %v2687
        %v2720 = vpack.c.b16 %v2705, %v2704
        %v2721 = vpack.c.b16 %v2707, %v2706
        %v2722 = vpack.c.b16 %v2709, %v2708
        %v2723 = vpack.c.b16 %v2711, %v2710
        %v2724 = vpack.c.b16 %v2713, %v2712
        %v2725 = vpack.c.b16 %v2715, %v2714
        %v2726 = vpack.c.b16 %v2717, %v2716
        %v2727 = vpack.c.b16 %v2719, %v2718
        %2736 = vmatprep.subr.bf16.mxu0 0
        %2737 = vmatpush1.bf16.msra.mxu0 %v2720
        %2738 = vmatprep.subr.bf16.mxu0 0
        %2739 = vmatpush1.bf16.msra.mxu0 %v2721
        %2740 = vmatprep.subr.bf16.mxu0 0
        %2741 = vmatpush1.bf16.msra.mxu0 %v2722
        %2742 = vmatprep.subr.bf16.mxu0 0
        %2743 = vmatpush1.bf16.msra.mxu0 %v2723
        %2744 = vmatprep.subr.bf16.mxu0 0
        %2745 = vmatpush1.bf16.msra.mxu0 %v2724
        %2746 = vmatprep.subr.bf16.mxu0 0
        %2747 = vmatpush1.bf16.msra.mxu0 %v2725
        %2748 = vmatprep.subr.bf16.mxu0 0
        %2749 = vmatpush1.bf16.msra.mxu0 %v2726
        %2750 = vmatprep.subr.bf16.mxu0 0
        %2751 = vmatpush1.bf16.msra.mxu0 %v2727
        %2752 = vmatprep.subr.bf16.mxu0 0
        %2753 = vmatpush1.bf16.msra.mxu0 0
        %2754 = vmatprep.subr.bf16.mxu0 0
        %2755 = vmatpush1.bf16.msra.mxu0 0
        %2756 = vmatprep.subr.bf16.mxu0 0
        %2757 = vmatpush1.bf16.msra.mxu0 0
        %2758 = vmatprep.subr.bf16.mxu0 0
        %2759 = vmatpush1.bf16.msra.mxu0 0
        %2760 = vmatprep.subr.bf16.mxu0 0
        %2761 = vmatpush1.bf16.msra.mxu0 0
        %2762 = vmatprep.subr.bf16.mxu0 0
        %2763 = vmatpush1.bf16.msra.mxu0 0
        %2764 = vmatprep.subr.bf16.mxu0 0
        %2765 = vmatpush1.bf16.msra.mxu0 0
        %2766 = vmatprep.subr.bf16.mxu0 0
        %2767 = vmatpush1.bf16.msra.mxu0 0
        %2768 = vmatprep.mubr.bf16.mxu0 0
        %2769 = vmatmul.mubr.bf16.gmra.mrb[0].mxu0 %v2567
        %v2770 = vpop.f32.mrb[0].mxu0
        %v2771 = vadd.f32 0.0, %v2770
        %v2772 = vpop.f32.mrb[0].mxu0
        %v2773 = vpop.f32.mrb[0].mxu0
        %v2774 = vpop.f32.mrb[0].mxu0
        %2775 = vdwg.mxu0
        %v2776 = vld [vmem:[%s37] sm:$0xf]
        %v2777 = vld [vmem:[%s37 + $0x4] sm:$0xf]
        %v2778 = vld [vmem:[%s37 + $0x8] sm:$0xf]
        %v2779 = vld [vmem:[%s37 + $0xc] sm:$0xf]
        %v2780 = vld [vmem:[%s37 + $0x10] sm:$0xf]
        %v2781 = vld [vmem:[%s37 + $0x14] sm:$0xf]
        %v2782 = vld [vmem:[%s37 + $0x18] sm:$0xf]
        %v2783 = vld [vmem:[%s37 + $0x1c] sm:$0xf]
        %v2784 = vld [vmem:[%s37 + $0x20] sm:$0xf]
        %v2785 = vld [vmem:[%s37 + $0x24] sm:$0xf]
        %v2786 = vld [vmem:[%s37 + $0x28] sm:$0xf]
        %v2787 = vld [vmem:[%s37 + $0x2c] sm:$0xf]
        %v2788 = vld [vmem:[%s37 + $0x30] sm:$0xf]
        %v2789 = vld [vmem:[%s37 + $0x34] sm:$0xf]
        %v2790 = vld [vmem:[%s37 + $0x38] sm:$0xf]
        %v2791 = vld [vmem:[%s37 + $0x3c] sm:$0xf]
        %v2808 = vunpack.c.l.b16 %v2776
        %v2809 = vunpack.c.l.b16 %v2777
        %v2810 = vunpack.c.l.b16 %v2778
        %v2811 = vunpack.c.l.b16 %v2779
        %v2812 = vunpack.c.l.b16 %v2780
        %v2813 = vunpack.c.l.b16 %v2781
        %v2814 = vunpack.c.l.b16 %v2782
        %v2815 = vunpack.c.l.b16 %v2783
        %v2816 = vunpack.c.l.b16 %v2784
        %v2817 = vunpack.c.l.b16 %v2785
        %v2818 = vunpack.c.l.b16 %v2786
        %v2819 = vunpack.c.l.b16 %v2787
        %v2820 = vunpack.c.l.b16 %v2788
        %v2821 = vunpack.c.l.b16 %v2789
        %v2822 = vunpack.c.l.b16 %v2790
        %v2823 = vunpack.c.l.b16 %v2791
        %v2824 = vpack.c.b16 %v2809, %v2808
        %v2825 = vpack.c.b16 %v2811, %v2810
        %v2826 = vpack.c.b16 %v2813, %v2812
        %v2827 = vpack.c.b16 %v2815, %v2814
        %v2828 = vpack.c.b16 %v2817, %v2816
        %v2829 = vpack.c.b16 %v2819, %v2818
        %v2830 = vpack.c.b16 %v2821, %v2820
        %v2831 = vpack.c.b16 %v2823, %v2822
        %2840 = vmatprep.subr.bf16.mxu0 0
        %2841 = vmatpush1.bf16.msra.mxu0 %v2824
        %2842 = vmatprep.subr.bf16.mxu0 0
        %2843 = vmatpush1.bf16.msra.mxu0 %v2825
        %2844 = vmatprep.subr.bf16.mxu0 0
        %2845 = vmatpush1.bf16.msra.mxu0 %v2826
        %2846 = vmatprep.subr.bf16.mxu0 0
        %2847 = vmatpush1.bf16.msra.mxu0 %v2827
        %2848 = vmatprep.subr.bf16.mxu0 0
        %2849 = vmatpush1.bf16.msra.mxu0 %v2828
        %2850 = vmatprep.subr.bf16.mxu0 0
        %2851 = vmatpush1.bf16.msra.mxu0 %v2829
        %2852 = vmatprep.subr.bf16.mxu0 0
        %2853 = vmatpush1.bf16.msra.mxu0 %v2830
        %2854 = vmatprep.subr.bf16.mxu0 0
        %2855 = vmatpush1.bf16.msra.mxu0 %v2831
        %2856 = vmatprep.subr.bf16.mxu0 0
        %2857 = vmatpush1.bf16.msra.mxu0 0
        %2858 = vmatprep.subr.bf16.mxu0 0
        %2859 = vmatpush1.bf16.msra.mxu0 0
        %2860 = vmatprep.subr.bf16.mxu0 0
        %2861 = vmatpush1.bf16.msra.mxu0 0
        %2862 = vmatprep.subr.bf16.mxu0 0
        %2863 = vmatpush1.bf16.msra.mxu0 0
        %2864 = vmatprep.subr.bf16.mxu0 0
        %2865 = vmatpush1.bf16.msra.mxu0 0
        %2866 = vmatprep.subr.bf16.mxu0 0
        %2867 = vmatpush1.bf16.msra.mxu0 0
        %2868 = vmatprep.subr.bf16.mxu0 0
        %2869 = vmatpush1.bf16.msra.mxu0 0
        %2870 = vmatprep.subr.bf16.mxu0 0
        %2871 = vmatpush1.bf16.msra.mxu0 0
        %2872 = vmatprep.mubr.bf16.mxu0 0
        %2873 = vmatmul.mubr.bf16.gmra.mrb[0].mxu0 %v2567
        %v2874 = vpop.f32.mrb[0].mxu0
        %v2875 = vadd.f32 0.0, %v2874
        %v2876 = vpop.f32.mrb[0].mxu0
        %v2877 = vpop.f32.mrb[0].mxu0
        %v2878 = vpop.f32.mrb[0].mxu0
        %2879 = vdwg.mxu0
        %v2880 = vld [vmem:[%s39] sm:$0xf]
        %v2881 = vld [vmem:[%s41] sm:$0xf]
        %vm2882 = vcmask 15360
        %v2884 = vsel %vm2882, %v2881, 0
        %vm2886 = vcmask 1041408
        %v2888 = vsel %vm2886, %v2771, 0
        %2890 = vmatprep.subr.mxu0 0.0
        %2891 = vmatpush1.msra.mxu0 %v2888
        %2892 = vmatprep.subr.mxu0 0.0
        %2893 = vmatpush1.msra.mxu0 0.0
        %2894 = vmatprep.subr.mxu0 0.0
        %2895 = vmatpush1.msra.mxu0 0.0
        %2896 = vmatprep.subr.mxu0 0.0
        %2897 = vmatpush1.msra.mxu0 0.0
        %2898 = vmatprep.subr.mxu0 0.0
        %2899 = vmatpush1.msra.mxu0 0.0
        %2900 = vmatprep.subr.mxu0 0.0
        %2901 = vmatpush1.msra.mxu0 0.0
        %2902 = vmatprep.subr.mxu0 0.0
        %2903 = vmatpush1.msra.mxu0 0.0
        %2904 = vmatprep.subr.mxu0 0.0
        %2905 = vmatpush1.msra.mxu0 0.0
        %2906 = vmatprep.subr.mxu0 0.0
        %2907 = vmatpush1.msra.mxu0 0.0
        %2908 = vmatprep.subr.mxu0 0.0
        %2909 = vmatpush1.msra.mxu0 0.0
        %2910 = vmatprep.subr.mxu0 0.0
        %2911 = vmatpush1.msra.mxu0 0.0
        %2912 = vmatprep.subr.mxu0 0.0
        %2913 = vmatpush1.msra.mxu0 0.0
        %2914 = vmatprep.subr.mxu0 0.0
        %2915 = vmatpush1.msra.mxu0 0.0
        %2916 = vmatprep.subr.mxu0 0.0
        %2917 = vmatpush1.msra.mxu0 0.0
        %2918 = vmatprep.subr.mxu0 0.0
        %2919 = vmatpush1.msra.mxu0 0.0
        %2920 = vmatprep.subr.mxu0 0.0
        %2921 = vmatpush1.msra.mxu0 0.0
        %2922 = vmatprep.subr.mxu0 0.0
        %2923 = vmatpush1.msra.mxu0 0.0
        %2924 = vmatprep.subr.mxu0 0.0
        %2925 = vmatpush1.msra.mxu0 0.0
        %2926 = vmatprep.subr.mxu0 0.0
        %2927 = vmatpush1.msra.mxu0 0.0
        %2928 = vmatprep.subr.mxu0 0.0
        %2929 = vmatpush1.msra.mxu0 0.0
        %2930 = vmatprep.subr.mxu0 0.0
        %2931 = vmatpush1.msra.mxu0 0.0
        %2932 = vmatprep.subr.mxu0 0.0
        %2933 = vmatpush1.msra.mxu0 0.0
        %2934 = vmatprep.subr.mxu0 0.0
        %2935 = vmatpush1.msra.mxu0 0.0
        %2936 = vmatprep.subr.mxu0 0.0
        %2937 = vmatpush1.msra.mxu0 0.0
        %2938 = vmatprep.subr.mxu0 0.0
        %2939 = vmatpush1.msra.mxu0 0.0
        %2940 = vmatprep.subr.mxu0 0.0
        %2941 = vmatpush1.msra.mxu0 0.0
        %2942 = vmatprep.subr.mxu0 0.0
        %2943 = vmatpush1.msra.mxu0 0.0
        %2944 = vmatprep.subr.mxu0 0.0
        %2945 = vmatpush1.msra.mxu0 0.0
        %2946 = vmatprep.subr.mxu0 0.0
        %2947 = vmatpush1.msra.mxu0 0.0
        %2948 = vmatprep.subr.mxu0 0.0
        %2949 = vmatpush1.msra.mxu0 0.0
        %2950 = vmatprep.subr.mxu0 0.0
        %2951 = vmatpush1.msra.mxu0 0.0
        %2952 = vmatprep.subr.mxu0 0.0
        %2953 = vmatpush1.msra.mxu0 0.0
        %2954 = vmatprep.mubr.f32.mxu0 0.0
        %2955 = vmatmul.mubr.f32.gmra.mrb[0].mxu0 %v2884
        %v2956 = vpop.f32.mrb[0].mxu0
        %v2957 = vadd.f32 0.0, %v2956
        %v2958 = vpop.f32.mrb[0].mxu0
        %2959 = vdwg.mxu0
        %v2961 = vsel %vm2882, %v2880, 0
        %v2964 = vsel %vm2886, %v2667, 0
        %2966 = vmatprep.subr.mxu0 0.0
        %2967 = vmatpush1.msra.mxu0 %v2964
        %2968 = vmatprep.subr.mxu0 0.0
        %2969 = vmatpush1.msra.mxu0 0.0
        %2970 = vmatprep.subr.mxu0 0.0
        %2971 = vmatpush1.msra.mxu0 0.0
        %2972 = vmatprep.subr.mxu0 0.0
        %2973 = vmatpush1.msra.mxu0 0.0
        %2974 = vmatprep.subr.mxu0 0.0
        %2975 = vmatpush1.msra.mxu0 0.0
        %2976 = vmatprep.subr.mxu0 0.0
        %2977 = vmatpush1.msra.mxu0 0.0
        %2978 = vmatprep.subr.mxu0 0.0
        %2979 = vmatpush1.msra.mxu0 0.0
        %2980 = vmatprep.subr.mxu0 0.0
        %2981 = vmatpush1.msra.mxu0 0.0
        %2982 = vmatprep.subr.mxu0 0.0
        %2983 = vmatpush1.msra.mxu0 0.0
        %2984 = vmatprep.subr.mxu0 0.0
        %2985 = vmatpush1.msra.mxu0 0.0
        %2986 = vmatprep.subr.mxu0 0.0
        %2987 = vmatpush1.msra.mxu0 0.0
        %2988 = vmatprep.subr.mxu0 0.0
        %2989 = vmatpush1.msra.mxu0 0.0
        %2990 = vmatprep.subr.mxu0 0.0
        %2991 = vmatpush1.msra.mxu0 0.0
        %2992 = vmatprep.subr.mxu0 0.0
        %2993 = vmatpush1.msra.mxu0 0.0
        %2994 = vmatprep.subr.mxu0 0.0
        %2995 = vmatpush1.msra.mxu0 0.0
        %2996 = vmatprep.subr.mxu0 0.0
        %2997 = vmatpush1.msra.mxu0 0.0
        %2998 = vmatprep.subr.mxu0 0.0
        %2999 = vmatpush1.msra.mxu0 0.0
        %3000 = vmatprep.subr.mxu0 0.0
        %3001 = vmatpush1.msra.mxu0 0.0
        %3002 = vmatprep.subr.mxu0 0.0
        %3003 = vmatpush1.msra.mxu0 0.0
        %3004 = vmatprep.subr.mxu0 0.0
        %3005 = vmatpush1.msra.mxu0 0.0
        %3006 = vmatprep.subr.mxu0 0.0
        %3007 = vmatpush1.msra.mxu0 0.0
        %3008 = vmatprep.subr.mxu0 0.0
        %3009 = vmatpush1.msra.mxu0 0.0
        %3010 = vmatprep.subr.mxu0 0.0
        %3011 = vmatpush1.msra.mxu0 0.0
        %3012 = vmatprep.subr.mxu0 0.0
        %3013 = vmatpush1.msra.mxu0 0.0
        %3014 = vmatprep.subr.mxu0 0.0
        %3015 = vmatpush1.msra.mxu0 0.0
        %3016 = vmatprep.subr.mxu0 0.0
        %3017 = vmatpush1.msra.mxu0 0.0
        %3018 = vmatprep.subr.mxu0 0.0
        %3019 = vmatpush1.msra.mxu0 0.0
        %3020 = vmatprep.subr.mxu0 0.0
        %3021 = vmatpush1.msra.mxu0 0.0
        %3022 = vmatprep.subr.mxu0 0.0
        %3023 = vmatpush1.msra.mxu0 0.0
        %3024 = vmatprep.subr.mxu0 0.0
        %3025 = vmatpush1.msra.mxu0 0.0
        %3026 = vmatprep.subr.mxu0 0.0
        %3027 = vmatpush1.msra.mxu0 0.0
        %3028 = vmatprep.subr.mxu0 0.0
        %3029 = vmatpush1.msra.mxu0 0.0
        %3030 = vmatprep.mubr.f32.mxu0 0.0
        %3031 = vmatmul.mubr.f32.gmra.mrb[0].mxu0 %v2961
        %v3032 = vpop.f32.mrb[0].mxu0
        %v3033 = vadd.f32 %v2957, %v3032
        %v3034 = vpop.f32.mrb[0].mxu0
        %3035 = vdwg.mxu0
        %v3036 = vld [vmem:[%s43] sm:$0xf]
        %v3038 = vsel %vm2882, %v3036, 0
        %v3041 = vsel %vm2886, %v2875, 0
        %3043 = vmatprep.subr.mxu0 0.0
        %3044 = vmatpush1.msra.mxu0 %v3041
        %3045 = vmatprep.subr.mxu0 0.0
        %3046 = vmatpush1.msra.mxu0 0.0
        %3047 = vmatprep.subr.mxu0 0.0
        %3048 = vmatpush1.msra.mxu0 0.0
        %3049 = vmatprep.subr.mxu0 0.0
        %3050 = vmatpush1.msra.mxu0 0.0
        %3051 = vmatprep.subr.mxu0 0.0
        %3052 = vmatpush1.msra.mxu0 0.0
        %3053 = vmatprep.subr.mxu0 0.0
        %3054 = vmatpush1.msra.mxu0 0.0
        %3055 = vmatprep.subr.mxu0 0.0
        %3056 = vmatpush1.msra.mxu0 0.0
        %3057 = vmatprep.subr.mxu0 0.0
        %3058 = vmatpush1.msra.mxu0 0.0
        %3059 = vmatprep.subr.mxu0 0.0
        %3060 = vmatpush1.msra.mxu0 0.0
        %3061 = vmatprep.subr.mxu0 0.0
        %3062 = vmatpush1.msra.mxu0 0.0
        %3063 = vmatprep.subr.mxu0 0.0
        %3064 = vmatpush1.msra.mxu0 0.0
        %3065 = vmatprep.subr.mxu0 0.0
        %3066 = vmatpush1.msra.mxu0 0.0
        %3067 = vmatprep.subr.mxu0 0.0
        %3068 = vmatpush1.msra.mxu0 0.0
        %3069 = vmatprep.subr.mxu0 0.0
        %3070 = vmatpush1.msra.mxu0 0.0
        %3071 = vmatprep.subr.mxu0 0.0
        %3072 = vmatpush1.msra.mxu0 0.0
        %3073 = vmatprep.subr.mxu0 0.0
        %3074 = vmatpush1.msra.mxu0 0.0
        %3075 = vmatprep.subr.mxu0 0.0
        %3076 = vmatpush1.msra.mxu0 0.0
        %3077 = vmatprep.subr.mxu0 0.0
        %3078 = vmatpush1.msra.mxu0 0.0
        %3079 = vmatprep.subr.mxu0 0.0
        %3080 = vmatpush1.msra.mxu0 0.0
        %3081 = vmatprep.subr.mxu0 0.0
        %3082 = vmatpush1.msra.mxu0 0.0
        %3083 = vmatprep.subr.mxu0 0.0
        %3084 = vmatpush1.msra.mxu0 0.0
        %3085 = vmatprep.subr.mxu0 0.0
        %3086 = vmatpush1.msra.mxu0 0.0
        %3087 = vmatprep.subr.mxu0 0.0
        %3088 = vmatpush1.msra.mxu0 0.0
        %3089 = vmatprep.subr.mxu0 0.0
        %3090 = vmatpush1.msra.mxu0 0.0
        %3091 = vmatprep.subr.mxu0 0.0
        %3092 = vmatpush1.msra.mxu0 0.0
        %3093 = vmatprep.subr.mxu0 0.0
        %3094 = vmatpush1.msra.mxu0 0.0
        %3095 = vmatprep.subr.mxu0 0.0
        %3096 = vmatpush1.msra.mxu0 0.0
        %3097 = vmatprep.subr.mxu0 0.0
        %3098 = vmatpush1.msra.mxu0 0.0
        %3099 = vmatprep.subr.mxu0 0.0
        %3100 = vmatpush1.msra.mxu0 0.0
        %3101 = vmatprep.subr.mxu0 0.0
        %3102 = vmatpush1.msra.mxu0 0.0
        %3103 = vmatprep.subr.mxu0 0.0
        %3104 = vmatpush1.msra.mxu0 0.0
        %3105 = vmatprep.subr.mxu0 0.0
        %3106 = vmatpush1.msra.mxu0 0.0
        %3107 = vmatprep.mubr.f32.mxu0 0.0
        %3108 = vmatmul.mubr.f32.gmra.mrb[0].mxu0 %v3038
        %v3109 = vpop.f32.mrb[0].mxu0
        %v3110 = vadd.f32 0.0, %v3109
        %v3111 = vpop.f32.mrb[0].mxu0
        %3112 = vdwg.mxu0
        %v3113 = vadd.f32 %v3033, %v3110
        %v3114 = vld [vmem:[%s45] sm:$0x1]
        %v3116 = vlaneseq
        %v3117 = vshrl.u32 %v3116, 7
        %v3118 = vsub.s32 0, %v3117
        %v3119 = vrot.slane %v3114, %v3118
        %v3121 = vadd.f32 %v3113, %v3119
        %v3122 = vmax.f32 %v3121, 0.0
        %v3123 = vpack.c.bf16 %v3122, %v3122
        %v3124 = vld [vmem:[%s47] sm:$0xf]
        %v3125 = vld [vmem:[%s47 + $0x4] sm:$0xf]
        %v3126 = vld [vmem:[%s47 + $0x8] sm:$0xf]
        %v3127 = vld [vmem:[%s47 + $0xc] sm:$0xf]
        %v3128 = vld [vmem:[%s47 + $0x10] sm:$0xf]
        %v3129 = vld [vmem:[%s47 + $0x14] sm:$0xf]
        %v3130 = vld [vmem:[%s47 + $0x18] sm:$0xf]
        %v3131 = vld [vmem:[%s47 + $0x1c] sm:$0xf]
        %v3132 = vld [vmem:[%s47 + $0x20] sm:$0xf]
        %v3133 = vld [vmem:[%s47 + $0x24] sm:$0xf]
        %v3134 = vld [vmem:[%s47 + $0x28] sm:$0xf]
        %v3135 = vld [vmem:[%s47 + $0x2c] sm:$0xf]
        %v3136 = vld [vmem:[%s47 + $0x30] sm:$0xf]
        %v3137 = vld [vmem:[%s47 + $0x34] sm:$0xf]
        %v3138 = vld [vmem:[%s47 + $0x38] sm:$0xf]
        %v3139 = vld [vmem:[%s47 + $0x3c] sm:$0xf]
        %v3156 = vunpack.c.l.b16 %v3124
        %v3157 = vunpack.c.l.b16 %v3125
        %v3158 = vunpack.c.l.b16 %v3126
        %v3159 = vunpack.c.l.b16 %v3127
        %v3160 = vunpack.c.l.b16 %v3128
        %v3161 = vunpack.c.l.b16 %v3129
        %v3162 = vunpack.c.l.b16 %v3130
        %v3163 = vunpack.c.l.b16 %v3131
        %v3164 = vunpack.c.l.b16 %v3132
        %v3165 = vunpack.c.l.b16 %v3133
        %v3166 = vunpack.c.l.b16 %v3134
        %v3167 = vunpack.c.l.b16 %v3135
        %v3168 = vunpack.c.l.b16 %v3136
        %v3169 = vunpack.c.l.b16 %v3137
        %v3170 = vunpack.c.l.b16 %v3138
        %v3171 = vunpack.c.l.b16 %v3139
        %v3172 = vpack.c.b16 %v3157, %v3156
        %v3173 = vpack.c.b16 %v3159, %v3158
        %v3174 = vpack.c.b16 %v3161, %v3160
        %v3175 = vpack.c.b16 %v3163, %v3162
        %v3176 = vpack.c.b16 %v3165, %v3164
        %v3177 = vpack.c.b16 %v3167, %v3166
        %v3178 = vpack.c.b16 %v3169, %v3168
        %v3179 = vpack.c.b16 %v3171, %v3170
        %3188 = vmatprep.subr.bf16.mxu0 0
        %3189 = vmatpush1.bf16.msra.mxu0 %v3172
        %3190 = vmatprep.subr.bf16.mxu0 0
        %3191 = vmatpush1.bf16.msra.mxu0 %v3173
        %3192 = vmatprep.subr.bf16.mxu0 0
        %3193 = vmatpush1.bf16.msra.mxu0 %v3174
        %3194 = vmatprep.subr.bf16.mxu0 0
        %3195 = vmatpush1.bf16.msra.mxu0 %v3175
        %3196 = vmatprep.subr.bf16.mxu0 0
        %3197 = vmatpush1.bf16.msra.mxu0 %v3176
        %3198 = vmatprep.subr.bf16.mxu0 0
        %3199 = vmatpush1.bf16.msra.mxu0 %v3177
        %3200 = vmatprep.subr.bf16.mxu0 0
        %3201 = vmatpush1.bf16.msra.mxu0 %v3178
        %3202 = vmatprep.subr.bf16.mxu0 0
        %3203 = vmatpush1.bf16.msra.mxu0 %v3179
        %3204 = vmatprep.subr.bf16.mxu0 0
        %3205 = vmatpush1.bf16.msra.mxu0 0
        %3206 = vmatprep.subr.bf16.mxu0 0
        %3207 = vmatpush1.bf16.msra.mxu0 0
        %3208 = vmatprep.subr.bf16.mxu0 0
        %3209 = vmatpush1.bf16.msra.mxu0 0
        %3210 = vmatprep.subr.bf16.mxu0 0
        %3211 = vmatpush1.bf16.msra.mxu0 0
        %3212 = vmatprep.subr.bf16.mxu0 0
        %3213 = vmatpush1.bf16.msra.mxu0 0
        %3214 = vmatprep.subr.bf16.mxu0 0
        %3215 = vmatpush1.bf16.msra.mxu0 0
        %3216 = vmatprep.subr.bf16.mxu0 0
        %3217 = vmatpush1.bf16.msra.mxu0 0
        %3218 = vmatprep.subr.bf16.mxu0 0
        %3219 = vmatpush1.bf16.msra.mxu0 0
        %3220 = vmatprep.mubr.bf16.mxu0 0
        %3221 = vmatmul.mubr.bf16.gmra.mrb[0].mxu0 %v3123
        %v3222 = vpop.f32.mrb[0].mxu0
        %v3223 = vadd.f32 0.0, %v3222
        %v3224 = vpop.f32.mrb[0].mxu0
        %v3225 = vpop.f32.mrb[0].mxu0
        %v3226 = vpop.f32.mrb[0].mxu0
        %3227 = vdwg.mxu0
        %v3228 = vld [vmem:[%s49] sm:$0xf]
        %v3229 = vld [vmem:[%s49 + $0x4] sm:$0xf]
        %v3230 = vld [vmem:[%s49 + $0x8] sm:$0xf]
        %v3231 = vld [vmem:[%s49 + $0xc] sm:$0xf]
        %v3232 = vld [vmem:[%s49 + $0x10] sm:$0xf]
        %v3233 = vld [vmem:[%s49 + $0x14] sm:$0xf]
        %v3234 = vld [vmem:[%s49 + $0x18] sm:$0xf]
        %v3235 = vld [vmem:[%s49 + $0x1c] sm:$0xf]
        %v3236 = vld [vmem:[%s49 + $0x20] sm:$0xf]
        %v3237 = vld [vmem:[%s49 + $0x24] sm:$0xf]
        %v3238 = vld [vmem:[%s49 + $0x28] sm:$0xf]
        %v3239 = vld [vmem:[%s49 + $0x2c] sm:$0xf]
        %v3240 = vld [vmem:[%s49 + $0x30] sm:$0xf]
        %v3241 = vld [vmem:[%s49 + $0x34] sm:$0xf]
        %v3242 = vld [vmem:[%s49 + $0x38] sm:$0xf]
        %v3243 = vld [vmem:[%s49 + $0x3c] sm:$0xf]
        %v3260 = vunpack.c.l.b16 %v3228
        %v3261 = vunpack.c.l.b16 %v3229
        %v3262 = vunpack.c.l.b16 %v3230
        %v3263 = vunpack.c.l.b16 %v3231
        %v3264 = vunpack.c.l.b16 %v3232
        %v3265 = vunpack.c.l.b16 %v3233
        %v3266 = vunpack.c.l.b16 %v3234
        %v3267 = vunpack.c.l.b16 %v3235
        %v3268 = vunpack.c.l.b16 %v3236
        %v3269 = vunpack.c.l.b16 %v3237
        %v3270 = vunpack.c.l.b16 %v3238
        %v3271 = vunpack.c.l.b16 %v3239
        %v3272 = vunpack.c.l.b16 %v3240
        %v3273 = vunpack.c.l.b16 %v3241
        %v3274 = vunpack.c.l.b16 %v3242
        %v3275 = vunpack.c.l.b16 %v3243
        %v3276 = vpack.c.b16 %v3261, %v3260
        %v3277 = vpack.c.b16 %v3263, %v3262
        %v3278 = vpack.c.b16 %v3265, %v3264
        %v3279 = vpack.c.b16 %v3267, %v3266
        %v3280 = vpack.c.b16 %v3269, %v3268
        %v3281 = vpack.c.b16 %v3271, %v3270
        %v3282 = vpack.c.b16 %v3273, %v3272
        %v3283 = vpack.c.b16 %v3275, %v3274
        %3292 = vmatprep.subr.bf16.mxu0 0
        %3293 = vmatpush1.bf16.msra.mxu0 %v3276
        %3294 = vmatprep.subr.bf16.mxu0 0
        %3295 = vmatpush1.bf16.msra.mxu0 %v3277
        %3296 = vmatprep.subr.bf16.mxu0 0
        %3297 = vmatpush1.bf16.msra.mxu0 %v3278
        %3298 = vmatprep.subr.bf16.mxu0 0
        %3299 = vmatpush1.bf16.msra.mxu0 %v3279
        %3300 = vmatprep.subr.bf16.mxu0 0
        %3301 = vmatpush1.bf16.msra.mxu0 %v3280
        %3302 = vmatprep.subr.bf16.mxu0 0
        %3303 = vmatpush1.bf16.msra.mxu0 %v3281
        %3304 = vmatprep.subr.bf16.mxu0 0
        %3305 = vmatpush1.bf16.msra.mxu0 %v3282
        %3306 = vmatprep.subr.bf16.mxu0 0
        %3307 = vmatpush1.bf16.msra.mxu0 %v3283
        %3308 = vmatprep.subr.bf16.mxu0 0
        %3309 = vmatpush1.bf16.msra.mxu0 0
        %3310 = vmatprep.subr.bf16.mxu0 0
        %3311 = vmatpush1.bf16.msra.mxu0 0
        %3312 = vmatprep.subr.bf16.mxu0 0
        %3313 = vmatpush1.bf16.msra.mxu0 0
        %3314 = vmatprep.subr.bf16.mxu0 0
        %3315 = vmatpush1.bf16.msra.mxu0 0
        %3316 = vmatprep.subr.bf16.mxu0 0
        %3317 = vmatpush1.bf16.msra.mxu0 0
        %3318 = vmatprep.subr.bf16.mxu0 0
        %3319 = vmatpush1.bf16.msra.mxu0 0
        %3320 = vmatprep.subr.bf16.mxu0 0
        %3321 = vmatpush1.bf16.msra.mxu0 0
        %3322 = vmatprep.subr.bf16.mxu0 0
        %3323 = vmatpush1.bf16.msra.mxu0 0
        %3324 = vmatprep.mubr.bf16.mxu0 0
        %3325 = vmatmul.mubr.bf16.gmra.mrb[0].mxu0 %v3123
        %v3326 = vpop.f32.mrb[0].mxu0
        %v3327 = vadd.f32 0.0, %v3326
        %v3328 = vpop.f32.mrb[0].mxu0
        %v3329 = vpop.f32.mrb[0].mxu0
        %v3330 = vpop.f32.mrb[0].mxu0
        %3331 = vdwg.mxu0
        %v3332 = vld [vmem:[%s51] sm:$0xf]
        %v3333 = vld [vmem:[%s51 + $0x4] sm:$0xf]
        %v3334 = vld [vmem:[%s51 + $0x8] sm:$0xf]
        %v3335 = vld [vmem:[%s51 + $0xc] sm:$0xf]
        %v3336 = vld [vmem:[%s51 + $0x10] sm:$0xf]
        %v3337 = vld [vmem:[%s51 + $0x14] sm:$0xf]
        %v3338 = vld [vmem:[%s51 + $0x18] sm:$0xf]
        %v3339 = vld [vmem:[%s51 + $0x1c] sm:$0xf]
        %v3340 = vld [vmem:[%s51 + $0x20] sm:$0xf]
        %v3341 = vld [vmem:[%s51 + $0x24] sm:$0xf]
        %v3342 = vld [vmem:[%s51 + $0x28] sm:$0xf]
        %v3343 = vld [vmem:[%s51 + $0x2c] sm:$0xf]
        %v3344 = vld [vmem:[%s51 + $0x30] sm:$0xf]
        %v3345 = vld [vmem:[%s51 + $0x34] sm:$0xf]
        %v3346 = vld [vmem:[%s51 + $0x38] sm:$0xf]
        %v3347 = vld [vmem:[%s51 + $0x3c] sm:$0xf]
        %v3364 = vunpack.c.l.b16 %v3332
        %v3365 = vunpack.c.l.b16 %v3333
        %v3366 = vunpack.c.l.b16 %v3334
        %v3367 = vunpack.c.l.b16 %v3335
        %v3368 = vunpack.c.l.b16 %v3336
        %v3369 = vunpack.c.l.b16 %v3337
        %v3370 = vunpack.c.l.b16 %v3338
        %v3371 = vunpack.c.l.b16 %v3339
        %v3372 = vunpack.c.l.b16 %v3340
        %v3373 = vunpack.c.l.b16 %v3341
        %v3374 = vunpack.c.l.b16 %v3342
        %v3375 = vunpack.c.l.b16 %v3343
        %v3376 = vunpack.c.l.b16 %v3344
        %v3377 = vunpack.c.l.b16 %v3345
        %v3378 = vunpack.c.l.b16 %v3346
        %v3379 = vunpack.c.l.b16 %v3347
        %v3380 = vpack.c.b16 %v3365, %v3364
        %v3381 = vpack.c.b16 %v3367, %v3366
        %v3382 = vpack.c.b16 %v3369, %v3368
        %v3383 = vpack.c.b16 %v3371, %v3370
        %v3384 = vpack.c.b16 %v3373, %v3372
        %v3385 = vpack.c.b16 %v3375, %v3374
        %v3386 = vpack.c.b16 %v3377, %v3376
        %v3387 = vpack.c.b16 %v3379, %v3378
        %3396 = vmatprep.subr.bf16.mxu0 0
        %3397 = vmatpush1.bf16.msra.mxu0 %v3380
        %3398 = vmatprep.subr.bf16.mxu0 0
        %3399 = vmatpush1.bf16.msra.mxu0 %v3381
        %3400 = vmatprep.subr.bf16.mxu0 0
        %3401 = vmatpush1.bf16.msra.mxu0 %v3382
        %3402 = vmatprep.subr.bf16.mxu0 0
        %3403 = vmatpush1.bf16.msra.mxu0 %v3383
        %3404 = vmatprep.subr.bf16.mxu0 0
        %3405 = vmatpush1.bf16.msra.mxu0 %v3384
        %3406 = vmatprep.subr.bf16.mxu0 0
        %3407 = vmatpush1.bf16.msra.mxu0 %v3385
        %3408 = vmatprep.subr.bf16.mxu0 0
        %3409 = vmatpush1.bf16.msra.mxu0 %v3386
        %3410 = vmatprep.subr.bf16.mxu0 0
        %3411 = vmatpush1.bf16.msra.mxu0 %v3387
        %3412 = vmatprep.subr.bf16.mxu0 0
        %3413 = vmatpush1.bf16.msra.mxu0 0
        %3414 = vmatprep.subr.bf16.mxu0 0
        %3415 = vmatpush1.bf16.msra.mxu0 0
        %3416 = vmatprep.subr.bf16.mxu0 0
        %3417 = vmatpush1.bf16.msra.mxu0 0
        %3418 = vmatprep.subr.bf16.mxu0 0
        %3419 = vmatpush1.bf16.msra.mxu0 0
        %3420 = vmatprep.subr.bf16.mxu0 0
        %3421 = vmatpush1.bf16.msra.mxu0 0
        %3422 = vmatprep.subr.bf16.mxu0 0
        %3423 = vmatpush1.bf16.msra.mxu0 0
        %3424 = vmatprep.subr.bf16.mxu0 0
        %3425 = vmatpush1.bf16.msra.mxu0 0
        %3426 = vmatprep.subr.bf16.mxu0 0
        %3427 = vmatpush1.bf16.msra.mxu0 0
        %3428 = vmatprep.mubr.bf16.mxu0 0
        %3429 = vmatmul.mubr.bf16.gmra.mrb[0].mxu0 %v3123
        %v3430 = vpop.f32.mrb[0].mxu0
        %v3431 = vadd.f32 0.0, %v3430
        %v3432 = vpop.f32.mrb[0].mxu0
        %v3433 = vpop.f32.mrb[0].mxu0
        %v3434 = vpop.f32.mrb[0].mxu0
        %3435 = vdwg.mxu0
        %v3436 = vld [vmem:[%s53] sm:$0xff]
        %v3437 = vld [vmem:[%s55] sm:$0xff]
        %v3439 = vsel %vm2326, %v3437, 0
        %v3442 = vsel %vm2330, %v3327, 0
        %3444 = vmatprep.subr.mxu0 0.0
        %3445 = vmatpush1.msra.mxu0 %v3442
        %3446 = vmatprep.subr.mxu0 0.0
        %3447 = vmatpush1.msra.mxu0 0.0
        %3448 = vmatprep.subr.mxu0 0.0
        %3449 = vmatpush1.msra.mxu0 0.0
        %3450 = vmatprep.subr.mxu0 0.0
        %3451 = vmatpush1.msra.mxu0 0.0
        %3452 = vmatprep.subr.mxu0 0.0
        %3453 = vmatpush1.msra.mxu0 0.0
        %3454 = vmatprep.subr.mxu0 0.0
        %3455 = vmatpush1.msra.mxu0 0.0
        %3456 = vmatprep.subr.mxu0 0.0
        %3457 = vmatpush1.msra.mxu0 0.0
        %3458 = vmatprep.subr.mxu0 0.0
        %3459 = vmatpush1.msra.mxu0 0.0
        %3460 = vmatprep.subr.mxu0 0.0
        %3461 = vmatpush1.msra.mxu0 0.0
        %3462 = vmatprep.subr.mxu0 0.0
        %3463 = vmatpush1.msra.mxu0 0.0
        %3464 = vmatprep.subr.mxu0 0.0
        %3465 = vmatpush1.msra.mxu0 0.0
        %3466 = vmatprep.subr.mxu0 0.0
        %3467 = vmatpush1.msra.mxu0 0.0
        %3468 = vmatprep.subr.mxu0 0.0
        %3469 = vmatpush1.msra.mxu0 0.0
        %3470 = vmatprep.subr.mxu0 0.0
        %3471 = vmatpush1.msra.mxu0 0.0
        %3472 = vmatprep.subr.mxu0 0.0
        %3473 = vmatpush1.msra.mxu0 0.0
        %3474 = vmatprep.subr.mxu0 0.0
        %3475 = vmatpush1.msra.mxu0 0.0
        %3476 = vmatprep.subr.mxu0 0.0
        %3477 = vmatpush1.msra.mxu0 0.0
        %3478 = vmatprep.subr.mxu0 0.0
        %3479 = vmatpush1.msra.mxu0 0.0
        %3480 = vmatprep.subr.mxu0 0.0
        %3481 = vmatpush1.msra.mxu0 0.0
        %3482 = vmatprep.subr.mxu0 0.0
        %3483 = vmatpush1.msra.mxu0 0.0
        %3484 = vmatprep.subr.mxu0 0.0
        %3485 = vmatpush1.msra.mxu0 0.0
        %3486 = vmatprep.subr.mxu0 0.0
        %3487 = vmatpush1.msra.mxu0 0.0
        %3488 = vmatprep.subr.mxu0 0.0
        %3489 = vmatpush1.msra.mxu0 0.0
        %3490 = vmatprep.subr.mxu0 0.0
        %3491 = vmatpush1.msra.mxu0 0.0
        %3492 = vmatprep.subr.mxu0 0.0
        %3493 = vmatpush1.msra.mxu0 0.0
        %3494 = vmatprep.subr.mxu0 0.0
        %3495 = vmatpush1.msra.mxu0 0.0
        %3496 = vmatprep.subr.mxu0 0.0
        %3497 = vmatpush1.msra.mxu0 0.0
        %3498 = vmatprep.subr.mxu0 0.0
        %3499 = vmatpush1.msra.mxu0 0.0
        %3500 = vmatprep.subr.mxu0 0.0
        %3501 = vmatpush1.msra.mxu0 0.0
        %3502 = vmatprep.subr.mxu0 0.0
        %3503 = vmatpush1.msra.mxu0 0.0
        %3504 = vmatprep.subr.mxu0 0.0
        %3505 = vmatpush1.msra.mxu0 0.0
        %3506 = vmatprep.subr.mxu0 0.0
        %3507 = vmatpush1.msra.mxu0 0.0
        %3508 = vmatprep.mubr.f32.mxu0 0.0
        %3509 = vmatmul.mubr.f32.gmra.mrb[0].mxu0 %v3439
        %v3510 = vpop.f32.mrb[0].mxu0
        %v3511 = vadd.f32 0.0, %v3510
        %v3512 = vpop.f32.mrb[0].mxu0
        %3513 = vdwg.mxu0
        %v3515 = vsel %vm2326, %v3436, 0
        %v3518 = vsel %vm2330, %v3223, 0
        %3520 = vmatprep.subr.mxu0 0.0
        %3521 = vmatpush1.msra.mxu0 %v3518
        %3522 = vmatprep.subr.mxu0 0.0
        %3523 = vmatpush1.msra.mxu0 0.0
        %3524 = vmatprep.subr.mxu0 0.0
        %3525 = vmatpush1.msra.mxu0 0.0
        %3526 = vmatprep.subr.mxu0 0.0
        %3527 = vmatpush1.msra.mxu0 0.0
        %3528 = vmatprep.subr.mxu0 0.0
        %3529 = vmatpush1.msra.mxu0 0.0
        %3530 = vmatprep.subr.mxu0 0.0
        %3531 = vmatpush1.msra.mxu0 0.0
        %3532 = vmatprep.subr.mxu0 0.0
        %3533 = vmatpush1.msra.mxu0 0.0
        %3534 = vmatprep.subr.mxu0 0.0
        %3535 = vmatpush1.msra.mxu0 0.0
        %3536 = vmatprep.subr.mxu0 0.0
        %3537 = vmatpush1.msra.mxu0 0.0
        %3538 = vmatprep.subr.mxu0 0.0
        %3539 = vmatpush1.msra.mxu0 0.0
        %3540 = vmatprep.subr.mxu0 0.0
        %3541 = vmatpush1.msra.mxu0 0.0
        %3542 = vmatprep.subr.mxu0 0.0
        %3543 = vmatpush1.msra.mxu0 0.0
        %3544 = vmatprep.subr.mxu0 0.0
        %3545 = vmatpush1.msra.mxu0 0.0
        %3546 = vmatprep.subr.mxu0 0.0
        %3547 = vmatpush1.msra.mxu0 0.0
        %3548 = vmatprep.subr.mxu0 0.0
        %3549 = vmatpush1.msra.mxu0 0.0
        %3550 = vmatprep.subr.mxu0 0.0
        %3551 = vmatpush1.msra.mxu0 0.0
        %3552 = vmatprep.subr.mxu0 0.0
        %3553 = vmatpush1.msra.mxu0 0.0
        %3554 = vmatprep.subr.mxu0 0.0
        %3555 = vmatpush1.msra.mxu0 0.0
        %3556 = vmatprep.subr.mxu0 0.0
        %3557 = vmatpush1.msra.mxu0 0.0
        %3558 = vmatprep.subr.mxu0 0.0
        %3559 = vmatpush1.msra.mxu0 0.0
        %3560 = vmatprep.subr.mxu0 0.0
        %3561 = vmatpush1.msra.mxu0 0.0
        %3562 = vmatprep.subr.mxu0 0.0
        %3563 = vmatpush1.msra.mxu0 0.0
        %3564 = vmatprep.subr.mxu0 0.0
        %3565 = vmatpush1.msra.mxu0 0.0
        %3566 = vmatprep.subr.mxu0 0.0
        %3567 = vmatpush1.msra.mxu0 0.0
        %3568 = vmatprep.subr.mxu0 0.0
        %3569 = vmatpush1.msra.mxu0 0.0
        %3570 = vmatprep.subr.mxu0 0.0
        %3571 = vmatpush1.msra.mxu0 0.0
        %3572 = vmatprep.subr.mxu0 0.0
        %3573 = vmatpush1.msra.mxu0 0.0
        %3574 = vmatprep.subr.mxu0 0.0
        %3575 = vmatpush1.msra.mxu0 0.0
        %3576 = vmatprep.subr.mxu0 0.0
        %3577 = vmatpush1.msra.mxu0 0.0
        %3578 = vmatprep.subr.mxu0 0.0
        %3579 = vmatpush1.msra.mxu0 0.0
        %3580 = vmatprep.subr.mxu0 0.0
        %3581 = vmatpush1.msra.mxu0 0.0
        %3582 = vmatprep.subr.mxu0 0.0
        %3583 = vmatpush1.msra.mxu0 0.0
        %3584 = vmatprep.mubr.f32.mxu0 0.0
        %3585 = vmatmul.mubr.f32.gmra.mrb[0].mxu0 %v3515
        %v3586 = vpop.f32.mrb[0].mxu0
        %v3587 = vadd.f32 %v3511, %v3586
        %v3588 = vpop.f32.mrb[0].mxu0
        %3589 = vdwg.mxu0
        %v3590 = vld [vmem:[%s57] sm:$0xff]
        %v3592 = vsel %vm2326, %v3590, 0
        %v3595 = vsel %vm2330, %v3431, 0
        %3597 = vmatprep.subr.mxu0 0.0
        %3598 = vmatpush1.msra.mxu0 %v3595
        %3599 = vmatprep.subr.mxu0 0.0
        %3600 = vmatpush1.msra.mxu0 0.0
        %3601 = vmatprep.subr.mxu0 0.0
        %3602 = vmatpush1.msra.mxu0 0.0
        %3603 = vmatprep.subr.mxu0 0.0
        %3604 = vmatpush1.msra.mxu0 0.0
        %3605 = vmatprep.subr.mxu0 0.0
        %3606 = vmatpush1.msra.mxu0 0.0
        %3607 = vmatprep.subr.mxu0 0.0
        %3608 = vmatpush1.msra.mxu0 0.0
        %3609 = vmatprep.subr.mxu0 0.0
        %3610 = vmatpush1.msra.mxu0 0.0
        %3611 = vmatprep.subr.mxu0 0.0
        %3612 = vmatpush1.msra.mxu0 0.0
        %3613 = vmatprep.subr.mxu0 0.0
        %3614 = vmatpush1.msra.mxu0 0.0
        %3615 = vmatprep.subr.mxu0 0.0
        %3616 = vmatpush1.msra.mxu0 0.0
        %3617 = vmatprep.subr.mxu0 0.0
        %3618 = vmatpush1.msra.mxu0 0.0
        %3619 = vmatprep.subr.mxu0 0.0
        %3620 = vmatpush1.msra.mxu0 0.0
        %3621 = vmatprep.subr.mxu0 0.0
        %3622 = vmatpush1.msra.mxu0 0.0
        %3623 = vmatprep.subr.mxu0 0.0
        %3624 = vmatpush1.msra.mxu0 0.0
        %3625 = vmatprep.subr.mxu0 0.0
        %3626 = vmatpush1.msra.mxu0 0.0
        %3627 = vmatprep.subr.mxu0 0.0
        %3628 = vmatpush1.msra.mxu0 0.0
        %3629 = vmatprep.subr.mxu0 0.0
        %3630 = vmatpush1.msra.mxu0 0.0
        %3631 = vmatprep.subr.mxu0 0.0
        %3632 = vmatpush1.msra.mxu0 0.0
        %3633 = vmatprep.subr.mxu0 0.0
        %3634 = vmatpush1.msra.mxu0 0.0
        %3635 = vmatprep.subr.mxu0 0.0
        %3636 = vmatpush1.msra.mxu0 0.0
        %3637 = vmatprep.subr.mxu0 0.0
        %3638 = vmatpush1.msra.mxu0 0.0
        %3639 = vmatprep.subr.mxu0 0.0
        %3640 = vmatpush1.msra.mxu0 0.0
        %3641 = vmatprep.subr.mxu0 0.0
        %3642 = vmatpush1.msra.mxu0 0.0
        %3643 = vmatprep.subr.mxu0 0.0
        %3644 = vmatpush1.msra.mxu0 0.0
        %3645 = vmatprep.subr.mxu0 0.0
        %3646 = vmatpush1.msra.mxu0 0.0
        %3647 = vmatprep.subr.mxu0 0.0
        %3648 = vmatpush1.msra.mxu0 0.0
        %3649 = vmatprep.subr.mxu0 0.0
        %3650 = vmatpush1.msra.mxu0 0.0
        %3651 = vmatprep.subr.mxu0 0.0
        %3652 = vmatpush1.msra.mxu0 0.0
        %3653 = vmatprep.subr.mxu0 0.0
        %3654 = vmatpush1.msra.mxu0 0.0
        %3655 = vmatprep.subr.mxu0 0.0
        %3656 = vmatpush1.msra.mxu0 0.0
        %3657 = vmatprep.subr.mxu0 0.0
        %3658 = vmatpush1.msra.mxu0 0.0
        %3659 = vmatprep.subr.mxu0 0.0
        %3660 = vmatpush1.msra.mxu0 0.0
        %3661 = vmatprep.mubr.f32.mxu0 0.0
        %3662 = vmatmul.mubr.f32.gmra.mrb[0].mxu0 %v3592
        %v3663 = vpop.f32.mrb[0].mxu0
        %v3664 = vadd.f32 0.0, %v3663
        %v3665 = vpop.f32.mrb[0].mxu0
        %3666 = vdwg.mxu0
        %v3667 = vadd.f32 %v3587, %v3664
        %v3668 = vld [vmem:[%s59] sm:$0x1]
        %v3670 = vlaneseq
        %v3671 = vshrl.u32 %v3670, 7
        %v3672 = vsub.s32 0, %v3671
        %v3673 = vrot.slane %v3668, %v3672
        %v3675 = vadd.f32 %v3667, %v3673
        %v3676 = vmax.f32 %v3675, 0.0
        %v3677 = vpack.c.bf16 %v3676, %v3676
        %v3678 = vld [vmem:[%s61] sm:$0xf]
        %v3679 = vld [vmem:[%s61 + $0x4] sm:$0xf]
        %v3680 = vld [vmem:[%s61 + $0x8] sm:$0xf]
        %v3681 = vld [vmem:[%s61 + $0xc] sm:$0xf]
        %v3682 = vld [vmem:[%s61 + $0x10] sm:$0xf]
        %v3683 = vld [vmem:[%s61 + $0x14] sm:$0xf]
        %v3684 = vld [vmem:[%s61 + $0x18] sm:$0xf]
        %v3685 = vld [vmem:[%s61 + $0x1c] sm:$0xf]
        %v3686 = vld [vmem:[%s61 + $0x20] sm:$0xf]
        %v3687 = vld [vmem:[%s61 + $0x24] sm:$0xf]
        %v3688 = vld [vmem:[%s61 + $0x28] sm:$0xf]
        %v3689 = vld [vmem:[%s61 + $0x2c] sm:$0xf]
        %v3690 = vld [vmem:[%s61 + $0x30] sm:$0xf]
        %v3691 = vld [vmem:[%s61 + $0x34] sm:$0xf]
        %v3692 = vld [vmem:[%s61 + $0x38] sm:$0xf]
        %v3693 = vld [vmem:[%s61 + $0x3c] sm:$0xf]
        %v3710 = vunpack.c.l.b16 %v3678
        %v3711 = vunpack.c.l.b16 %v3679
        %v3712 = vunpack.c.l.b16 %v3680
        %v3713 = vunpack.c.l.b16 %v3681
        %v3714 = vunpack.c.l.b16 %v3682
        %v3715 = vunpack.c.l.b16 %v3683
        %v3716 = vunpack.c.l.b16 %v3684
        %v3717 = vunpack.c.l.b16 %v3685
        %v3718 = vunpack.c.l.b16 %v3686
        %v3719 = vunpack.c.l.b16 %v3687
        %v3720 = vunpack.c.l.b16 %v3688
        %v3721 = vunpack.c.l.b16 %v3689
        %v3722 = vunpack.c.l.b16 %v3690
        %v3723 = vunpack.c.l.b16 %v3691
        %v3724 = vunpack.c.l.b16 %v3692
        %v3725 = vunpack.c.l.b16 %v3693
        %v3726 = vpack.c.b16 %v3711, %v3710
        %v3727 = vpack.c.b16 %v3713, %v3712
        %v3728 = vpack.c.b16 %v3715, %v3714
        %v3729 = vpack.c.b16 %v3717, %v3716
        %v3730 = vpack.c.b16 %v3719, %v3718
        %v3731 = vpack.c.b16 %v3721, %v3720
        %v3732 = vpack.c.b16 %v3723, %v3722
        %v3733 = vpack.c.b16 %v3725, %v3724
        %3742 = vmatprep.subr.bf16.mxu0 0
        %3743 = vmatpush1.bf16.msra.mxu0 %v3726
        %3744 = vmatprep.subr.bf16.mxu0 0
        %3745 = vmatpush1.bf16.msra.mxu0 %v3727
        %3746 = vmatprep.subr.bf16.mxu0 0
        %3747 = vmatpush1.bf16.msra.mxu0 %v3728
        %3748 = vmatprep.subr.bf16.mxu0 0
        %3749 = vmatpush1.bf16.msra.mxu0 %v3729
        %3750 = vmatprep.subr.bf16.mxu0 0
        %3751 = vmatpush1.bf16.msra.mxu0 %v3730
        %3752 = vmatprep.subr.bf16.mxu0 0
        %3753 = vmatpush1.bf16.msra.mxu0 %v3731
        %3754 = vmatprep.subr.bf16.mxu0 0
        %3755 = vmatpush1.bf16.msra.mxu0 %v3732
        %3756 = vmatprep.subr.bf16.mxu0 0
        %3757 = vmatpush1.bf16.msra.mxu0 %v3733
        %3758 = vmatprep.subr.bf16.mxu0 0
        %3759 = vmatpush1.bf16.msra.mxu0 0
        %3760 = vmatprep.subr.bf16.mxu0 0
        %3761 = vmatpush1.bf16.msra.mxu0 0
        %3762 = vmatprep.subr.bf16.mxu0 0
        %3763 = vmatpush1.bf16.msra.mxu0 0
        %3764 = vmatprep.subr.bf16.mxu0 0
        %3765 = vmatpush1.bf16.msra.mxu0 0
        %3766 = vmatprep.subr.bf16.mxu0 0
        %3767 = vmatpush1.bf16.msra.mxu0 0
        %3768 = vmatprep.subr.bf16.mxu0 0
        %3769 = vmatpush1.bf16.msra.mxu0 0
        %3770 = vmatprep.subr.bf16.mxu0 0
        %3771 = vmatpush1.bf16.msra.mxu0 0
        %3772 = vmatprep.subr.bf16.mxu0 0
        %3773 = vmatpush1.bf16.msra.mxu0 0
        %3774 = vmatprep.mubr.bf16.mxu0 0
        %3775 = vmatmul.mubr.bf16.gmra.mrb[0].mxu0 %v3677
        %v3776 = vpop.f32.mrb[0].mxu0
        %v3777 = vadd.f32 0.0, %v3776
        %v3778 = vpop.f32.mrb[0].mxu0
        %v3779 = vpop.f32.mrb[0].mxu0
        %v3780 = vpop.f32.mrb[0].mxu0
        %3781 = vdwg.mxu0
        %v3782 = vld [vmem:[%s63] sm:$0xf]
        %v3783 = vld [vmem:[%s63 + $0x4] sm:$0xf]
        %v3784 = vld [vmem:[%s63 + $0x8] sm:$0xf]
        %v3785 = vld [vmem:[%s63 + $0xc] sm:$0xf]
        %v3786 = vld [vmem:[%s63 + $0x10] sm:$0xf]
        %v3787 = vld [vmem:[%s63 + $0x14] sm:$0xf]
        %v3788 = vld [vmem:[%s63 + $0x18] sm:$0xf]
        %v3789 = vld [vmem:[%s63 + $0x1c] sm:$0xf]
        %v3790 = vld [vmem:[%s63 + $0x20] sm:$0xf]
        %v3791 = vld [vmem:[%s63 + $0x24] sm:$0xf]
        %v3792 = vld [vmem:[%s63 + $0x28] sm:$0xf]
        %v3793 = vld [vmem:[%s63 + $0x2c] sm:$0xf]
        %v3794 = vld [vmem:[%s63 + $0x30] sm:$0xf]
        %v3795 = vld [vmem:[%s63 + $0x34] sm:$0xf]
        %v3796 = vld [vmem:[%s63 + $0x38] sm:$0xf]
        %v3797 = vld [vmem:[%s63 + $0x3c] sm:$0xf]
        %v3814 = vunpack.c.l.b16 %v3782
        %v3815 = vunpack.c.l.b16 %v3783
        %v3816 = vunpack.c.l.b16 %v3784
        %v3817 = vunpack.c.l.b16 %v3785
        %v3818 = vunpack.c.l.b16 %v3786
        %v3819 = vunpack.c.l.b16 %v3787
        %v3820 = vunpack.c.l.b16 %v3788
        %v3821 = vunpack.c.l.b16 %v3789
        %v3822 = vunpack.c.l.b16 %v3790
        %v3823 = vunpack.c.l.b16 %v3791
        %v3824 = vunpack.c.l.b16 %v3792
        %v3825 = vunpack.c.l.b16 %v3793
        %v3826 = vunpack.c.l.b16 %v3794
        %v3827 = vunpack.c.l.b16 %v3795
        %v3828 = vunpack.c.l.b16 %v3796
        %v3829 = vunpack.c.l.b16 %v3797
        %v3830 = vpack.c.b16 %v3815, %v3814
        %v3831 = vpack.c.b16 %v3817, %v3816
        %v3832 = vpack.c.b16 %v3819, %v3818
        %v3833 = vpack.c.b16 %v3821, %v3820
        %v3834 = vpack.c.b16 %v3823, %v3822
        %v3835 = vpack.c.b16 %v3825, %v3824
        %v3836 = vpack.c.b16 %v3827, %v3826
        %v3837 = vpack.c.b16 %v3829, %v3828
        %3846 = vmatprep.subr.bf16.mxu0 0
        %3847 = vmatpush1.bf16.msra.mxu0 %v3830
        %3848 = vmatprep.subr.bf16.mxu0 0
        %3849 = vmatpush1.bf16.msra.mxu0 %v3831
        %3850 = vmatprep.subr.bf16.mxu0 0
        %3851 = vmatpush1.bf16.msra.mxu0 %v3832
        %3852 = vmatprep.subr.bf16.mxu0 0
        %3853 = vmatpush1.bf16.msra.mxu0 %v3833
        %3854 = vmatprep.subr.bf16.mxu0 0
        %3855 = vmatpush1.bf16.msra.mxu0 %v3834
        %3856 = vmatprep.subr.bf16.mxu0 0
        %3857 = vmatpush1.bf16.msra.mxu0 %v3835
        %3858 = vmatprep.subr.bf16.mxu0 0
        %3859 = vmatpush1.bf16.msra.mxu0 %v3836
        %3860 = vmatprep.subr.bf16.mxu0 0
        %3861 = vmatpush1.bf16.msra.mxu0 %v3837
        %3862 = vmatprep.subr.bf16.mxu0 0
        %3863 = vmatpush1.bf16.msra.mxu0 0
        %3864 = vmatprep.subr.bf16.mxu0 0
        %3865 = vmatpush1.bf16.msra.mxu0 0
        %3866 = vmatprep.subr.bf16.mxu0 0
        %3867 = vmatpush1.bf16.msra.mxu0 0
        %3868 = vmatprep.subr.bf16.mxu0 0
        %3869 = vmatpush1.bf16.msra.mxu0 0
        %3870 = vmatprep.subr.bf16.mxu0 0
        %3871 = vmatpush1.bf16.msra.mxu0 0
        %3872 = vmatprep.subr.bf16.mxu0 0
        %3873 = vmatpush1.bf16.msra.mxu0 0
        %3874 = vmatprep.subr.bf16.mxu0 0
        %3875 = vmatpush1.bf16.msra.mxu0 0
        %3876 = vmatprep.subr.bf16.mxu0 0
        %3877 = vmatpush1.bf16.msra.mxu0 0
        %3878 = vmatprep.mubr.bf16.mxu0 0
        %3879 = vmatmul.mubr.bf16.gmra.mrb[0].mxu0 %v3677
        %v3880 = vpop.f32.mrb[0].mxu0
        %v3881 = vadd.f32 0.0, %v3880
        %v3882 = vpop.f32.mrb[0].mxu0
        %v3883 = vpop.f32.mrb[0].mxu0
        %v3884 = vpop.f32.mrb[0].mxu0
        %3885 = vdwg.mxu0
        %v3886 = vld [vmem:[%s65] sm:$0xf]
        %v3887 = vld [vmem:[%s65 + $0x4] sm:$0xf]
        %v3888 = vld [vmem:[%s65 + $0x8] sm:$0xf]
        %v3889 = vld [vmem:[%s65 + $0xc] sm:$0xf]
        %v3890 = vld [vmem:[%s65 + $0x10] sm:$0xf]
        %v3891 = vld [vmem:[%s65 + $0x14] sm:$0xf]
        %v3892 = vld [vmem:[%s65 + $0x18] sm:$0xf]
        %v3893 = vld [vmem:[%s65 + $0x1c] sm:$0xf]
        %v3894 = vld [vmem:[%s65 + $0x20] sm:$0xf]
        %v3895 = vld [vmem:[%s65 + $0x24] sm:$0xf]
        %v3896 = vld [vmem:[%s65 + $0x28] sm:$0xf]
        %v3897 = vld [vmem:[%s65 + $0x2c] sm:$0xf]
        %v3898 = vld [vmem:[%s65 + $0x30] sm:$0xf]
        %v3899 = vld [vmem:[%s65 + $0x34] sm:$0xf]
        %v3900 = vld [vmem:[%s65 + $0x38] sm:$0xf]
        %v3901 = vld [vmem:[%s65 + $0x3c] sm:$0xf]
        %v3918 = vunpack.c.l.b16 %v3886
        %v3919 = vunpack.c.l.b16 %v3887
        %v3920 = vunpack.c.l.b16 %v3888
        %v3921 = vunpack.c.l.b16 %v3889
        %v3922 = vunpack.c.l.b16 %v3890
        %v3923 = vunpack.c.l.b16 %v3891
        %v3924 = vunpack.c.l.b16 %v3892
        %v3925 = vunpack.c.l.b16 %v3893
        %v3926 = vunpack.c.l.b16 %v3894
        %v3927 = vunpack.c.l.b16 %v3895
        %v3928 = vunpack.c.l.b16 %v3896
        %v3929 = vunpack.c.l.b16 %v3897
        %v3930 = vunpack.c.l.b16 %v3898
        %v3931 = vunpack.c.l.b16 %v3899
        %v3932 = vunpack.c.l.b16 %v3900
        %v3933 = vunpack.c.l.b16 %v3901
        %v3934 = vpack.c.b16 %v3919, %v3918
        %v3935 = vpack.c.b16 %v3921, %v3920
        %v3936 = vpack.c.b16 %v3923, %v3922
        %v3937 = vpack.c.b16 %v3925, %v3924
        %v3938 = vpack.c.b16 %v3927, %v3926
        %v3939 = vpack.c.b16 %v3929, %v3928
        %v3940 = vpack.c.b16 %v3931, %v3930
        %v3941 = vpack.c.b16 %v3933, %v3932
        %3950 = vmatprep.subr.bf16.mxu0 0
        %3951 = vmatpush1.bf16.msra.mxu0 %v3934
        %3952 = vmatprep.subr.bf16.mxu0 0
        %3953 = vmatpush1.bf16.msra.mxu0 %v3935
        %3954 = vmatprep.subr.bf16.mxu0 0
        %3955 = vmatpush1.bf16.msra.mxu0 %v3936
        %3956 = vmatprep.subr.bf16.mxu0 0
        %3957 = vmatpush1.bf16.msra.mxu0 %v3937
        %3958 = vmatprep.subr.bf16.mxu0 0
        %3959 = vmatpush1.bf16.msra.mxu0 %v3938
        %3960 = vmatprep.subr.bf16.mxu0 0
        %3961 = vmatpush1.bf16.msra.mxu0 %v3939
        %3962 = vmatprep.subr.bf16.mxu0 0
        %3963 = vmatpush1.bf16.msra.mxu0 %v3940
        %3964 = vmatprep.subr.bf16.mxu0 0
        %3965 = vmatpush1.bf16.msra.mxu0 %v3941
        %3966 = vmatprep.subr.bf16.mxu0 0
        %3967 = vmatpush1.bf16.msra.mxu0 0
        %3968 = vmatprep.subr.bf16.mxu0 0
        %3969 = vmatpush1.bf16.msra.mxu0 0
        %3970 = vmatprep.subr.bf16.mxu0 0
        %3971 = vmatpush1.bf16.msra.mxu0 0
        %3972 = vmatprep.subr.bf16.mxu0 0
        %3973 = vmatpush1.bf16.msra.mxu0 0
        %3974 = vmatprep.subr.bf16.mxu0 0
        %3975 = vmatpush1.bf16.msra.mxu0 0
        %3976 = vmatprep.subr.bf16.mxu0 0
        %3977 = vmatpush1.bf16.msra.mxu0 0
        %3978 = vmatprep.subr.bf16.mxu0 0
        %3979 = vmatpush1.bf16.msra.mxu0 0
        %3980 = vmatprep.subr.bf16.mxu0 0
        %3981 = vmatpush1.bf16.msra.mxu0 0
        %3982 = vmatprep.mubr.bf16.mxu0 0
        %3983 = vmatmul.mubr.bf16.gmra.mrb[0].mxu0 %v3677
        %v3984 = vpop.f32.mrb[0].mxu0
        %v3985 = vadd.f32 0.0, %v3984
        %v3986 = vpop.f32.mrb[0].mxu0
        %v3987 = vpop.f32.mrb[0].mxu0
        %v3988 = vpop.f32.mrb[0].mxu0
        %3989 = vdwg.mxu0
        %v3990 = vld [vmem:[%s67] sm:$0xff]
        %v3991 = vld [vmem:[%s67 + $0x8] sm:$0xff]
        %v3992 = vld [vmem:[%s69] sm:$0xff]
        %v3993 = vld [vmem:[%s69 + $0x8] sm:$0xff]
        %v3995 = vsel %vm1851, %v3992, 0
        %v3998 = vsel %vm1851, %v3993, 0
        %4000 = vmatprep.subr.mxu0 0.0
        %4001 = vmatpush1.msra.mxu0 %v3881
        %4002 = vmatprep.subr.mxu0 0.0
        %4003 = vmatpush1.msra.mxu0 0.0
        %4004 = vmatprep.subr.mxu0 0.0
        %4005 = vmatpush1.msra.mxu0 0.0
        %4006 = vmatprep.subr.mxu0 0.0
        %4007 = vmatpush1.msra.mxu0 0.0
        %4008 = vmatprep.subr.mxu0 0.0
        %4009 = vmatpush1.msra.mxu0 0.0
        %4010 = vmatprep.subr.mxu0 0.0
        %4011 = vmatpush1.msra.mxu0 0.0
        %4012 = vmatprep.subr.mxu0 0.0
        %4013 = vmatpush1.msra.mxu0 0.0
        %4014 = vmatprep.subr.mxu0 0.0
        %4015 = vmatpush1.msra.mxu0 0.0
        %4016 = vmatprep.subr.mxu0 0.0
        %4017 = vmatpush1.msra.mxu0 0.0
        %4018 = vmatprep.subr.mxu0 0.0
        %4019 = vmatpush1.msra.mxu0 0.0
        %4020 = vmatprep.subr.mxu0 0.0
        %4021 = vmatpush1.msra.mxu0 0.0
        %4022 = vmatprep.subr.mxu0 0.0
        %4023 = vmatpush1.msra.mxu0 0.0
        %4024 = vmatprep.subr.mxu0 0.0
        %4025 = vmatpush1.msra.mxu0 0.0
        %4026 = vmatprep.subr.mxu0 0.0
        %4027 = vmatpush1.msra.mxu0 0.0
        %4028 = vmatprep.subr.mxu0 0.0
        %4029 = vmatpush1.msra.mxu0 0.0
        %4030 = vmatprep.subr.mxu0 0.0
        %4031 = vmatpush1.msra.mxu0 0.0
        %4032 = vmatprep.subr.mxu0 0.0
        %4033 = vmatpush1.msra.mxu0 0.0
        %4034 = vmatprep.subr.mxu0 0.0
        %4035 = vmatpush1.msra.mxu0 0.0
        %4036 = vmatprep.subr.mxu0 0.0
        %4037 = vmatpush1.msra.mxu0 0.0
        %4038 = vmatprep.subr.mxu0 0.0
        %4039 = vmatpush1.msra.mxu0 0.0
        %4040 = vmatprep.subr.mxu0 0.0
        %4041 = vmatpush1.msra.mxu0 0.0
        %4042 = vmatprep.subr.mxu0 0.0
        %4043 = vmatpush1.msra.mxu0 0.0
        %4044 = vmatprep.subr.mxu0 0.0
        %4045 = vmatpush1.msra.mxu0 0.0
        %4046 = vmatprep.subr.mxu0 0.0
        %4047 = vmatpush1.msra.mxu0 0.0
        %4048 = vmatprep.subr.mxu0 0.0
        %4049 = vmatpush1.msra.mxu0 0.0
        %4050 = vmatprep.subr.mxu0 0.0
        %4051 = vmatpush1.msra.mxu0 0.0
        %4052 = vmatprep.subr.mxu0 0.0
        %4053 = vmatpush1.msra.mxu0 0.0
        %4054 = vmatprep.subr.mxu0 0.0
        %4055 = vmatpush1.msra.mxu0 0.0
        %4056 = vmatprep.subr.mxu0 0.0
        %4057 = vmatpush1.msra.mxu0 0.0
        %4058 = vmatprep.subr.mxu0 0.0
        %4059 = vmatpush1.msra.mxu0 0.0
        %4060 = vmatprep.subr.mxu0 0.0
        %4061 = vmatpush1.msra.mxu0 0.0
        %4062 = vmatprep.subr.mxu0 0.0
        %4063 = vmatpush1.msra.mxu0 0.0
        %4064 = vmatprep.mubr.f32.mxu0 0.0
        %4065 = vmatmul.mubr.f32.gmra.mrb[0].mxu0 %v3995
        %v4066 = vpop.f32.mrb[0].mxu0
        %v4067 = vadd.f32 0.0, %v4066
        %v4068 = vpop.f32.mrb[0].mxu0
        %4069 = vmatprep.mubr.f32.mxu0 0.0
        %4070 = vmatmul.mubr.f32.gmra.mrb[0].mxu0 %v3998
        %v4071 = vpop.f32.mrb[0].mxu0
        %v4072 = vadd.f32 0.0, %v4071
        %v4073 = vpop.f32.mrb[0].mxu0
        %4074 = vdwg.mxu0
        %v4076 = vsel %vm1851, %v3990, 0
        %v4079 = vsel %vm1851, %v3991, 0
        %4081 = vmatprep.subr.mxu0 0.0
        %4082 = vmatpush1.msra.mxu0 %v3777
        %4083 = vmatprep.subr.mxu0 0.0
        %4084 = vmatpush1.msra.mxu0 0.0
        %4085 = vmatprep.subr.mxu0 0.0
        %4086 = vmatpush1.msra.mxu0 0.0
        %4087 = vmatprep.subr.mxu0 0.0
        %4088 = vmatpush1.msra.mxu0 0.0
        %4089 = vmatprep.subr.mxu0 0.0
        %4090 = vmatpush1.msra.mxu0 0.0
        %4091 = vmatprep.subr.mxu0 0.0
        %4092 = vmatpush1.msra.mxu0 0.0
        %4093 = vmatprep.subr.mxu0 0.0
        %4094 = vmatpush1.msra.mxu0 0.0
        %4095 = vmatprep.subr.mxu0 0.0
        %4096 = vmatpush1.msra.mxu0 0.0
        %4097 = vmatprep.subr.mxu0 0.0
        %4098 = vmatpush1.msra.mxu0 0.0
        %4099 = vmatprep.subr.mxu0 0.0
        %4100 = vmatpush1.msra.mxu0 0.0
        %4101 = vmatprep.subr.mxu0 0.0
        %4102 = vmatpush1.msra.mxu0 0.0
        %4103 = vmatprep.subr.mxu0 0.0
        %4104 = vmatpush1.msra.mxu0 0.0
        %4105 = vmatprep.subr.mxu0 0.0
        %4106 = vmatpush1.msra.mxu0 0.0
        %4107 = vmatprep.subr.mxu0 0.0
        %4108 = vmatpush1.msra.mxu0 0.0
        %4109 = vmatprep.subr.mxu0 0.0
        %4110 = vmatpush1.msra.mxu0 0.0
        %4111 = vmatprep.subr.mxu0 0.0
        %4112 = vmatpush1.msra.mxu0 0.0
        %4113 = vmatprep.subr.mxu0 0.0
        %4114 = vmatpush1.msra.mxu0 0.0
        %4115 = vmatprep.subr.mxu0 0.0
        %4116 = vmatpush1.msra.mxu0 0.0
        %4117 = vmatprep.subr.mxu0 0.0
        %4118 = vmatpush1.msra.mxu0 0.0
        %4119 = vmatprep.subr.mxu0 0.0
        %4120 = vmatpush1.msra.mxu0 0.0
        %4121 = vmatprep.subr.mxu0 0.0
        %4122 = vmatpush1.msra.mxu0 0.0
        %4123 = vmatprep.subr.mxu0 0.0
        %4124 = vmatpush1.msra.mxu0 0.0
        %4125 = vmatprep.subr.mxu0 0.0
        %4126 = vmatpush1.msra.mxu0 0.0
        %4127 = vmatprep.subr.mxu0 0.0
        %4128 = vmatpush1.msra.mxu0 0.0
        %4129 = vmatprep.subr.mxu0 0.0
        %4130 = vmatpush1.msra.mxu0 0.0
        %4131 = vmatprep.subr.mxu0 0.0
        %4132 = vmatpush1.msra.mxu0 0.0
        %4133 = vmatprep.subr.mxu0 0.0
        %4134 = vmatpush1.msra.mxu0 0.0
        %4135 = vmatprep.subr.mxu0 0.0
        %4136 = vmatpush1.msra.mxu0 0.0
        %4137 = vmatprep.subr.mxu0 0.0
        %4138 = vmatpush1.msra.mxu0 0.0
        %4139 = vmatprep.subr.mxu0 0.0
        %4140 = vmatpush1.msra.mxu0 0.0
        %4141 = vmatprep.subr.mxu0 0.0
        %4142 = vmatpush1.msra.mxu0 0.0
        %4143 = vmatprep.subr.mxu0 0.0
        %4144 = vmatpush1.msra.mxu0 0.0
        %4145 = vmatprep.mubr.f32.mxu0 0.0
        %4146 = vmatmul.mubr.f32.gmra.mrb[0].mxu0 %v4076
        %v4147 = vpop.f32.mrb[0].mxu0
        %v4148 = vadd.f32 %v4067, %v4147
        %v4149 = vpop.f32.mrb[0].mxu0
        %4150 = vmatprep.mubr.f32.mxu0 0.0
        %4151 = vmatmul.mubr.f32.gmra.mrb[0].mxu0 %v4079
        %v4152 = vpop.f32.mrb[0].mxu0
        %v4153 = vadd.f32 %v4072, %v4152
        %v4154 = vpop.f32.mrb[0].mxu0
        %4155 = vdwg.mxu0
        %v4156 = vld [vmem:[%s71] sm:$0xff]
        %v4157 = vld [vmem:[%s71 + $0x8] sm:$0xff]
        %v4159 = vsel %vm1851, %v4156, 0
        %v4162 = vsel %vm1851, %v4157, 0
        %4164 = vmatprep.subr.mxu0 0.0
        %4165 = vmatpush1.msra.mxu0 %v3985
        %4166 = vmatprep.subr.mxu0 0.0
        %4167 = vmatpush1.msra.mxu0 0.0
        %4168 = vmatprep.subr.mxu0 0.0
        %4169 = vmatpush1.msra.mxu0 0.0
        %4170 = vmatprep.subr.mxu0 0.0
        %4171 = vmatpush1.msra.mxu0 0.0
        %4172 = vmatprep.subr.mxu0 0.0
        %4173 = vmatpush1.msra.mxu0 0.0
        %4174 = vmatprep.subr.mxu0 0.0
        %4175 = vmatpush1.msra.mxu0 0.0
        %4176 = vmatprep.subr.mxu0 0.0
        %4177 = vmatpush1.msra.mxu0 0.0
        %4178 = vmatprep.subr.mxu0 0.0
        %4179 = vmatpush1.msra.mxu0 0.0
        %4180 = vmatprep.subr.mxu0 0.0
        %4181 = vmatpush1.msra.mxu0 0.0
        %4182 = vmatprep.subr.mxu0 0.0
        %4183 = vmatpush1.msra.mxu0 0.0
        %4184 = vmatprep.subr.mxu0 0.0
        %4185 = vmatpush1.msra.mxu0 0.0
        %4186 = vmatprep.subr.mxu0 0.0
        %4187 = vmatpush1.msra.mxu0 0.0
        %4188 = vmatprep.subr.mxu0 0.0
        %4189 = vmatpush1.msra.mxu0 0.0
        %4190 = vmatprep.subr.mxu0 0.0
        %4191 = vmatpush1.msra.mxu0 0.0
        %4192 = vmatprep.subr.mxu0 0.0
        %4193 = vmatpush1.msra.mxu0 0.0
        %4194 = vmatprep.subr.mxu0 0.0
        %4195 = vmatpush1.msra.mxu0 0.0
        %4196 = vmatprep.subr.mxu0 0.0
        %4197 = vmatpush1.msra.mxu0 0.0
        %4198 = vmatprep.subr.mxu0 0.0
        %4199 = vmatpush1.msra.mxu0 0.0
        %4200 = vmatprep.subr.mxu0 0.0
        %4201 = vmatpush1.msra.mxu0 0.0
        %4202 = vmatprep.subr.mxu0 0.0
        %4203 = vmatpush1.msra.mxu0 0.0
        %4204 = vmatprep.subr.mxu0 0.0
        %4205 = vmatpush1.msra.mxu0 0.0
        %4206 = vmatprep.subr.mxu0 0.0
        %4207 = vmatpush1.msra.mxu0 0.0
        %4208 = vmatprep.subr.mxu0 0.0
        %4209 = vmatpush1.msra.mxu0 0.0
        %4210 = vmatprep.subr.mxu0 0.0
        %4211 = vmatpush1.msra.mxu0 0.0
        %4212 = vmatprep.subr.mxu0 0.0
        %4213 = vmatpush1.msra.mxu0 0.0
        %4214 = vmatprep.subr.mxu0 0.0
        %4215 = vmatpush1.msra.mxu0 0.0
        %4216 = vmatprep.subr.mxu0 0.0
        %4217 = vmatpush1.msra.mxu0 0.0
        %4218 = vmatprep.subr.mxu0 0.0
        %4219 = vmatpush1.msra.mxu0 0.0
        %4220 = vmatprep.subr.mxu0 0.0
        %4221 = vmatpush1.msra.mxu0 0.0
        %4222 = vmatprep.subr.mxu0 0.0
        %4223 = vmatpush1.msra.mxu0 0.0
        %4224 = vmatprep.subr.mxu0 0.0
        %4225 = vmatpush1.msra.mxu0 0.0
        %4226 = vmatprep.subr.mxu0 0.0
        %4227 = vmatpush1.msra.mxu0 0.0
        %4228 = vmatprep.mubr.f32.mxu0 0.0
        %4229 = vmatmul.mubr.f32.gmra.mrb[0].mxu0 %v4159
        %v4230 = vpop.f32.mrb[0].mxu0
        %v4231 = vadd.f32 0.0, %v4230
        %v4232 = vpop.f32.mrb[0].mxu0
        %4233 = vmatprep.mubr.f32.mxu0 0.0
        %4234 = vmatmul.mubr.f32.gmra.mrb[0].mxu0 %v4162
        %v4235 = vpop.f32.mrb[0].mxu0
        %v4236 = vadd.f32 0.0, %v4235
        %v4237 = vpop.f32.mrb[0].mxu0
        %4238 = vdwg.mxu0
        %v4239 = vadd.f32 %v4148, %v4231
        %v4240 = vadd.f32 %v4153, %v4236
        %v4241 = vld [vmem:[%s73] sm:$0x1]
        %v4243 = vlaneseq
        %v4244 = vshrl.u32 %v4243, 7
        %v4245 = vsub.s32 0, %v4244
        %v4246 = vrot.slane %v4241, %v4245
        %v4248 = vadd.f32 %v4239, %v4246
        %v4249 = vadd.f32 %v4240, %v4246
        %v4250 = vsub.f32 0.0, %v4248
        %v4251 = vsub.f32 0.0, %v4249
        %v4252 = vmul.f32 %v4250, 1.442695
        %v4253 = vpow.pop %v4252
        %v4254 = vmul.f32 %v4251, 1.442695
        %v4255 = vpow.pop %v4254
        %v4256 = vadd.f32 %v4253, 1.0
        %v4257 = vadd.f32 %v4255, 1.0
        %v4258 = vrcp.pop %v4256
        %v4259 = vmul.f32 1.0, %v4258
        %v4260 = vrcp.pop %v4257
        %v4261 = vmul.f32 1.0, %v4260
        %4262 = vst.msk [vmem:[%s1257] sm:$0xff] %vm1287, %v4259
        %4263 = vst.msk [vmem:[%s1257 + $0x8] sm:$0xff] %vm1287, %v4261
        %s4264 = sand.u32 %s885, 1
        %s4265 = scalar_lea.sflag [#allocation4], %s4264
        %s4266 = sand.u32 %s885, 1
        %s4267 = smul.addr %s4266, 16
        %s4268 = scalar_lea.vmem [#allocation20], %s4267
        // Predicated region
        $region213: #{forward.1} parent=167 // pred_check
          %p4269 = pneg %p895
        $region214: #{forward.1} parent=167 // pred_check_branch
          %4271 = sbr.rel (%p4269) target = $region216
        $region215: #{forward.1} parent=167 // pred_region
          %s4273 = ssub.s32 256, 256
          %4274 = vsyncadd %s4265, %s4273
          %s4275 = smul.addr %s95, 2
          %s4276 = smul.addr %s4275, 128
          %s4277 = scalar_lea.hbm %s75, %s4276
          %s4278 = sshll.u32 %s4268, 4
          %s4279 = int_to_ptr.vmem [resolvable:$true] %s4278
          %4284 = dma.vmem_to_hbm [thread:$0]  %s4279, 256, %s4277, %s4265, 128, 128, 8
        $region216: #{forward.1} parent=167 // pred_fallthru
          _
      $region168: #{forward.1} parent=5 // pred_fallthru
        _
      %p4285 = scmp.le.s32.totalorder 2, %s90
      // Predicated region
      $region217: #{forward.1} parent=5 // pred_check
        %p4286 = pneg %p4285
      $region218: #{forward.1} parent=5 // pred_check_branch
        %4288 = sbr.rel (%p4286) target = $region220
      $region219: #{forward.1} parent=5 // pred_region
        %s4289 = ssub.s32 %s90, 2
        // Predicated region
        $region221: #{forward.1} parent=219 // pred_check
          %p4290 = pneg %p901
        $region222: #{forward.1} parent=219 // pred_check_branch
          %4292 = sbr.rel (%p4290) target = $region224
        $region223: #{forward.1} parent=219 // pred_region
          %s4293 = sand.u32 %s886, 1
          %s4294 = scalar_lea.sflag [#allocation4], %s4293
          %s4295 = sand.u32 %s886, 1
          %s4296 = smul.addr %s4295, 16
          %s4297 = scalar_lea.vmem [#allocation20], %s4296
          %4298 = dma.done %s4294, 256
        $region224: #{forward.1} parent=219 // pred_fallthru
          _
      $region220: #{forward.1} parent=5 // pred_fallthru
        _
    $region6: #{forward.1} parent=1 // loop_footer
      %s94 = sadd.s32 1, %s90
    $region7: #{forward.1} parent=1 // loop_footer_branch
      %89 = sbr.rel target = $region3
    $region8: #{forward.1} parent=1 // loop_exit
      _
    %4299 = vsyncpa [#allocation3], 1
    %s4300 = scalar_lea.sflag [#allocation3], 1
    %4301 = vsyncpa %s4300, 1
    %4302 = vsyncpa [#allocation6], 1
    %4303 = vsyncpa [#allocation9], 1
    %4304 = vsyncpa [#allocation12], 1
    %4305 = vsyncpa [#allocation15], 1
    %4306 = vsyncpa [#allocation18], 1
    %4307 = vsyncpa [#allocation4], 1
    %s4308 = scalar_lea.sflag [#allocation4], 1
    %4309 = vsyncpa %s4308, 1

</llo_original>
